<compile_context>
chip_gen: v7x
topology: tpu7x:2x2x1
jax: 0.10.0
libtpu: 0.0.40
codegen_flags: <defaults>
</compile_context>

<pallas_src>
import jax
import jax.numpy as jnp
from jax.experimental import pallas as pl
from jax.experimental.pallas import tpu as pltpu


# ----------------------------------------------------------------------------
# helpers
# ----------------------------------------------------------------------------
def _vmem_limit_bytes():
    """Generation-dependent VMEM budget (~3/4 of capacity, capped at 100 MiB)."""
    try:
        cap = int(getattr(pltpu.get_tpu_info(), "vmem_capacity_bytes",
                          128 * 1024 * 1024))
    except Exception:  # conservative fallback if the query is unavailable
        cap = 128 * 1024 * 1024
    return max(32 * 1024 * 1024, min(cap * 3 // 4, 100 * 1024 * 1024))


def _pick_m_tile(M, K, bytes_target=4 * 1024 * 1024):
    """Largest pixel-strip (multiple of 128 that divides M) whose bf16 im2col
    block stays under `bytes_target`; whole-M block if it already fits."""
    if M <= 256 or M * K * 2 <= bytes_target:
        return M
    cap = max(128, (bytes_target // (2 * K)) // 128 * 128)
    cap = min(cap, (M // 128) * 128)
    for tm in range(cap, 127, -128):
        if M % tm == 0:
            return tm
    return M  # TODO(synk): ragged last strip for odd detection resolutions.


def _im2col_s2_nchw(x_nchw):
    """3x3 / stride-2 / pad-1 im2col, K-major:
    (N, Cin, H, W) -> (N, 9*Cin, Ho*Wo) bf16.

    Tap ordering (ky, kx) row-major with Cin contiguous per tap matches the
    (3, 3, Cin, Cout) -> (9*Cin, Cout) weight reshape used at init.
    """
    N, C, H, W = x_nchw.shape
    assert H % 2 == 0 and W % 2 == 0, "TODO(synk): pre-pad odd detection sizes"
    Ho, Wo = H // 2, W // 2
    xp = jnp.pad(x_nchw, ((0, 0), (0, 0), (1, 1), (1, 1)))
    taps = []
    for ky in range(3):
        for kx in range(3):
            t = xp[:, :, ky:ky + 2 * Ho:2, kx:kx + 2 * Wo:2]       # (N, C, Ho, Wo)
            taps.append(t.reshape(N, C, Ho * Wo))
    return jnp.concatenate(taps, axis=1).astype(jnp.bfloat16)      # (N, 9C, M)


# ----------------------------------------------------------------------------
# Fused (3x3 stride-2 conv as a single GEMM) + folded-BN bias + ReLU kernel
# ----------------------------------------------------------------------------
def _conv_gemm_bias_relu_kernel(cols_ref, w_ref, b_ref, o_ref):
    # cols_ref: (9*Cin, TM) bf16   -- im2col columns for this pixel strip
    # w_ref:    (Cout, 9*Cin) bf16 -- transposed weights (BN scale / 1/std folded)
    # b_ref:    (Cout, 1)  f32     -- folded BN bias
    # o_ref:    (Cout, TM) bf16    -- lane-dense: minor dim is the pixel strip
    acc = jnp.dot(w_ref[...], cols_ref[...], preferred_element_type=jnp.float32)
    acc = acc + b_ref[...]                       # f32 epilogue: bias + ReLU
    o_ref[...] = jnp.maximum(acc, 0.0).astype(o_ref.dtype)


def conv3x3_s2_bn_relu(x_nchw, w_t, bias_col):
    """3x3 conv, stride 2, pad 1, fused BN-bias + ReLU.  NCHW in, NCHW bf16 out.

    x_nchw:   (N, Cin, H, W)      (stem input already mean-shifted)
    w_t:      (Cout, 9*Cin) bf16  transposed per-tap weights, BN scale folded in
    bias_col: (Cout, 1) f32       folded BN bias
    """
    N, Cin, H, W = x_nchw.shape
    Cout, K = w_t.shape
    assert K == 9 * Cin
    Ho, Wo = H // 2, W // 2
    M = Ho * Wo

    # Fused XLA pre-pass: pad + stride-2 tap extraction + bf16 cast, K-major so
    # the kernel is one big-K GEMM with no in-kernel slicing or relayouts.
    cols = _im2col_s2_nchw(x_nchw)                       # (N, K, M) bf16

    TM = _pick_m_tile(M, K)
    out = pl.pallas_call(
        _conv_gemm_bias_relu_kernel,
        out_shape=jax.ShapeDtypeStruct((N, Cout, M), jnp.bfloat16),
        grid=(N, M // TM),
        in_specs=[
            pl.BlockSpec((None, K, TM), lambda n, m: (n, 0, m)),
            pl.BlockSpec((Cout, K), lambda n, m: (0, 0)),
            pl.BlockSpec((Cout, 1), lambda n, m: (0, 0)),
        ],
        out_specs=pl.BlockSpec((None, Cout, TM), lambda n, m: (n, 0, m)),
        compiler_params=pltpu.CompilerParams(
            dimension_semantics=("parallel", "parallel"),
            vmem_limit_bytes=_vmem_limit_bytes(),
        ),
    )(cols, w_t, bias_col)
    # TODO(synk): fuse the next layer's im2col packing into this kernel's
    # epilogue (second output) to cut one more HBM read+write per layer.
    return out.reshape(N, Cout, Ho, Wo)


# ----------------------------------------------------------------------------
# Synthetic MMDetBackbone
# ----------------------------------------------------------------------------
class MMDetBackbonePallas:
    def __init__(self, key, base=16, num_stages=4, out_indices=(0, 1, 2, 3)):
        # buffers from the PyTorch module
        self.in_norm_mean = jnp.array([0.485, 0.456, 0.406], jnp.float32)
        self.in_norm_std = jnp.array([0.229, 0.224, 0.225], jnp.float32)

        self.out_indices = tuple(out_indices)
        self.out_ids = [i + 2 for i in out_indices]

        # channel plan: stem 3->base, then doubling per stage
        chans = [3, base] + [base * (2 ** (i + 1)) for i in range(num_stages)]
        self.out_sizes = [chans[i + 2] for i in out_indices]

        # deterministic synthetic parameters (no checkpoint load)
        self.ref_layers = []   # raw (w, scale, bias) for the f32 reference
        self.layers = []       # folded (w_t bf16, bias f32) for the Pallas path
        for li in range(len(chans) - 1):
            cin, cout = chans[li], chans[li + 1]
            key, kw, kg, kb, km, kv = jax.random.split(key, 6)
            w = 0.05 * jax.random.normal(kw, (3, 3, cin, cout), jnp.float32)
            gamma = 1.0 + 0.1 * jax.random.normal(kg, (cout,), jnp.float32)
            beta = 0.1 * jax.random.normal(kb, (cout,), jnp.float32)
            rmean = 0.01 * jax.random.normal(km, (cout,), jnp.float32)
            rvar = 1.0 + jnp.abs(0.1 * jax.random.normal(kv, (cout,), jnp.float32))
            scale = gamma / jnp.sqrt(rvar + 1e-5)            # fold BN into affine
            bias = beta - rmean * scale
            self.ref_layers.append((w, scale, bias))

            # fold the BN scale into the output channels of the weights
            w_folded = w * scale[None, None, None, :]
            if li == 0:
                # fold input-normalization 1/std into the stem's input channels
                # (mean shift happens once in XLA; zero-padding the mean-shifted
                #  image is identical to zero-padding the normalized image).
                w_folded = w_folded / self.in_norm_std[None, None, :, None]
            # (3,3,Cin,Cout) -> (9*Cin, Cout) -> transpose; matches im2col K order
            w_t = w_folded.reshape(9 * cin, cout).T.astype(jnp.bfloat16)
            self.layers.append((w_t, bias.reshape(cout, 1)))

        self._jit_forward = jax.jit(self._forward_impl)

    def _forward_impl(self, images_nchw):
        # mean shift only (1/std lives in the stem weights); everything stays NCHW.
        x = images_nchw - self.in_norm_mean.reshape(1, 3, 1, 1)
        feat_maps = []
        for li, (w_t, bias_col) in enumerate(self.layers):
            x = conv3x3_s2_bn_relu(x, w_t, bias_col)         # NCHW bf16
            stage_idx = li - 1                                # layer 0 is the stem
            if stage_idx in self.out_indices:
                feat_maps.append(x.astype(jnp.float32))       # returned-map contract
        return tuple(feat_maps)

    def forward(self, images_nchw):
        """images_nchw: (B, 3, H, W) float in [0, 1].  Returns list of NCHW maps."""
        return list(self._jit_forward(images_nchw))


# ----------------------------------------------------------------------------
# Pure-JAX f32 reference (unfolded params, XLA conv) for a correctness check
# ----------------------------------------------------------------------------
def _ref_forward(model, images_nchw):
    mean = model.in_norm_mean.reshape(1, 3, 1, 1)
    std = model.in_norm_std.reshape(1, 3, 1, 1)
    x = (images_nchw - mean) / std
    feats = []
    for li, (w, scale, bias) in enumerate(model.ref_layers):
        y = jax.lax.conv_general_dilated(
            x, w, window_strides=(2, 2), padding=((1, 1), (1, 1)),
            dimension_numbers=("NCHW", "HWIO", "NCHW"),
            precision=jax.lax.Precision.HIGHEST)
        x = jnp.maximum(
            y * scale.reshape(1, -1, 1, 1) + bias.reshape(1, -1, 1, 1), 0.0)
        if li - 1 in model.out_indices:
            feats.append(x)
    return feats


if __name__ == "__main__":
    key = jax.random.PRNGKey(0)
    key, k_img, k_model = jax.random.split(key, 3)

    # small synthetic batch of images, NCHW like the PyTorch module
    images = jax.random.uniform(k_img, (2, 3, 64, 64), jnp.float32)

    model = MMDetBackbonePallas(k_model, base=16, num_stages=4,
                                out_indices=(0, 1, 2, 3))

    feat_maps = model.forward(images)
    feat_maps = [jax.block_until_ready(f) for f in feat_maps]

    # expected pyramid: strides 4, 8, 16, 32
    expected_shapes = [(2, 32, 16, 16), (2, 64, 8, 8), (2, 128, 4, 4), (2, 256, 2, 2)]
    assert [tuple(f.shape) for f in feat_maps] == expected_shapes

    # correctness vs. pure-JAX f32 reference (bf16 MXU operands -> loose tol)
    ref_maps = _ref_forward(model, images)
    for f, r in zip(feat_maps, ref_maps):
        assert f.shape == r.shape
        err = float(jnp.max(jnp.abs(f - r)))
        assert jnp.allclose(f, r, rtol=4e-2, atol=4e-2), err

    print("KERNEL_OK")
</pallas_src>

<mosaic_0001>
module attributes {stable_mosaic.version = 11 : i64} {
  func.func @_conv_gemm_bias_relu_kernel(%arg0: i32, %arg1: i32, %arg2: memref<1x27x1024xbf16, #tpu.memory_space<vmem>>, %arg3: memref<16x27xbf16, #tpu.memory_space<vmem>>, %arg4: memref<16x1xf32, #tpu.memory_space<vmem>>, %arg5: memref<1x16x1024xbf16, #tpu.memory_space<vmem>>) attributes {dimension_semantics = [#tpu.dimension_semantics<parallel>, #tpu.dimension_semantics<parallel>], iteration_bounds = array<i64: 2, 1>, scalar_prefetch = 0 : i64, scratch_operands = 0 : i64, tpu.core_type = #tpu.core_type<tc>, window_params = [{transform_indices = @transform_0, window_bounds = array<i64: 1, 27, 1024>}, {pipeline_mode = #tpu.pipeline_mode<synchronous>, transform_indices = @transform_1, window_bounds = array<i64: 16, 27>}, {pipeline_mode = #tpu.pipeline_mode<synchronous>, transform_indices = @transform_2, window_bounds = array<i64: 16, 1>}, {transform_indices = @transform_3, window_bounds = array<i64: 1, 16, 1024>}]} {
    %c0 = arith.constant 0 : index
    %c0_0 = arith.constant 0 : index
    %0 = vector.load %arg3[%c0, %c0_0] : memref<16x27xbf16, #tpu.memory_space<vmem>>, vector<16x27xbf16>
    %c0_1 = arith.constant 0 : index
    %c0_2 = arith.constant 0 : index
    %c0_3 = arith.constant 0 : index
    %1 = vector.load %arg2[%c0_1, %c0_2, %c0_3] : memref<1x27x1024xbf16, #tpu.memory_space<vmem>>, vector<1x27x1024xbf16>
    %2 = vector.shape_cast %1 : vector<1x27x1024xbf16> to vector<27x1024xbf16>
    %cst = arith.constant dense<0.000000e+00> : vector<16x1024xf32>
    %3 = tpu.matmul %0, %2, %cst {dimension_numbers = #tpu.dot_dimension_numbers<[1], [0], [0], [1], [0, 0, 1, 1], [], []>} : vector<16x27xbf16>, vector<27x1024xbf16>, vector<16x1024xf32> -> vector<16x1024xf32>
    %c0_4 = arith.constant 0 : index
    %c0_5 = arith.constant 0 : index
    %4 = vector.load %arg4[%c0_4, %c0_5] : memref<16x1xf32, #tpu.memory_space<vmem>>, vector<16x1xf32>
    %5 = vector.broadcast %4 : vector<16x1xf32> to vector<16x1024xf32>
    %6 = arith.addf %3, %5 : vector<16x1024xf32>
    %cst_6 = arith.constant 0.000000e+00 : f32
    %7 = vector.broadcast %cst_6 : f32 to vector<16x1024xf32>
    %8 = arith.maximumf %6, %7 : vector<16x1024xf32>
    %9 = arith.truncf %8 : vector<16x1024xf32> to vector<16x1024xbf16>
    %c0_7 = arith.constant 0 : index
    %c0_8 = arith.constant 0 : index
    %c0_9 = arith.constant 0 : index
    %10 = vector.load %arg5[%c0_7, %c0_8, %c0_9] : memref<1x16x1024xbf16, #tpu.memory_space<vmem>>, vector<1x16x1024xbf16>
    %11 = vector.shape_cast %10 : vector<1x16x1024xbf16> to vector<16x1024xbf16>
    %12 = vector.shape_cast %9 : vector<16x1024xbf16> to vector<1x16x1024xbf16>
    tpu.vector_store %arg5[%c0_7, %c0_8, %c0_9], %12 {strides = array<i32>} : memref<1x16x1024xbf16, #tpu.memory_space<vmem>>, vector<1x16x1024xbf16>,
    return
  }
  func.func @transform_0(%arg0: i32, %arg1: i32) -> (i32, i32, i32) {
    %c0_i32 = arith.constant 0 : i32
    %c0_i32_0 = arith.constant 0 : i32
    return %arg0, %c0_i32, %arg1 : i32, i32, i32
  }
  func.func @transform_1(%arg0: i32, %arg1: i32) -> (i32, i32) {
    %c0_i32 = arith.constant 0 : i32
    %c0_i32_0 = arith.constant 0 : i32
    %c0_i32_1 = arith.constant 0 : i32
    return %c0_i32, %c0_i32_0 : i32, i32
  }
  func.func @transform_2(%arg0: i32, %arg1: i32) -> (i32, i32) {
    %c0_i32 = arith.constant 0 : i32
    %c0_i32_0 = arith.constant 0 : i32
    %c0_i32_1 = arith.constant 0 : i32
    return %c0_i32, %c0_i32_0 : i32, i32
  }
  func.func @transform_3(%arg0: i32, %arg1: i32) -> (i32, i32, i32) {
    %c0_i32 = arith.constant 0 : i32
    %c0_i32_0 = arith.constant 0 : i32
    return %arg0, %c0_i32, %arg1 : i32, i32, i32
  }
}

module attributes {stable_mosaic.version = 11 : i64} {
  func.func @_conv_gemm_bias_relu_kernel(%arg0: i32, %arg1: i32, %arg2: memref<1x144x256xbf16, #tpu.memory_space<vmem>>, %arg3: memref<32x144xbf16, #tpu.memory_space<vmem>>, %arg4: memref<32x1xf32, #tpu.memory_space<vmem>>, %arg5: memref<1x32x256xbf16, #tpu.memory_space<vmem>>) attributes {dimension_semantics = [#tpu.dimension_semantics<parallel>, #tpu.dimension_semantics<parallel>], iteration_bounds = array<i64: 2, 1>, scalar_prefetch = 0 : i64, scratch_operands = 0 : i64, tpu.core_type = #tpu.core_type<tc>, window_params = [{transform_indices = @transform_0, window_bounds = array<i64: 1, 144, 256>}, {pipeline_mode = #tpu.pipeline_mode<synchronous>, transform_indices = @transform_1, window_bounds = array<i64: 32, 144>}, {pipeline_mode = #tpu.pipeline_mode<synchronous>, transform_indices = @transform_2, window_bounds = array<i64: 32, 1>}, {transform_indices = @transform_3, window_bounds = array<i64: 1, 32, 256>}]} {
    %c0 = arith.constant 0 : index
    %c0_0 = arith.constant 0 : index
    %0 = vector.load %arg3[%c0, %c0_0] : memref<32x144xbf16, #tpu.memory_space<vmem>>, vector<32x144xbf16>
    %c0_1 = arith.constant 0 : index
    %c0_2 = arith.constant 0 : index
    %c0_3 = arith.constant 0 : index
    %1 = vector.load %arg2[%c0_1, %c0_2, %c0_3] : memref<1x144x256xbf16, #tpu.memory_space<vmem>>, vector<1x144x256xbf16>
    %2 = vector.shape_cast %1 : vector<1x144x256xbf16> to vector<144x256xbf16>
    %cst = arith.constant dense<0.000000e+00> : vector<32x256xf32>
    %3 = tpu.matmul %0, %2, %cst {dimension_numbers = #tpu.dot_dimension_numbers<[1], [0], [0], [1], [0, 0, 1, 1], [], []>} : vector<32x144xbf16>, vector<144x256xbf16>, vector<32x256xf32> -> vector<32x256xf32>
    %c0_4 = arith.constant 0 : index
    %c0_5 = arith.constant 0 : index
    %4 = vector.load %arg4[%c0_4, %c0_5] : memref<32x1xf32, #tpu.memory_space<vmem>>, vector<32x1xf32>
    %5 = vector.broadcast %4 : vector<32x1xf32> to vector<32x256xf32>
    %6 = arith.addf %3, %5 : vector<32x256xf32>
    %cst_6 = arith.constant 0.000000e+00 : f32
    %7 = vector.broadcast %cst_6 : f32 to vector<32x256xf32>
    %8 = arith.maximumf %6, %7 : vector<32x256xf32>
    %9 = arith.truncf %8 : vector<32x256xf32> to vector<32x256xbf16>
    %c0_7 = arith.constant 0 : index
    %c0_8 = arith.constant 0 : index
    %c0_9 = arith.constant 0 : index
    %10 = vector.load %arg5[%c0_7, %c0_8, %c0_9] : memref<1x32x256xbf16, #tpu.memory_space<vmem>>, vector<1x32x256xbf16>
    %11 = vector.shape_cast %10 : vector<1x32x256xbf16> to vector<32x256xbf16>
    %12 = vector.shape_cast %9 : vector<32x256xbf16> to vector<1x32x256xbf16>
    tpu.vector_store %arg5[%c0_7, %c0_8, %c0_9], %12 {strides = array<i32>} : memref<1x32x256xbf16, #tpu.memory_space<vmem>>, vector<1x32x256xbf16>,
    return
  }
  func.func @transform_0(%arg0: i32, %arg1: i32) -> (i32, i32, i32) {
    %c0_i32 = arith.constant 0 : i32
    %c0_i32_0 = arith.constant 0 : i32
    return %arg0, %c0_i32, %arg1 : i32, i32, i32
  }
  func.func @transform_1(%arg0: i32, %arg1: i32) -> (i32, i32) {
    %c0_i32 = arith.constant 0 : i32
    %c0_i32_0 = arith.constant 0 : i32
    %c0_i32_1 = arith.constant 0 : i32
    return %c0_i32, %c0_i32_0 : i32, i32
  }
  func.func @transform_2(%arg0: i32, %arg1: i32) -> (i32, i32) {
    %c0_i32 = arith.constant 0 : i32
    %c0_i32_0 = arith.constant 0 : i32
    %c0_i32_1 = arith.constant 0 : i32
    return %c0_i32, %c0_i32_0 : i32, i32
  }
  func.func @transform_3(%arg0: i32, %arg1: i32) -> (i32, i32, i32) {
    %c0_i32 = arith.constant 0 : i32
    %c0_i32_0 = arith.constant 0 : i32
    return %arg0, %c0_i32, %arg1 : i32, i32, i32
  }
}

module attributes {stable_mosaic.version = 11 : i64} {
  func.func @_conv_gemm_bias_relu_kernel(%arg0: i32, %arg1: i32, %arg2: memref<1x288x64xbf16, #tpu.memory_space<vmem>>, %arg3: memref<64x288xbf16, #tpu.memory_space<vmem>>, %arg4: memref<64x1xf32, #tpu.memory_space<vmem>>, %arg5: memref<1x64x64xbf16, #tpu.memory_space<vmem>>) attributes {dimension_semantics = [#tpu.dimension_semantics<parallel>, #tpu.dimension_semantics<parallel>], iteration_bounds = array<i64: 2, 1>, scalar_prefetch = 0 : i64, scratch_operands = 0 : i64, tpu.core_type = #tpu.core_type<tc>, window_params = [{transform_indices = @transform_0, window_bounds = array<i64: 1, 288, 64>}, {pipeline_mode = #tpu.pipeline_mode<synchronous>, transform_indices = @transform_1, window_bounds = array<i64: 64, 288>}, {pipeline_mode = #tpu.pipeline_mode<synchronous>, transform_indices = @transform_2, window_bounds = array<i64: 64, 1>}, {transform_indices = @transform_3, window_bounds = array<i64: 1, 64, 64>}]} {
    %c0 = arith.constant 0 : index
    %c0_0 = arith.constant 0 : index
    %0 = vector.load %arg3[%c0, %c0_0] : memref<64x288xbf16, #tpu.memory_space<vmem>>, vector<64x288xbf16>
    %c0_1 = arith.constant 0 : index
    %c0_2 = arith.constant 0 : index
    %c0_3 = arith.constant 0 : index
    %1 = vector.load %arg2[%c0_1, %c0_2, %c0_3] : memref<1x288x64xbf16, #tpu.memory_space<vmem>>, vector<1x288x64xbf16>
    %2 = vector.shape_cast %1 : vector<1x288x64xbf16> to vector<288x64xbf16>
    %cst = arith.constant dense<0.000000e+00> : vector<64x64xf32>
    %3 = tpu.matmul %0, %2, %cst {dimension_numbers = #tpu.dot_dimension_numbers<[1], [0], [0], [1], [0, 0, 1, 1], [], []>} : vector<64x288xbf16>, vector<288x64xbf16>, vector<64x64xf32> -> vector<64x64xf32>
    %c0_4 = arith.constant 0 : index
    %c0_5 = arith.constant 0 : index
    %4 = vector.load %arg4[%c0_4, %c0_5] : memref<64x1xf32, #tpu.memory_space<vmem>>, vector<64x1xf32>
    %5 = vector.broadcast %4 : vector<64x1xf32> to vector<64x64xf32>
    %6 = arith.addf %3, %5 : vector<64x64xf32>
    %cst_6 = arith.constant 0.000000e+00 : f32
    %7 = vector.broadcast %cst_6 : f32 to vector<64x64xf32>
    %8 = arith.maximumf %6, %7 : vector<64x64xf32>
    %9 = arith.truncf %8 : vector<64x64xf32> to vector<64x64xbf16>
    %c0_7 = arith.constant 0 : index
    %c0_8 = arith.constant 0 : index
    %c0_9 = arith.constant 0 : index
    %10 = vector.load %arg5[%c0_7, %c0_8, %c0_9] : memref<1x64x64xbf16, #tpu.memory_space<vmem>>, vector<1x64x64xbf16>
    %11 = vector.shape_cast %10 : vector<1x64x64xbf16> to vector<64x64xbf16>
    %12 = vector.shape_cast %9 : vector<64x64xbf16> to vector<1x64x64xbf16>
    tpu.vector_store %arg5[%c0_7, %c0_8, %c0_9], %12 {strides = array<i32>} : memref<1x64x64xbf16, #tpu.memory_space<vmem>>, vector<1x64x64xbf16>,
    return
  }
  func.func @transform_0(%arg0: i32, %arg1: i32) -> (i32, i32, i32) {
    %c0_i32 = arith.constant 0 : i32
    %c0_i32_0 = arith.constant 0 : i32
    return %arg0, %c0_i32, %arg1 : i32, i32, i32
  }
  func.func @transform_1(%arg0: i32, %arg1: i32) -> (i32, i32) {
    %c0_i32 = arith.constant 0 : i32
    %c0_i32_0 = arith.constant 0 : i32
    %c0_i32_1 = arith.constant 0 : i32
    return %c0_i32, %c0_i32_0 : i32, i32
  }
  func.func @transform_2(%arg0: i32, %arg1: i32) -> (i32, i32) {
    %c0_i32 = arith.constant 0 : i32
    %c0_i32_0 = arith.constant 0 : i32
    %c0_i32_1 = arith.constant 0 : i32
    return %c0_i32, %c0_i32_0 : i32, i32
  }
  func.func @transform_3(%arg0: i32, %arg1: i32) -> (i32, i32, i32) {
    %c0_i32 = arith.constant 0 : i32
    %c0_i32_0 = arith.constant 0 : i32
    return %arg0, %c0_i32, %arg1 : i32, i32, i32
  }
}

module attributes {stable_mosaic.version = 11 : i64} {
  func.func @_conv_gemm_bias_relu_kernel(%arg0: i32, %arg1: i32, %arg2: memref<1x576x16xbf16, #tpu.memory_space<vmem>>, %arg3: memref<128x576xbf16, #tpu.memory_space<vmem>>, %arg4: memref<128x1xf32, #tpu.memory_space<vmem>>, %arg5: memref<1x128x16xbf16, #tpu.memory_space<vmem>>) attributes {dimension_semantics = [#tpu.dimension_semantics<parallel>, #tpu.dimension_semantics<parallel>], iteration_bounds = array<i64: 2, 1>, scalar_prefetch = 0 : i64, scratch_operands = 0 : i64, tpu.core_type = #tpu.core_type<tc>, window_params = [{transform_indices = @transform_0, window_bounds = array<i64: 1, 576, 16>}, {pipeline_mode = #tpu.pipeline_mode<synchronous>, transform_indices = @transform_1, window_bounds = array<i64: 128, 576>}, {pipeline_mode = #tpu.pipeline_mode<synchronous>, transform_indices = @transform_2, window_bounds = array<i64: 128, 1>}, {transform_indices = @transform_3, window_bounds = array<i64: 1, 128, 16>}]} {
    %c0 = arith.constant 0 : index
    %c0_0 = arith.constant 0 : index
    %0 = vector.load %arg3[%c0, %c0_0] : memref<128x576xbf16, #tpu.memory_space<vmem>>, vector<128x576xbf16>
    %c0_1 = arith.constant 0 : index
    %c0_2 = arith.constant 0 : index
    %c0_3 = arith.constant 0 : index
    %1 = vector.load %arg2[%c0_1, %c0_2, %c0_3] : memref<1x576x16xbf16, #tpu.memory_space<vmem>>, vector<1x576x16xbf16>
    %2 = vector.shape_cast %1 : vector<1x576x16xbf16> to vector<576x16xbf16>
    %cst = arith.constant dense<0.000000e+00> : vector<128x16xf32>
    %3 = tpu.matmul %0, %2, %cst {dimension_numbers = #tpu.dot_dimension_numbers<[1], [0], [0], [1], [0, 0, 1, 1], [], []>} : vector<128x576xbf16>, vector<576x16xbf16>, vector<128x16xf32> -> vector<128x16xf32>
    %c0_4 = arith.constant 0 : index
    %c0_5 = arith.constant 0 : index
    %4 = vector.load %arg4[%c0_4, %c0_5] : memref<128x1xf32, #tpu.memory_space<vmem>>, vector<128x1xf32>
    %5 = vector.broadcast %4 : vector<128x1xf32> to vector<128x16xf32>
    %6 = arith.addf %3, %5 : vector<128x16xf32>
    %cst_6 = arith.constant 0.000000e+00 : f32
    %7 = vector.broadcast %cst_6 : f32 to vector<128x16xf32>
    %8 = arith.maximumf %6, %7 : vector<128x16xf32>
    %9 = arith.truncf %8 : vector<128x16xf32> to vector<128x16xbf16>
    %c0_7 = arith.constant 0 : index
    %c0_8 = arith.constant 0 : index
    %c0_9 = arith.constant 0 : index
    %10 = vector.load %arg5[%c0_7, %c0_8, %c0_9] : memref<1x128x16xbf16, #tpu.memory_space<vmem>>, vector<1x128x16xbf16>
    %11 = vector.shape_cast %10 : vector<1x128x16xbf16> to vector<128x16xbf16>
    %12 = vector.shape_cast %9 : vector<128x16xbf16> to vector<1x128x16xbf16>
    tpu.vector_store %arg5[%c0_7, %c0_8, %c0_9], %12 {strides = array<i32>} : memref<1x128x16xbf16, #tpu.memory_space<vmem>>, vector<1x128x16xbf16>,
    return
  }
  func.func @transform_0(%arg0: i32, %arg1: i32) -> (i32, i32, i32) {
    %c0_i32 = arith.constant 0 : i32
    %c0_i32_0 = arith.constant 0 : i32
    return %arg0, %c0_i32, %arg1 : i32, i32, i32
  }
  func.func @transform_1(%arg0: i32, %arg1: i32) -> (i32, i32) {
    %c0_i32 = arith.constant 0 : i32
    %c0_i32_0 = arith.constant 0 : i32
    %c0_i32_1 = arith.constant 0 : i32
    return %c0_i32, %c0_i32_0 : i32, i32
  }
  func.func @transform_2(%arg0: i32, %arg1: i32) -> (i32, i32) {
    %c0_i32 = arith.constant 0 : i32
    %c0_i32_0 = arith.constant 0 : i32
    %c0_i32_1 = arith.constant 0 : i32
    return %c0_i32, %c0_i32_0 : i32, i32
  }
  func.func @transform_3(%arg0: i32, %arg1: i32) -> (i32, i32, i32) {
    %c0_i32 = arith.constant 0 : i32
    %c0_i32_0 = arith.constant 0 : i32
    return %arg0, %c0_i32, %arg1 : i32, i32, i32
  }
}

module attributes {stable_mosaic.version = 11 : i64} {
  func.func @_conv_gemm_bias_relu_kernel(%arg0: i32, %arg1: i32, %arg2: memref<1x1152x4xbf16, #tpu.memory_space<vmem>>, %arg3: memref<256x1152xbf16, #tpu.memory_space<vmem>>, %arg4: memref<256x1xf32, #tpu.memory_space<vmem>>, %arg5: memref<1x256x4xbf16, #tpu.memory_space<vmem>>) attributes {dimension_semantics = [#tpu.dimension_semantics<parallel>, #tpu.dimension_semantics<parallel>], iteration_bounds = array<i64: 2, 1>, scalar_prefetch = 0 : i64, scratch_operands = 0 : i64, tpu.core_type = #tpu.core_type<tc>, window_params = [{transform_indices = @transform_0, window_bounds = array<i64: 1, 1152, 4>}, {pipeline_mode = #tpu.pipeline_mode<synchronous>, transform_indices = @transform_1, window_bounds = array<i64: 256, 1152>}, {pipeline_mode = #tpu.pipeline_mode<synchronous>, transform_indices = @transform_2, window_bounds = array<i64: 256, 1>}, {transform_indices = @transform_3, window_bounds = array<i64: 1, 256, 4>}]} {
    %c0 = arith.constant 0 : index
    %c0_0 = arith.constant 0 : index
    %0 = vector.load %arg3[%c0, %c0_0] : memref<256x1152xbf16, #tpu.memory_space<vmem>>, vector<256x1152xbf16>
    %c0_1 = arith.constant 0 : index
    %c0_2 = arith.constant 0 : index
    %c0_3 = arith.constant 0 : index
    %1 = vector.load %arg2[%c0_1, %c0_2, %c0_3] : memref<1x1152x4xbf16, #tpu.memory_space<vmem>>, vector<1x1152x4xbf16>
    %2 = vector.shape_cast %1 : vector<1x1152x4xbf16> to vector<1152x4xbf16>
    %cst = arith.constant dense<0.000000e+00> : vector<256x4xf32>
    %3 = tpu.matmul %0, %2, %cst {dimension_numbers = #tpu.dot_dimension_numbers<[1], [0], [0], [1], [0, 0, 1, 1], [], []>} : vector<256x1152xbf16>, vector<1152x4xbf16>, vector<256x4xf32> -> vector<256x4xf32>
    %c0_4 = arith.constant 0 : index
    %c0_5 = arith.constant 0 : index
    %4 = vector.load %arg4[%c0_4, %c0_5] : memref<256x1xf32, #tpu.memory_space<vmem>>, vector<256x1xf32>
    %5 = vector.broadcast %4 : vector<256x1xf32> to vector<256x4xf32>
    %6 = arith.addf %3, %5 : vector<256x4xf32>
    %cst_6 = arith.constant 0.000000e+00 : f32
    %7 = vector.broadcast %cst_6 : f32 to vector<256x4xf32>
    %8 = arith.maximumf %6, %7 : vector<256x4xf32>
    %9 = arith.truncf %8 : vector<256x4xf32> to vector<256x4xbf16>
    %c0_7 = arith.constant 0 : index
    %c0_8 = arith.constant 0 : index
    %c0_9 = arith.constant 0 : index
    %10 = vector.load %arg5[%c0_7, %c0_8, %c0_9] : memref<1x256x4xbf16, #tpu.memory_space<vmem>>, vector<1x256x4xbf16>
    %11 = vector.shape_cast %10 : vector<1x256x4xbf16> to vector<256x4xbf16>
    %12 = vector.shape_cast %9 : vector<256x4xbf16> to vector<1x256x4xbf16>
    tpu.vector_store %arg5[%c0_7, %c0_8, %c0_9], %12 {strides = array<i32>} : memref<1x256x4xbf16, #tpu.memory_space<vmem>>, vector<1x256x4xbf16>,
    return
  }
  func.func @transform_0(%arg0: i32, %arg1: i32) -> (i32, i32, i32) {
    %c0_i32 = arith.constant 0 : i32
    %c0_i32_0 = arith.constant 0 : i32
    return %arg0, %c0_i32, %arg1 : i32, i32, i32
  }
  func.func @transform_1(%arg0: i32, %arg1: i32) -> (i32, i32) {
    %c0_i32 = arith.constant 0 : i32
    %c0_i32_0 = arith.constant 0 : i32
    %c0_i32_1 = arith.constant 0 : i32
    return %c0_i32, %c0_i32_0 : i32, i32
  }
  func.func @transform_2(%arg0: i32, %arg1: i32) -> (i32, i32) {
    %c0_i32 = arith.constant 0 : i32
    %c0_i32_0 = arith.constant 0 : i32
    %c0_i32_1 = arith.constant 0 : i32
    return %c0_i32, %c0_i32_0 : i32, i32
  }
  func.func @transform_3(%arg0: i32, %arg1: i32) -> (i32, i32, i32) {
    %c0_i32 = arith.constant 0 : i32
    %c0_i32_0 = arith.constant 0 : i32
    return %arg0, %c0_i32, %arg1 : i32, i32, i32
  }
}

</mosaic_0001>

<llo_original>
// kernel: _forward_impl.5
$region0: #{_forward_impl.5}
  #allocation0 [shape = 'u32[]', space=smem, size = 0x4, offset = 0x4, fixed_abs, tag = 'smem constant byte address 0x4 - core index']
  #allocation1 [shape = 'u32[144,128]{1,0:T(1,128)}', space=vmem, size = 0x12000, scoped, tag = 'internal scratch']
  %s0 = inlined_call_operand.hbm [shape: bf16[2,27,1024], index: 0, kind: input, shape index: {}]
  %s1 = inlined_call_operand.hbm [shape: bf16[16,27], index: 1, kind: input, shape index: {}]
  %s2 = inlined_call_operand.hbm [shape: f32[16,1], index: 2, kind: input, shape index: {}]
  %s3 = inlined_call_operand.hbm [shape: bf16[2,16,1024], index: 3, kind: output, shape index: {}]
  %s4 = sld [smem:[#allocation0]]
  $region57: #{_forward_impl.5} parent=0
    _
  %s6 = ssub.s32 1, %s4
  %s7 = scalar_select 0, %s6, %s4
  $region1: #{_forward_impl.5} parent=0
    #allocation2 [shape = 'u8[131072]{0}', space=vmem, size = 0x20000, scoped, tag = 'input window, operand 0']
    #allocation3 [shape = 's32[2]{0}', space=sflag, size = 0x8, scoped, tag = 'scoped memory for _forward_impl.5']
    #allocation4 [shape = 's32[2]{0}', space=sflag, size = 0x8, scoped, tag = 'scoped memory for _forward_impl.5']
    #allocation5 [shape = 'u8[4096]{0}', space=vmem, size = 0x1000, scoped, tag = 'input window, operand 1, single buffered']
    #allocation6 [shape = 's32[1]{0}', space=sflag, size = 0x4, scoped, tag = 'scoped memory for _forward_impl.5']
    #allocation7 [shape = 'u8[8192]{0}', space=vmem, size = 0x2000, scoped, tag = 'input window, operand 2, single buffered']
    #allocation8 [shape = 'u8[65536]{0}', space=vmem, size = 0x10000, scoped, tag = 'output window, operand 0']
    %8 = vsyncpa [#allocation3], 0
    %s9 = scalar_lea.sflag [#allocation3], 1
    %10 = vsyncpa %s9, 0
    %11 = vsyncpa [#allocation6], 0
    %12 = vsyncpa [#allocation4], 0
    %s13 = scalar_lea.sflag [#allocation4], 1
    %14 = vsyncpa %s13, 0
    loop: start=0, step=1, limit=4
    $region2: #{_forward_impl.5} parent=1 // loop_pre_header
      _
    $region3: #{_forward_impl.5} parent=1 // loop_header
      %s16 = sphi 0, %s20
      %p17 = scmp.ge.s32.totalorder %s16, 4
      %s23 = sphi 0, %s35
      %s24 = sphi 0, %s31
      %s25 = sphi 0, %s23
      %s26 = sphi 0, %s24
      %s27 = sphi 0, %s25
      %s28 = sphi 0, %s26
      %s40 = sphi 0, %s42
      %s43 = sphi 0, %s40
      %s44 = sphi 0, %s43
      %s60 = sphi 0, %s44
      %s64 = sphi 0, %s64
      %s66 = sphi 0, %s64
      %s67 = sphi 0, %s66
      %s81 = sphi 0, %s67
      %s85 = sphi 0, %s85
      %s87 = sphi 0, %s85
      %s88 = sphi 0, %s87
      %s102 = sphi 0, %s88
      %s110 = sphi 0, %s112
      %s113 = sphi 0, %s110
      %s114 = sphi 0, %s113
      %s130 = sphi 0, %s114
    $region4: #{_forward_impl.5} parent=1 // loop_header_branch
      %19 = sbr.rel (%p17) target = $region8
    $region5: #{_forward_impl.5} parent=1 // loop_body
      %s21 = ssub.s32 %s16, 1
      %s22 = ssub.s32 %s16, 2
      %s29 = sadd.s32 1, %s24
      %p30 = scmp.ge.s32.totalorder %s29, 1
      %s31 = scalar_select %p30, 0, %s29
      %s32 = sadd.s32 1, %s23
      %s33 = scalar_select %p30, %s32, %s23
      %p34 = scmp.ge.s32.totalorder %s33, 2
      %s35 = scalar_select %p34, 0, %s33
      %s36 = ssub.s32 %s23, %s35
      %s37 = ssub.s32 %s24, %s31
      %s38 = sor.u32 %s36, %s37
      %p39 = scmp.eq.s32.totalorder %s38, 0
      %s41 = sadd.s32 %s40, 1
      %s42 = scalar_select %p39, %s40, %s41
      %p45 = pneg %p39
      %p46 = scmp.eq.s32.totalorder %s16, 1
      %p47 = por %p45, %p46
      %p48 = scmp.ne.s32.totalorder %s40, %s43
      %p49 = scmp.eq.s32.totalorder %s16, 0
      %p50 = por %p48, %p49
      %p51 = scmp.ne.s32.totalorder %s40, %s43
      %p52 = scmp.eq.s32.totalorder %s21, 1
      %p53 = por %p51, %p52
      %p54 = scmp.ne.s32.totalorder %s43, %s44
      %p55 = scmp.eq.s32.totalorder %s21, 0
      %p56 = por %p54, %p55
      %p57 = scmp.ne.s32.totalorder %s43, %s44
      %p58 = scmp.eq.s32.totalorder %s22, 1
      %p59 = por %p57, %p58
      %p61 = scmp.ne.s32.totalorder %s44, %s60
      %p62 = scmp.eq.s32.totalorder %s22, 0
      %p63 = por %p61, %p62
      %s65 = sadd.s32 %s64, 1
      %p68 = scmp.eq.s32.totalorder %s16, 1
      %p69 = scmp.ne.s32.totalorder %s64, %s66
      %p70 = scmp.eq.s32.totalorder %s16, 0
      %p71 = por %p69, %p70
      %p72 = scmp.ne.s32.totalorder %s64, %s66
      %p73 = scmp.eq.s32.totalorder %s21, 1
      %p74 = por %p72, %p73
      %p75 = scmp.ne.s32.totalorder %s66, %s67
      %p76 = scmp.eq.s32.totalorder %s21, 0
      %p77 = por %p75, %p76
      %p78 = scmp.ne.s32.totalorder %s66, %s67
      %p79 = scmp.eq.s32.totalorder %s22, 1
      %p80 = por %p78, %p79
      %p82 = scmp.ne.s32.totalorder %s67, %s81
      %p83 = scmp.eq.s32.totalorder %s22, 0
      %p84 = por %p82, %p83
      %s86 = sadd.s32 %s85, 1
      %p89 = scmp.eq.s32.totalorder %s16, 1
      %p90 = scmp.ne.s32.totalorder %s85, %s87
      %p91 = scmp.eq.s32.totalorder %s16, 0
      %p92 = por %p90, %p91
      %p93 = scmp.ne.s32.totalorder %s85, %s87
      %p94 = scmp.eq.s32.totalorder %s21, 1
      %p95 = por %p93, %p94
      %p96 = scmp.ne.s32.totalorder %s87, %s88
      %p97 = scmp.eq.s32.totalorder %s21, 0
      %p98 = por %p96, %p97
      %p99 = scmp.ne.s32.totalorder %s87, %s88
      %p100 = scmp.eq.s32.totalorder %s22, 1
      %p101 = por %p99, %p100
      %p103 = scmp.ne.s32.totalorder %s88, %s102
      %p104 = scmp.eq.s32.totalorder %s22, 0
      %p105 = por %p103, %p104
      %s106 = ssub.s32 %s23, %s35
      %s107 = ssub.s32 %s24, %s31
      %s108 = sor.u32 %s106, %s107
      %p109 = scmp.eq.s32.totalorder %s108, 0
      %s111 = sadd.s32 %s110, 1
      %s112 = scalar_select %p109, %s110, %s111
      %p115 = pneg %p109
      %p116 = scmp.eq.s32.totalorder %s16, 1
      %p117 = por %p115, %p116
      %p118 = scmp.ne.s32.totalorder %s110, %s113
      %p119 = scmp.eq.s32.totalorder %s16, 0
      %p120 = por %p118, %p119
      %p121 = scmp.ne.s32.totalorder %s110, %s113
      %p122 = scmp.eq.s32.totalorder %s21, 1
      %p123 = por %p121, %p122
      %p124 = scmp.ne.s32.totalorder %s113, %s114
      %p125 = scmp.eq.s32.totalorder %s21, 0
      %p126 = por %p124, %p125
      %p127 = scmp.ne.s32.totalorder %s113, %s114
      %p128 = scmp.eq.s32.totalorder %s22, 1
      %p129 = por %p127, %p128
      %p131 = scmp.ne.s32.totalorder %s114, %s130
      %p132 = scmp.eq.s32.totalorder %s22, 0
      %p133 = por %p131, %p132
      %p134 = scmp.le.s32.totalorder 1, %s16
      %p135 = scmp.lt.s32.totalorder %s16, 3
      %p136 = pnand %p134, %p135
      %p137 = pneg %p136
      // Predicated region
      $region9: #{_forward_impl.5} parent=5 // pred_check
        _
      $region10: #{_forward_impl.5} parent=5 // pred_check_branch
        %139 = sbr.rel (%p136) target = $region12
      $region11: #{_forward_impl.5} parent=5 // pred_region
        %s140 = ssub.s32 %s16, 1
        // Predicated region
        $region13: #{_forward_impl.5} parent=11 // pred_check
          %p141 = pneg %p77
        $region14: #{_forward_impl.5} parent=11 // pred_check_branch
          %143 = sbr.rel (%p141) target = $region16
        $region15: #{_forward_impl.5} parent=11 // pred_region
          %s145 = ssub.s32 128, 128
          %146 = vsyncadd [#allocation6], %s145
          %s147 = sshll.u32 [#allocation5], 4
          %s148 = int_to_ptr.vmem [resolvable:$true] %s147
          %153 = dma.hbm_to_vmem [thread:$0]  %s1, 128, %s148, [#allocation6], 64, 64, 4
        $region16: #{_forward_impl.5} parent=11 // pred_fallthru
          _
        // Predicated region
        $region17: #{_forward_impl.5} parent=11 // pred_check
          %p154 = pneg %p98
        $region18: #{_forward_impl.5} parent=11 // pred_check_branch
          %156 = sbr.rel (%p154) target = $region20
        $region19: #{_forward_impl.5} parent=11 // pred_region
          %s158 = ssub.s32 256, 256
          %159 = vsyncadd [#allocation6], %s158
          %s160 = sshll.u32 [#allocation7], 4
          %s161 = int_to_ptr.vmem [resolvable:$true] %s160
          %166 = dma.hbm_to_vmem [thread:$0]  %s2, 256, %s161, [#allocation6], 128, 128, 8
        $region20: #{_forward_impl.5} parent=11 // pred_fallthru
          _
      $region12: #{_forward_impl.5} parent=5 // pred_fallthru
        _
      %p167 = scmp.lt.s32.totalorder %s16, 2
      // Predicated region
      $region21: #{_forward_impl.5} parent=5 // pred_check
        %p168 = pneg %p167
      $region22: #{_forward_impl.5} parent=5 // pred_check_branch
        %170 = sbr.rel (%p168) target = $region24
      $region23: #{_forward_impl.5} parent=5 // pred_region
        // Predicated region
        $region25: #{_forward_impl.5} parent=23 // pred_check
          %p171 = pneg %p50
        $region26: #{_forward_impl.5} parent=23 // pred_check_branch
          %173 = sbr.rel (%p171) target = $region28
        $region27: #{_forward_impl.5} parent=23 // pred_region
          %s174 = sand.u32 %s40, 1
          %s175 = scalar_lea.sflag [#allocation3], %s174
          %s176 = sand.u32 %s40, 1
          %s177 = smul.addr %s176, 128
          %s178 = scalar_lea.vmem [#allocation2], %s177
          %s179 = smul.u32 8, %s24
          %s181 = ssub.s32 2048, 2048
          %182 = vsyncadd %s175, %s181
          %s183 = smul.addr %s23, 32
          %s184 = sadd.s32 %s179, %s183
          %s185 = smul.addr %s184, 64
          %s186 = scalar_lea.hbm %s0, %s185
          %s187 = sshll.u32 %s178, 4
          %s188 = int_to_ptr.vmem [resolvable:$true] %s187
          %193 = dma.hbm_to_vmem [thread:$0]  %s186, 2048, %s188, %s175, 512, 512, 32
        $region28: #{_forward_impl.5} parent=23 // pred_fallthru
          _
      $region24: #{_forward_impl.5} parent=5 // pred_fallthru
        _
      %p194 = scmp.le.s32.totalorder 1, %s16
      %p195 = scmp.lt.s32.totalorder %s16, 3
      %p196 = pnand %p194, %p195
      %p197 = pneg %p196
      // Predicated region
      $region29: #{_forward_impl.5} parent=5 // pred_check
        _
      $region30: #{_forward_impl.5} parent=5 // pred_check_branch
        %199 = sbr.rel (%p196) target = $region32
      $region31: #{_forward_impl.5} parent=5 // pred_region
        %s200 = ssub.s32 %s16, 1
        %s201 = sand.u32 %s43, 1
        %s202 = scalar_lea.sflag [#allocation3], %s201
        %s203 = sand.u32 %s43, 1
        %s204 = smul.addr %s203, 128
        %s205 = scalar_lea.vmem [#allocation2], %s204
        // Predicated region
        $region33: #{_forward_impl.5} parent=31 // pred_check
          %p206 = pneg %p56
        $region34: #{_forward_impl.5} parent=31 // pred_check_branch
          %208 = sbr.rel (%p206) target = $region36
        $region35: #{_forward_impl.5} parent=31 // pred_region
          %209 = dma.done %s202, 2048
        $region36: #{_forward_impl.5} parent=31 // pred_fallthru
          _
        // Predicated region
        $region37: #{_forward_impl.5} parent=31 // pred_check
          %p210 = pneg %p77
        $region38: #{_forward_impl.5} parent=31 // pred_check_branch
          %212 = sbr.rel (%p210) target = $region40
        $region39: #{_forward_impl.5} parent=31 // pred_region
          %213 = dma.done [#allocation6], 128
        $region40: #{_forward_impl.5} parent=31 // pred_fallthru
          _
        // Predicated region
        $region41: #{_forward_impl.5} parent=31 // pred_check
          %p214 = pneg %p98
        $region42: #{_forward_impl.5} parent=31 // pred_check_branch
          %216 = sbr.rel (%p214) target = $region44
        $region43: #{_forward_impl.5} parent=31 // pred_region
          %217 = dma.done [#allocation6], 256
        $region44: #{_forward_impl.5} parent=31 // pred_fallthru
          _
        %s218 = sand.u32 %s43, 1
        %s219 = scalar_lea.sflag [#allocation3], %s218
        %s220 = sand.u32 %s43, 1
        %s221 = smul.addr %s220, 128
        %s222 = scalar_lea.vmem [#allocation2], %s221
        %p223 = pneg %p56
        %p224 = pneg %p53
        %p225 = pneg %p77
        %p226 = pneg %p74
        %p227 = pneg %p98
        %p228 = pneg %p95
        %p229 = pneg %p126
        %p230 = pneg %p123
        %s231 = sand.u32 %s113, 1
        %s232 = scalar_lea.sflag [#allocation4], %s231
        %s233 = sand.u32 %s113, 1
        %s234 = smul.addr %s233, 64
        %s235 = scalar_lea.vmem [#allocation8], %s234
        %s236 = smul.u32 8, %s26
        %s237 = smul.u32 8, %s26
        %v239 = vld [vmem:[#allocation5] sm:$0xf]
        %v240 = vld [vmem:[#allocation5 + $0x4] sm:$0xf]
        %v241 = vld [vmem:[%s205] sm:$0xff]
        %v242 = vld [vmem:[%s205 + $0x8] sm:$0xff]
        %v243 = vld [vmem:[%s205 + $0x10] sm:$0xff]
        %v244 = vld [vmem:[%s205 + $0x18] sm:$0xff]
        %v245 = vld [vmem:[%s205 + $0x20] sm:$0xff]
        %v246 = vld [vmem:[%s205 + $0x28] sm:$0xff]
        %v247 = vld [vmem:[%s205 + $0x30] sm:$0xff]
        %v248 = vld [vmem:[%s205 + $0x38] sm:$0xff]
        %v249 = vld [vmem:[%s205 + $0x40] sm:$0xff]
        %v250 = vld [vmem:[%s205 + $0x48] sm:$0xff]
        %v251 = vld [vmem:[%s205 + $0x50] sm:$0xff]
        %v252 = vld [vmem:[%s205 + $0x58] sm:$0xff]
        %v253 = vld [vmem:[%s205 + $0x60] sm:$0x33]
        %v254 = vld [vmem:[%s205 + $0x68] sm:$0x33]
        %v255 = vld [vmem:[%s205 + $0x70] sm:$0x33]
        %v256 = vld [vmem:[%s205 + $0x78] sm:$0x33]
        %v257 = vld [vmem:[#allocation7] sm:$0xff]
        %v258 = vld [vmem:[#allocation7 + $0x8] sm:$0xff]
        %260 = vset.pattern.permute.xlu0 0
        %261 = vperm.xlu0 %260, %v257
        %v262 = vpop.permute.xlu0 %261
        %265 = vset.pattern.permute.xlu0 0
        %266 = vperm.xlu0 %265, %v258
        %v267 = vpop.permute.xlu0 %266
        %v271 = vunpack.c.l.b16 %v239
        %v272 = vunpack.c.l.b16 %v240
        %v273 = vpack.c.b16 %v272, %v271
        %v290 = vunpack.c.l.b16 %v241
        %v291 = vunpack.c.h.b16 %v241
        %v292 = vunpack.c.l.b16 %v242
        %v293 = vunpack.c.h.b16 %v242
        %v294 = vunpack.c.l.b16 %v243
        %v295 = vunpack.c.h.b16 %v243
        %v296 = vunpack.c.l.b16 %v244
        %v297 = vunpack.c.h.b16 %v244
        %v298 = vunpack.c.l.b16 %v245
        %v299 = vunpack.c.h.b16 %v245
        %v300 = vunpack.c.l.b16 %v246
        %v301 = vunpack.c.h.b16 %v246
        %v302 = vunpack.c.l.b16 %v247
        %v303 = vunpack.c.h.b16 %v247
        %v304 = vunpack.c.l.b16 %v248
        %v305 = vunpack.c.h.b16 %v248
        %v306 = vunpack.c.l.b16 %v249
        %v307 = vunpack.c.h.b16 %v249
        %v308 = vunpack.c.l.b16 %v250
        %v309 = vunpack.c.h.b16 %v250
        %v310 = vunpack.c.l.b16 %v251
        %v311 = vunpack.c.h.b16 %v251
        %v312 = vunpack.c.l.b16 %v252
        %v313 = vunpack.c.h.b16 %v252
        %v314 = vunpack.c.l.b16 %v253
        %v315 = vunpack.c.h.b16 %v253
        %v316 = vunpack.c.l.b16 %v254
        %v317 = vunpack.c.h.b16 %v254
        %v318 = vunpack.c.l.b16 %v255
        %v319 = vunpack.c.h.b16 %v255
        %v320 = vunpack.c.l.b16 %v256
        %v321 = vunpack.c.h.b16 %v256
        %v322 = vpack.c.b16 %v298, %v290
        %v323 = vpack.c.b16 %v299, %v291
        %v324 = vpack.c.b16 %v300, %v292
        %v325 = vpack.c.b16 %v301, %v293
        %v326 = vpack.c.b16 %v302, %v294
        %v327 = vpack.c.b16 %v303, %v295
        %v328 = vpack.c.b16 %v304, %v296
        %v329 = vpack.c.b16 %v305, %v297
        %v330 = vpack.c.b16 %v314, %v306
        %v331 = vpack.c.b16 %v315, %v307
        %v332 = vpack.c.b16 %v316, %v308
        %v333 = vpack.c.b16 %v317, %v309
        %v334 = vpack.c.b16 %v318, %v310
        %v335 = vpack.c.b16 %v319, %v311
        %v336 = vpack.c.b16 %v320, %v312
        %v337 = vpack.c.b16 %v321, %v313
        %vm346 = vcmask 220160
        %v348 = vsel %vm346, %v273, 0
        %vm350 = vcmask 1044480
        %vm351 = vcmask 1045504
        %v352 = vsel %vm350, 4294967295, 65535
        %v353 = vsel %vm351, %v352, 0
        %v355 = vand.u32 %v330, %v353
        %v358 = vand.u32 %v331, %v353
        %v361 = vand.u32 %v332, %v353
        %v364 = vand.u32 %v333, %v353
        %v367 = vand.u32 %v334, %v353
        %v370 = vand.u32 %v335, %v353
        %v373 = vand.u32 %v336, %v353
        %v376 = vand.u32 %v337, %v353
        %378 = vmatprep.subr.bf16.mxu0 %v323
        %379 = vmatpush1.bf16.msra.mxu0 %v322
        %380 = vmatprep.subr.bf16.mxu0 %v358
        %381 = vmatpush1.bf16.msra.mxu0 %v355
        %382 = vmatprep.subr.bf16.mxu0 0
        %383 = vmatpush1.bf16.msra.mxu0 0
        %384 = vmatprep.subr.bf16.mxu0 0
        %385 = vmatpush1.bf16.msra.mxu0 0
        %386 = vmatprep.subr.bf16.mxu0 0
        %387 = vmatpush1.bf16.msra.mxu0 0
        %388 = vmatprep.subr.bf16.mxu0 0
        %389 = vmatpush1.bf16.msra.mxu0 0
        %390 = vmatprep.subr.bf16.mxu0 0
        %391 = vmatpush1.bf16.msra.mxu0 0
        %392 = vmatprep.subr.bf16.mxu0 0
        %393 = vmatpush1.bf16.msra.mxu0 0
        %394 = vmatprep.subr.bf16.mxu0 0
        %395 = vmatpush1.bf16.msra.mxu0 0
        %396 = vmatprep.subr.bf16.mxu0 0
        %397 = vmatpush1.bf16.msra.mxu0 0
        %398 = vmatprep.subr.bf16.mxu0 0
        %399 = vmatpush1.bf16.msra.mxu0 0
        %400 = vmatprep.subr.bf16.mxu0 0
        %401 = vmatpush1.bf16.msra.mxu0 0
        %402 = vmatprep.subr.bf16.mxu0 0
        %403 = vmatpush1.bf16.msra.mxu0 0
        %404 = vmatprep.subr.bf16.mxu0 0
        %405 = vmatpush1.bf16.msra.mxu0 0
        %406 = vmatprep.subr.bf16.mxu0 0
        %407 = vmatpush1.bf16.msra.mxu0 0
        %408 = vmatprep.subr.bf16.mxu0 0
        %409 = vmatpush1.bf16.msra.mxu0 0
        %410 = vmatprep.mubr.bf16.mxu0 0
        %411 = vmatmul.mubr.bf16.gmra.mrb[0].mxu0 %v348
        %v412 = vpop.f32.mrb[0].mxu0
        %v413 = vadd.f32 %v262, %v412
        %v414 = vpop.f32.mrb[0].mxu0
        %v415 = vadd.f32 %v262, %v414
        %v416 = vpop.f32.mrb[0].mxu0
        %v417 = vadd.f32 %v267, %v416
        %v418 = vpop.f32.mrb[0].mxu0
        %v419 = vadd.f32 %v267, %v418
        %420 = vdwg.mxu0
        %421 = vmatprep.subr.bf16.mxu0 %v325
        %422 = vmatpush1.bf16.msra.mxu0 %v324
        %423 = vmatprep.subr.bf16.mxu0 %v364
        %424 = vmatpush1.bf16.msra.mxu0 %v361
        %425 = vmatprep.subr.bf16.mxu0 0
        %426 = vmatpush1.bf16.msra.mxu0 0
        %427 = vmatprep.subr.bf16.mxu0 0
        %428 = vmatpush1.bf16.msra.mxu0 0
        %429 = vmatprep.subr.bf16.mxu0 0
        %430 = vmatpush1.bf16.msra.mxu0 0
        %431 = vmatprep.subr.bf16.mxu0 0
        %432 = vmatpush1.bf16.msra.mxu0 0
        %433 = vmatprep.subr.bf16.mxu0 0
        %434 = vmatpush1.bf16.msra.mxu0 0
        %435 = vmatprep.subr.bf16.mxu0 0
        %436 = vmatpush1.bf16.msra.mxu0 0
        %437 = vmatprep.subr.bf16.mxu0 0
        %438 = vmatpush1.bf16.msra.mxu0 0
        %439 = vmatprep.subr.bf16.mxu0 0
        %440 = vmatpush1.bf16.msra.mxu0 0
        %441 = vmatprep.subr.bf16.mxu0 0
        %442 = vmatpush1.bf16.msra.mxu0 0
        %443 = vmatprep.subr.bf16.mxu0 0
        %444 = vmatpush1.bf16.msra.mxu0 0
        %445 = vmatprep.subr.bf16.mxu0 0
        %446 = vmatpush1.bf16.msra.mxu0 0
        %447 = vmatprep.subr.bf16.mxu0 0
        %448 = vmatpush1.bf16.msra.mxu0 0
        %449 = vmatprep.subr.bf16.mxu0 0
        %450 = vmatpush1.bf16.msra.mxu0 0
        %451 = vmatprep.subr.bf16.mxu0 0
        %452 = vmatpush1.bf16.msra.mxu0 0
        %453 = vmatprep.mubr.bf16.mxu0 0
        %454 = vmatmul.mubr.bf16.gmra.mrb[0].mxu0 %v348
        %v455 = vpop.f32.mrb[0].mxu0
        %v456 = vadd.f32 %v262, %v455
        %v457 = vpop.f32.mrb[0].mxu0
        %v458 = vadd.f32 %v262, %v457
        %v459 = vpop.f32.mrb[0].mxu0
        %v460 = vadd.f32 %v267, %v459
        %v461 = vpop.f32.mrb[0].mxu0
        %v462 = vadd.f32 %v267, %v461
        %463 = vdwg.mxu0
        %464 = vmatprep.subr.bf16.mxu0 %v327
        %465 = vmatpush1.bf16.msra.mxu0 %v326
        %466 = vmatprep.subr.bf16.mxu0 %v370
        %467 = vmatpush1.bf16.msra.mxu0 %v367
        %468 = vmatprep.subr.bf16.mxu0 0
        %469 = vmatpush1.bf16.msra.mxu0 0
        %470 = vmatprep.subr.bf16.mxu0 0
        %471 = vmatpush1.bf16.msra.mxu0 0
        %472 = vmatprep.subr.bf16.mxu0 0
        %473 = vmatpush1.bf16.msra.mxu0 0
        %474 = vmatprep.subr.bf16.mxu0 0
        %475 = vmatpush1.bf16.msra.mxu0 0
        %476 = vmatprep.subr.bf16.mxu0 0
        %477 = vmatpush1.bf16.msra.mxu0 0
        %478 = vmatprep.subr.bf16.mxu0 0
        %479 = vmatpush1.bf16.msra.mxu0 0
        %480 = vmatprep.subr.bf16.mxu0 0
        %481 = vmatpush1.bf16.msra.mxu0 0
        %482 = vmatprep.subr.bf16.mxu0 0
        %483 = vmatpush1.bf16.msra.mxu0 0
        %484 = vmatprep.subr.bf16.mxu0 0
        %485 = vmatpush1.bf16.msra.mxu0 0
        %486 = vmatprep.subr.bf16.mxu0 0
        %487 = vmatpush1.bf16.msra.mxu0 0
        %488 = vmatprep.subr.bf16.mxu0 0
        %489 = vmatpush1.bf16.msra.mxu0 0
        %490 = vmatprep.subr.bf16.mxu0 0
        %491 = vmatpush1.bf16.msra.mxu0 0
        %492 = vmatprep.subr.bf16.mxu0 0
        %493 = vmatpush1.bf16.msra.mxu0 0
        %494 = vmatprep.subr.bf16.mxu0 0
        %495 = vmatpush1.bf16.msra.mxu0 0
        %496 = vmatprep.mubr.bf16.mxu0 0
        %497 = vmatmul.mubr.bf16.gmra.mrb[0].mxu0 %v348
        %v498 = vpop.f32.mrb[0].mxu0
        %v499 = vadd.f32 %v262, %v498
        %v500 = vpop.f32.mrb[0].mxu0
        %v501 = vadd.f32 %v262, %v500
        %v502 = vpop.f32.mrb[0].mxu0
        %v503 = vadd.f32 %v267, %v502
        %v504 = vpop.f32.mrb[0].mxu0
        %v505 = vadd.f32 %v267, %v504
        %506 = vdwg.mxu0
        %507 = vmatprep.subr.bf16.mxu0 %v329
        %508 = vmatpush1.bf16.msra.mxu0 %v328
        %509 = vmatprep.subr.bf16.mxu0 %v376
        %510 = vmatpush1.bf16.msra.mxu0 %v373
        %511 = vmatprep.subr.bf16.mxu0 0
        %512 = vmatpush1.bf16.msra.mxu0 0
        %513 = vmatprep.subr.bf16.mxu0 0
        %514 = vmatpush1.bf16.msra.mxu0 0
        %515 = vmatprep.subr.bf16.mxu0 0
        %516 = vmatpush1.bf16.msra.mxu0 0
        %517 = vmatprep.subr.bf16.mxu0 0
        %518 = vmatpush1.bf16.msra.mxu0 0
        %519 = vmatprep.subr.bf16.mxu0 0
        %520 = vmatpush1.bf16.msra.mxu0 0
        %521 = vmatprep.subr.bf16.mxu0 0
        %522 = vmatpush1.bf16.msra.mxu0 0
        %523 = vmatprep.subr.bf16.mxu0 0
        %524 = vmatpush1.bf16.msra.mxu0 0
        %525 = vmatprep.subr.bf16.mxu0 0
        %526 = vmatpush1.bf16.msra.mxu0 0
        %527 = vmatprep.subr.bf16.mxu0 0
        %528 = vmatpush1.bf16.msra.mxu0 0
        %529 = vmatprep.subr.bf16.mxu0 0
        %530 = vmatpush1.bf16.msra.mxu0 0
        %531 = vmatprep.subr.bf16.mxu0 0
        %532 = vmatpush1.bf16.msra.mxu0 0
        %533 = vmatprep.subr.bf16.mxu0 0
        %534 = vmatpush1.bf16.msra.mxu0 0
        %535 = vmatprep.subr.bf16.mxu0 0
        %536 = vmatpush1.bf16.msra.mxu0 0
        %537 = vmatprep.subr.bf16.mxu0 0
        %538 = vmatpush1.bf16.msra.mxu0 0
        %539 = vmatprep.mubr.bf16.mxu0 0
        %540 = vmatmul.mubr.bf16.gmra.mrb[0].mxu0 %v348
        %v541 = vpop.f32.mrb[0].mxu0
        %v542 = vadd.f32 %v262, %v541
        %v543 = vpop.f32.mrb[0].mxu0
        %v544 = vadd.f32 %v262, %v543
        %v545 = vpop.f32.mrb[0].mxu0
        %v546 = vadd.f32 %v267, %v545
        %v547 = vpop.f32.mrb[0].mxu0
        %v548 = vadd.f32 %v267, %v547
        %549 = vdwg.mxu0
        %v550 = vmax.f32 %v413, 0.0
        %v551 = vmax.f32 %v415, 0.0
        %v552 = vmax.f32 %v456, 0.0
        %v553 = vmax.f32 %v458, 0.0
        %v554 = vmax.f32 %v499, 0.0
        %v555 = vmax.f32 %v501, 0.0
        %v556 = vmax.f32 %v542, 0.0
        %v557 = vmax.f32 %v544, 0.0
        %v558 = vmax.f32 %v417, 0.0
        %v559 = vmax.f32 %v419, 0.0
        %v560 = vmax.f32 %v460, 0.0
        %v561 = vmax.f32 %v462, 0.0
        %v562 = vmax.f32 %v503, 0.0
        %v563 = vmax.f32 %v505, 0.0
        %v564 = vmax.f32 %v546, 0.0
        %v565 = vmax.f32 %v548, 0.0
        %v566 = vpack.c.bf16 %v558, %v550
        %v567 = vpack.c.bf16 %v559, %v551
        %v568 = vpack.c.bf16 %v560, %v552
        %v569 = vpack.c.bf16 %v561, %v553
        %v570 = vpack.c.bf16 %v562, %v554
        %v571 = vpack.c.bf16 %v563, %v555
        %v572 = vpack.c.bf16 %v564, %v556
        %v573 = vpack.c.bf16 %v565, %v557
        %v582 = vunpack.c.l.b16 %v566
        %v583 = vunpack.c.l.b16 %v567
        %v584 = vunpack.c.l.b16 %v568
        %v585 = vunpack.c.l.b16 %v569
        %v586 = vunpack.c.l.b16 %v570
        %v587 = vunpack.c.l.b16 %v571
        %v588 = vunpack.c.l.b16 %v572
        %v589 = vunpack.c.l.b16 %v573
        %v590 = vunpack.c.h.b16 %v566
        %v591 = vunpack.c.h.b16 %v567
        %v592 = vunpack.c.h.b16 %v568
        %v593 = vunpack.c.h.b16 %v569
        %v594 = vunpack.c.h.b16 %v570
        %v595 = vunpack.c.h.b16 %v571
        %v596 = vunpack.c.h.b16 %v572
        %v597 = vunpack.c.h.b16 %v573
        %v598 = vpack.c.b16 %v583, %v582
        %v599 = vpack.c.b16 %v585, %v584
        %v600 = vpack.c.b16 %v587, %v586
        %v601 = vpack.c.b16 %v589, %v588
        %v602 = vpack.c.b16 %v591, %v590
        %v603 = vpack.c.b16 %v593, %v592
        %v604 = vpack.c.b16 %v595, %v594
        %v605 = vpack.c.b16 %v597, %v596
        %614 = vst [vmem:[%s235] sm:$0xff] %v598
        %615 = vst [vmem:[%s235 + $0x8] sm:$0xff] %v599
        %616 = vst [vmem:[%s235 + $0x10] sm:$0xff] %v600
        %617 = vst [vmem:[%s235 + $0x18] sm:$0xff] %v601
        %618 = vst [vmem:[%s235 + $0x20] sm:$0xff] %v602
        %619 = vst [vmem:[%s235 + $0x28] sm:$0xff] %v603
        %620 = vst [vmem:[%s235 + $0x30] sm:$0xff] %v604
        %621 = vst [vmem:[%s235 + $0x38] sm:$0xff] %v605
        %s622 = sand.u32 %s113, 1
        %s623 = scalar_lea.sflag [#allocation4], %s622
        %s624 = sand.u32 %s113, 1
        %s625 = smul.addr %s624, 64
        %s626 = scalar_lea.vmem [#allocation8], %s625
        // Predicated region
        $region45: #{_forward_impl.5} parent=31 // pred_check
          %p627 = pneg %p123
        $region46: #{_forward_impl.5} parent=31 // pred_check_branch
          %629 = sbr.rel (%p627) target = $region48
        $region47: #{_forward_impl.5} parent=31 // pred_region
          %s630 = smul.u32 8, %s26
          %s632 = ssub.s32 1024, 1024
          %633 = vsyncadd %s623, %s632
          %s634 = smul.addr %s25, 16
          %s635 = sadd.s32 %s630, %s634
          %s636 = smul.addr %s635, 64
          %s637 = scalar_lea.hbm %s3, %s636
          %s638 = sshll.u32 %s626, 4
          %s639 = int_to_ptr.vmem [resolvable:$true] %s638
          %644 = dma.vmem_to_hbm [thread:$0]  %s639, 1024, %s637, %s623, 512, 512, 32
        $region48: #{_forward_impl.5} parent=31 // pred_fallthru
          _
      $region32: #{_forward_impl.5} parent=5 // pred_fallthru
        _
      %p645 = scmp.le.s32.totalorder 2, %s16
      // Predicated region
      $region49: #{_forward_impl.5} parent=5 // pred_check
        %p646 = pneg %p645
      $region50: #{_forward_impl.5} parent=5 // pred_check_branch
        %648 = sbr.rel (%p646) target = $region52
      $region51: #{_forward_impl.5} parent=5 // pred_region
        %s649 = ssub.s32 %s16, 2
        // Predicated region
        $region53: #{_forward_impl.5} parent=51 // pred_check
          %p650 = pneg %p129
        $region54: #{_forward_impl.5} parent=51 // pred_check_branch
          %652 = sbr.rel (%p650) target = $region56
        $region55: #{_forward_impl.5} parent=51 // pred_region
          %s653 = sand.u32 %s114, 1
          %s654 = scalar_lea.sflag [#allocation4], %s653
          %s655 = sand.u32 %s114, 1
          %s656 = smul.addr %s655, 64
          %s657 = scalar_lea.vmem [#allocation8], %s656
          %658 = dma.done %s654, 1024
        $region56: #{_forward_impl.5} parent=51 // pred_fallthru
          _
      $region52: #{_forward_impl.5} parent=5 // pred_fallthru
        _
    $region6: #{_forward_impl.5} parent=1 // loop_footer
      %s20 = sadd.s32 1, %s16
    $region7: #{_forward_impl.5} parent=1 // loop_footer_branch
      %15 = sbr.rel target = $region3
    $region8: #{_forward_impl.5} parent=1 // loop_exit
      _
    %659 = vsyncpa [#allocation3], 1
    %s660 = scalar_lea.sflag [#allocation3], 1
    %661 = vsyncpa %s660, 1
    %662 = vsyncpa [#allocation6], 1
    %663 = vsyncpa [#allocation4], 1
    %s664 = scalar_lea.sflag [#allocation4], 1
    %665 = vsyncpa %s664, 1

// kernel: _forward_impl.6
$region0: #{_forward_impl.6}
  #allocation0 [shape = 'u32[]', space=smem, size = 0x4, offset = 0x4, fixed_abs, tag = 'smem constant byte address 0x4 - core index']
  #allocation1 [shape = 'u32[144,128]{1,0:T(1,128)}', space=vmem, size = 0x12000, scoped, tag = 'internal scratch']
  %s0 = inlined_call_operand.hbm [shape: bf16[2,144,256], index: 0, kind: input, shape index: {}]
  %s1 = inlined_call_operand.hbm [shape: bf16[32,144], index: 1, kind: input, shape index: {}]
  %s2 = inlined_call_operand.hbm [shape: f32[32,1], index: 2, kind: input, shape index: {}]
  %s3 = inlined_call_operand.hbm [shape: bf16[2,32,256], index: 3, kind: output, shape index: {}]
  %s4 = sld [smem:[#allocation0]]
  $region57: #{_forward_impl.6} parent=0
    _
  %s6 = ssub.s32 1, %s4
  %s7 = scalar_select 0, %s6, %s4
  $region1: #{_forward_impl.6} parent=0
    #allocation2 [shape = 'u8[147456]{0}', space=vmem, size = 0x24000, scoped, tag = 'input window, operand 0']
    #allocation3 [shape = 's32[2]{0}', space=sflag, size = 0x8, scoped, tag = 'scoped memory for _forward_impl.6']
    #allocation4 [shape = 's32[2]{0}', space=sflag, size = 0x8, scoped, tag = 'scoped memory for _forward_impl.6']
    #allocation5 [shape = 'u8[16384]{0}', space=vmem, size = 0x4000, scoped, tag = 'input window, operand 1, single buffered']
    #allocation6 [shape = 's32[1]{0}', space=sflag, size = 0x4, scoped, tag = 'scoped memory for _forward_impl.6']
    #allocation7 [shape = 'u8[16384]{0}', space=vmem, size = 0x4000, scoped, tag = 'input window, operand 2, single buffered']
    #allocation8 [shape = 'u8[32768]{0}', space=vmem, size = 0x8000, scoped, tag = 'output window, operand 0']
    %8 = vsyncpa [#allocation3], 0
    %s9 = scalar_lea.sflag [#allocation3], 1
    %10 = vsyncpa %s9, 0
    %11 = vsyncpa [#allocation6], 0
    %12 = vsyncpa [#allocation4], 0
    %s13 = scalar_lea.sflag [#allocation4], 1
    %14 = vsyncpa %s13, 0
    loop: start=0, step=1, limit=4
    $region2: #{_forward_impl.6} parent=1 // loop_pre_header
      _
    $region3: #{_forward_impl.6} parent=1 // loop_header
      %s16 = sphi 0, %s20
      %p17 = scmp.ge.s32.totalorder %s16, 4
      %s23 = sphi 0, %s35
      %s24 = sphi 0, %s31
      %s25 = sphi 0, %s23
      %s26 = sphi 0, %s24
      %s27 = sphi 0, %s25
      %s28 = sphi 0, %s26
      %s40 = sphi 0, %s42
      %s43 = sphi 0, %s40
      %s44 = sphi 0, %s43
      %s60 = sphi 0, %s44
      %s64 = sphi 0, %s64
      %s66 = sphi 0, %s64
      %s67 = sphi 0, %s66
      %s81 = sphi 0, %s67
      %s85 = sphi 0, %s85
      %s87 = sphi 0, %s85
      %s88 = sphi 0, %s87
      %s102 = sphi 0, %s88
      %s110 = sphi 0, %s112
      %s113 = sphi 0, %s110
      %s114 = sphi 0, %s113
      %s130 = sphi 0, %s114
    $region4: #{_forward_impl.6} parent=1 // loop_header_branch
      %19 = sbr.rel (%p17) target = $region8
    $region5: #{_forward_impl.6} parent=1 // loop_body
      %s21 = ssub.s32 %s16, 1
      %s22 = ssub.s32 %s16, 2
      %s29 = sadd.s32 1, %s24
      %p30 = scmp.ge.s32.totalorder %s29, 1
      %s31 = scalar_select %p30, 0, %s29
      %s32 = sadd.s32 1, %s23
      %s33 = scalar_select %p30, %s32, %s23
      %p34 = scmp.ge.s32.totalorder %s33, 2
      %s35 = scalar_select %p34, 0, %s33
      %s36 = ssub.s32 %s23, %s35
      %s37 = ssub.s32 %s24, %s31
      %s38 = sor.u32 %s36, %s37
      %p39 = scmp.eq.s32.totalorder %s38, 0
      %s41 = sadd.s32 %s40, 1
      %s42 = scalar_select %p39, %s40, %s41
      %p45 = pneg %p39
      %p46 = scmp.eq.s32.totalorder %s16, 1
      %p47 = por %p45, %p46
      %p48 = scmp.ne.s32.totalorder %s40, %s43
      %p49 = scmp.eq.s32.totalorder %s16, 0
      %p50 = por %p48, %p49
      %p51 = scmp.ne.s32.totalorder %s40, %s43
      %p52 = scmp.eq.s32.totalorder %s21, 1
      %p53 = por %p51, %p52
      %p54 = scmp.ne.s32.totalorder %s43, %s44
      %p55 = scmp.eq.s32.totalorder %s21, 0
      %p56 = por %p54, %p55
      %p57 = scmp.ne.s32.totalorder %s43, %s44
      %p58 = scmp.eq.s32.totalorder %s22, 1
      %p59 = por %p57, %p58
      %p61 = scmp.ne.s32.totalorder %s44, %s60
      %p62 = scmp.eq.s32.totalorder %s22, 0
      %p63 = por %p61, %p62
      %s65 = sadd.s32 %s64, 1
      %p68 = scmp.eq.s32.totalorder %s16, 1
      %p69 = scmp.ne.s32.totalorder %s64, %s66
      %p70 = scmp.eq.s32.totalorder %s16, 0
      %p71 = por %p69, %p70
      %p72 = scmp.ne.s32.totalorder %s64, %s66
      %p73 = scmp.eq.s32.totalorder %s21, 1
      %p74 = por %p72, %p73
      %p75 = scmp.ne.s32.totalorder %s66, %s67
      %p76 = scmp.eq.s32.totalorder %s21, 0
      %p77 = por %p75, %p76
      %p78 = scmp.ne.s32.totalorder %s66, %s67
      %p79 = scmp.eq.s32.totalorder %s22, 1
      %p80 = por %p78, %p79
      %p82 = scmp.ne.s32.totalorder %s67, %s81
      %p83 = scmp.eq.s32.totalorder %s22, 0
      %p84 = por %p82, %p83
      %s86 = sadd.s32 %s85, 1
      %p89 = scmp.eq.s32.totalorder %s16, 1
      %p90 = scmp.ne.s32.totalorder %s85, %s87
      %p91 = scmp.eq.s32.totalorder %s16, 0
      %p92 = por %p90, %p91
      %p93 = scmp.ne.s32.totalorder %s85, %s87
      %p94 = scmp.eq.s32.totalorder %s21, 1
      %p95 = por %p93, %p94
      %p96 = scmp.ne.s32.totalorder %s87, %s88
      %p97 = scmp.eq.s32.totalorder %s21, 0
      %p98 = por %p96, %p97
      %p99 = scmp.ne.s32.totalorder %s87, %s88
      %p100 = scmp.eq.s32.totalorder %s22, 1
      %p101 = por %p99, %p100
      %p103 = scmp.ne.s32.totalorder %s88, %s102
      %p104 = scmp.eq.s32.totalorder %s22, 0
      %p105 = por %p103, %p104
      %s106 = ssub.s32 %s23, %s35
      %s107 = ssub.s32 %s24, %s31
      %s108 = sor.u32 %s106, %s107
      %p109 = scmp.eq.s32.totalorder %s108, 0
      %s111 = sadd.s32 %s110, 1
      %s112 = scalar_select %p109, %s110, %s111
      %p115 = pneg %p109
      %p116 = scmp.eq.s32.totalorder %s16, 1
      %p117 = por %p115, %p116
      %p118 = scmp.ne.s32.totalorder %s110, %s113
      %p119 = scmp.eq.s32.totalorder %s16, 0
      %p120 = por %p118, %p119
      %p121 = scmp.ne.s32.totalorder %s110, %s113
      %p122 = scmp.eq.s32.totalorder %s21, 1
      %p123 = por %p121, %p122
      %p124 = scmp.ne.s32.totalorder %s113, %s114
      %p125 = scmp.eq.s32.totalorder %s21, 0
      %p126 = por %p124, %p125
      %p127 = scmp.ne.s32.totalorder %s113, %s114
      %p128 = scmp.eq.s32.totalorder %s22, 1
      %p129 = por %p127, %p128
      %p131 = scmp.ne.s32.totalorder %s114, %s130
      %p132 = scmp.eq.s32.totalorder %s22, 0
      %p133 = por %p131, %p132
      %p134 = scmp.le.s32.totalorder 1, %s16
      %p135 = scmp.lt.s32.totalorder %s16, 3
      %p136 = pnand %p134, %p135
      %p137 = pneg %p136
      // Predicated region
      $region9: #{_forward_impl.6} parent=5 // pred_check
        _
      $region10: #{_forward_impl.6} parent=5 // pred_check_branch
        %139 = sbr.rel (%p136) target = $region12
      $region11: #{_forward_impl.6} parent=5 // pred_region
        %s140 = ssub.s32 %s16, 1
        // Predicated region
        $region13: #{_forward_impl.6} parent=11 // pred_check
          %p141 = pneg %p77
        $region14: #{_forward_impl.6} parent=11 // pred_check_branch
          %143 = sbr.rel (%p141) target = $region16
        $region15: #{_forward_impl.6} parent=11 // pred_region
          %s145 = ssub.s32 512, 512
          %146 = vsyncadd [#allocation6], %s145
          %s147 = sshll.u32 [#allocation5], 4
          %s148 = int_to_ptr.vmem [resolvable:$true] %s147
          %153 = dma.hbm_to_vmem [thread:$0]  %s1, 512, %s148, [#allocation6], 128, 128, 8
        $region16: #{_forward_impl.6} parent=11 // pred_fallthru
          _
        // Predicated region
        $region17: #{_forward_impl.6} parent=11 // pred_check
          %p154 = pneg %p98
        $region18: #{_forward_impl.6} parent=11 // pred_check_branch
          %156 = sbr.rel (%p154) target = $region20
        $region19: #{_forward_impl.6} parent=11 // pred_region
          %s158 = ssub.s32 512, 512
          %159 = vsyncadd [#allocation6], %s158
          %s160 = sshll.u32 [#allocation7], 4
          %s161 = int_to_ptr.vmem [resolvable:$true] %s160
          %166 = dma.hbm_to_vmem [thread:$0]  %s2, 512, %s161, [#allocation6], 128, 128, 8
        $region20: #{_forward_impl.6} parent=11 // pred_fallthru
          _
      $region12: #{_forward_impl.6} parent=5 // pred_fallthru
        _
      %p167 = scmp.lt.s32.totalorder %s16, 2
      // Predicated region
      $region21: #{_forward_impl.6} parent=5 // pred_check
        %p168 = pneg %p167
      $region22: #{_forward_impl.6} parent=5 // pred_check_branch
        %170 = sbr.rel (%p168) target = $region24
      $region23: #{_forward_impl.6} parent=5 // pred_region
        // Predicated region
        $region25: #{_forward_impl.6} parent=23 // pred_check
          %p171 = pneg %p50
        $region26: #{_forward_impl.6} parent=23 // pred_check_branch
          %173 = sbr.rel (%p171) target = $region28
        $region27: #{_forward_impl.6} parent=23 // pred_region
          %s174 = sand.u32 %s40, 1
          %s175 = scalar_lea.sflag [#allocation3], %s174
          %s176 = sand.u32 %s40, 1
          %s177 = smul.addr %s176, 144
          %s178 = scalar_lea.vmem [#allocation2], %s177
          %s179 = smul.u32 2, %s24
          %s181 = ssub.s32 2304, 2304
          %182 = vsyncadd %s175, %s181
          %s183 = smul.addr %s23, 36
          %s184 = sadd.s32 %s179, %s183
          %s185 = smul.addr %s184, 64
          %s186 = scalar_lea.hbm %s0, %s185
          %s187 = sshll.u32 %s178, 4
          %s188 = int_to_ptr.vmem [resolvable:$true] %s187
          %193 = dma.hbm_to_vmem [thread:$0]  %s186, 2304, %s188, %s175, 128, 128, 8
        $region28: #{_forward_impl.6} parent=23 // pred_fallthru
          _
      $region24: #{_forward_impl.6} parent=5 // pred_fallthru
        _
      %p194 = scmp.le.s32.totalorder 1, %s16
      %p195 = scmp.lt.s32.totalorder %s16, 3
      %p196 = pnand %p194, %p195
      %p197 = pneg %p196
      // Predicated region
      $region29: #{_forward_impl.6} parent=5 // pred_check
        _
      $region30: #{_forward_impl.6} parent=5 // pred_check_branch
        %199 = sbr.rel (%p196) target = $region32
      $region31: #{_forward_impl.6} parent=5 // pred_region
        %s200 = ssub.s32 %s16, 1
        %s201 = sand.u32 %s43, 1
        %s202 = scalar_lea.sflag [#allocation3], %s201
        %s203 = sand.u32 %s43, 1
        %s204 = smul.addr %s203, 144
        %s205 = scalar_lea.vmem [#allocation2], %s204
        // Predicated region
        $region33: #{_forward_impl.6} parent=31 // pred_check
          %p206 = pneg %p56
        $region34: #{_forward_impl.6} parent=31 // pred_check_branch
          %208 = sbr.rel (%p206) target = $region36
        $region35: #{_forward_impl.6} parent=31 // pred_region
          %209 = dma.done %s202, 2304
        $region36: #{_forward_impl.6} parent=31 // pred_fallthru
          _
        // Predicated region
        $region37: #{_forward_impl.6} parent=31 // pred_check
          %p210 = pneg %p77
        $region38: #{_forward_impl.6} parent=31 // pred_check_branch
          %212 = sbr.rel (%p210) target = $region40
        $region39: #{_forward_impl.6} parent=31 // pred_region
          %213 = dma.done [#allocation6], 512
        $region40: #{_forward_impl.6} parent=31 // pred_fallthru
          _
        // Predicated region
        $region41: #{_forward_impl.6} parent=31 // pred_check
          %p214 = pneg %p98
        $region42: #{_forward_impl.6} parent=31 // pred_check_branch
          %216 = sbr.rel (%p214) target = $region44
        $region43: #{_forward_impl.6} parent=31 // pred_region
          %217 = dma.done [#allocation6], 512
        $region44: #{_forward_impl.6} parent=31 // pred_fallthru
          _
        %s218 = sand.u32 %s43, 1
        %s219 = scalar_lea.sflag [#allocation3], %s218
        %s220 = sand.u32 %s43, 1
        %s221 = smul.addr %s220, 144
        %s222 = scalar_lea.vmem [#allocation2], %s221
        %p223 = pneg %p56
        %p224 = pneg %p53
        %p225 = pneg %p77
        %p226 = pneg %p74
        %p227 = pneg %p98
        %p228 = pneg %p95
        %p229 = pneg %p126
        %p230 = pneg %p123
        %s231 = sand.u32 %s113, 1
        %s232 = scalar_lea.sflag [#allocation4], %s231
        %s233 = sand.u32 %s113, 1
        %s234 = smul.addr %s233, 32
        %s235 = scalar_lea.vmem [#allocation8], %s234
        %s236 = smul.u32 2, %s26
        %s237 = smul.u32 2, %s26
        %v239 = vld [vmem:[#allocation5] sm:$0xff]
        %v240 = vld [vmem:[#allocation5 + $0x8] sm:$0xff]
        %v241 = vld [vmem:[#allocation5 + $0x10] sm:$0xff]
        %v242 = vld [vmem:[#allocation5 + $0x18] sm:$0xff]
        %v243 = vld [vmem:[%s205] sm:$0xff]
        %v244 = vld [vmem:[%s205 + $0x8] sm:$0xff]
        %v245 = vld [vmem:[%s205 + $0x10] sm:$0xff]
        %v246 = vld [vmem:[%s205 + $0x18] sm:$0xff]
        %v247 = vld [vmem:[%s205 + $0x20] sm:$0xff]
        %v248 = vld [vmem:[%s205 + $0x28] sm:$0xff]
        %v249 = vld [vmem:[%s205 + $0x30] sm:$0xff]
        %v250 = vld [vmem:[%s205 + $0x38] sm:$0xff]
        %v251 = vld [vmem:[%s205 + $0x40] sm:$0xff]
        %v252 = vld [vmem:[%s205 + $0x48] sm:$0xff]
        %v253 = vld [vmem:[%s205 + $0x50] sm:$0xff]
        %v254 = vld [vmem:[%s205 + $0x58] sm:$0xff]
        %v255 = vld [vmem:[%s205 + $0x60] sm:$0xff]
        %v256 = vld [vmem:[%s205 + $0x68] sm:$0xff]
        %v257 = vld [vmem:[%s205 + $0x70] sm:$0xff]
        %v258 = vld [vmem:[%s205 + $0x78] sm:$0xff]
        %v259 = vld [vmem:[%s205 + $0x80] sm:$0xff]
        %v260 = vld [vmem:[%s205 + $0x88] sm:$0xff]
        %v261 = vld [vmem:[#allocation7] sm:$0xff]
        %v262 = vld [vmem:[#allocation7 + $0x8] sm:$0xff]
        %v263 = vld [vmem:[#allocation7 + $0x10] sm:$0xff]
        %v264 = vld [vmem:[#allocation7 + $0x18] sm:$0xff]
        %266 = vset.pattern.permute.xlu0 0
        %267 = vperm.xlu0 %266, %v261
        %v268 = vpop.permute.xlu0 %267
        %271 = vset.pattern.permute.xlu0 0
        %272 = vperm.xlu0 %271, %v262
        %v273 = vpop.permute.xlu0 %272
        %276 = vset.pattern.permute.xlu0 0
        %277 = vperm.xlu0 %276, %v263
        %v278 = vpop.permute.xlu0 %277
        %281 = vset.pattern.permute.xlu0 0
        %282 = vperm.xlu0 %281, %v264
        %v283 = vpop.permute.xlu0 %282
        %v289 = vunpack.c.l.b16 %v239
        %v290 = vunpack.c.h.b16 %v239
        %v291 = vunpack.c.l.b16 %v240
        %v292 = vunpack.c.h.b16 %v240
        %v293 = vunpack.c.l.b16 %v241
        %v294 = vunpack.c.h.b16 %v241
        %v295 = vunpack.c.l.b16 %v242
        %v296 = vunpack.c.h.b16 %v242
        %v297 = vpack.c.b16 %v291, %v289
        %v298 = vpack.c.b16 %v292, %v290
        %v299 = vpack.c.b16 %v295, %v293
        %v300 = vpack.c.b16 %v296, %v294
        %v321 = vunpack.c.l.b16 %v243
        %v322 = vunpack.c.h.b16 %v243
        %v323 = vunpack.c.l.b16 %v244
        %v324 = vunpack.c.h.b16 %v244
        %v325 = vunpack.c.l.b16 %v245
        %v326 = vunpack.c.h.b16 %v245
        %v327 = vunpack.c.l.b16 %v246
        %v328 = vunpack.c.h.b16 %v246
        %v329 = vunpack.c.l.b16 %v247
        %v330 = vunpack.c.h.b16 %v247
        %v331 = vunpack.c.l.b16 %v248
        %v332 = vunpack.c.h.b16 %v248
        %v333 = vunpack.c.l.b16 %v249
        %v334 = vunpack.c.h.b16 %v249
        %v335 = vunpack.c.l.b16 %v250
        %v336 = vunpack.c.h.b16 %v250
        %v337 = vunpack.c.l.b16 %v251
        %v338 = vunpack.c.h.b16 %v251
        %v339 = vunpack.c.l.b16 %v252
        %v340 = vunpack.c.h.b16 %v252
        %v341 = vunpack.c.l.b16 %v253
        %v342 = vunpack.c.h.b16 %v253
        %v343 = vunpack.c.l.b16 %v254
        %v344 = vunpack.c.h.b16 %v254
        %v345 = vunpack.c.l.b16 %v255
        %v346 = vunpack.c.h.b16 %v255
        %v347 = vunpack.c.l.b16 %v256
        %v348 = vunpack.c.h.b16 %v256
        %v349 = vunpack.c.l.b16 %v257
        %v350 = vunpack.c.h.b16 %v257
        %v351 = vunpack.c.l.b16 %v258
        %v352 = vunpack.c.h.b16 %v258
        %v353 = vunpack.c.l.b16 %v259
        %v354 = vunpack.c.h.b16 %v259
        %v355 = vunpack.c.l.b16 %v260
        %v356 = vunpack.c.h.b16 %v260
        %v357 = vpack.c.b16 %v323, %v321
        %v358 = vpack.c.b16 %v324, %v322
        %v359 = vpack.c.b16 %v327, %v325
        %v360 = vpack.c.b16 %v328, %v326
        %v361 = vpack.c.b16 %v331, %v329
        %v362 = vpack.c.b16 %v332, %v330
        %v363 = vpack.c.b16 %v335, %v333
        %v364 = vpack.c.b16 %v336, %v334
        %v365 = vpack.c.b16 %v339, %v337
        %v366 = vpack.c.b16 %v340, %v338
        %v367 = vpack.c.b16 %v343, %v341
        %v368 = vpack.c.b16 %v344, %v342
        %v369 = vpack.c.b16 %v347, %v345
        %v370 = vpack.c.b16 %v348, %v346
        %v371 = vpack.c.b16 %v351, %v349
        %v372 = vpack.c.b16 %v352, %v350
        %v373 = vpack.c.b16 %v355, %v353
        %v374 = vpack.c.b16 %v356, %v354
        %vm393 = vcmask 130048
        %v395 = vsel %vm393, %v298, 0
        %v398 = vsel %vm393, %v300, 0
        %400 = vmatprep.subr.bf16.mxu0 %v358
        %401 = vmatpush1.bf16.msra.mxu0 %v357
        %402 = vmatprep.subr.bf16.mxu0 %v360
        %403 = vmatpush1.bf16.msra.mxu0 %v359
        %404 = vmatprep.subr.bf16.mxu0 %v362
        %405 = vmatpush1.bf16.msra.mxu0 %v361
        %406 = vmatprep.subr.bf16.mxu0 %v364
        %407 = vmatpush1.bf16.msra.mxu0 %v363
        %408 = vmatprep.subr.bf16.mxu0 %v366
        %409 = vmatpush1.bf16.msra.mxu0 %v365
        %410 = vmatprep.subr.bf16.mxu0 %v368
        %411 = vmatpush1.bf16.msra.mxu0 %v367
        %412 = vmatprep.subr.bf16.mxu0 %v370
        %413 = vmatpush1.bf16.msra.mxu0 %v369
        %414 = vmatprep.subr.bf16.mxu0 %v372
        %415 = vmatpush1.bf16.msra.mxu0 %v371
        %416 = vmatprep.subr.bf16.mxu0 %v374
        %417 = vmatpush1.bf16.msra.mxu0 %v373
        %418 = vmatprep.subr.bf16.mxu0 0
        %419 = vmatpush1.bf16.msra.mxu0 0
        %420 = vmatprep.subr.bf16.mxu0 0
        %421 = vmatpush1.bf16.msra.mxu0 0
        %422 = vmatprep.subr.bf16.mxu0 0
        %423 = vmatpush1.bf16.msra.mxu0 0
        %424 = vmatprep.subr.bf16.mxu0 0
        %425 = vmatpush1.bf16.msra.mxu0 0
        %426 = vmatprep.subr.bf16.mxu0 0
        %427 = vmatpush1.bf16.msra.mxu0 0
        %428 = vmatprep.subr.bf16.mxu0 0
        %429 = vmatpush1.bf16.msra.mxu0 0
        %430 = vmatprep.subr.bf16.mxu0 0
        %431 = vmatpush1.bf16.msra.mxu0 0
        %432 = vmatprep.mubr.bf16.mxu0 %v395
        %433 = vmatmul.mubr.bf16.gmra.mrb[0].mxu0 %v297
        %v434 = vpop.f32.mrb[0].mxu0
        %v435 = vadd.f32 %v268, %v434
        %v436 = vpop.f32.mrb[0].mxu0
        %v437 = vadd.f32 %v268, %v436
        %v438 = vpop.f32.mrb[0].mxu0
        %v439 = vadd.f32 %v273, %v438
        %v440 = vpop.f32.mrb[0].mxu0
        %v441 = vadd.f32 %v273, %v440
        %442 = vmatprep.mubr.bf16.mxu0 %v398
        %443 = vmatmul.mubr.bf16.gmra.mrb[0].mxu0 %v299
        %v444 = vpop.f32.mrb[0].mxu0
        %v445 = vadd.f32 %v278, %v444
        %v446 = vpop.f32.mrb[0].mxu0
        %v447 = vadd.f32 %v278, %v446
        %v448 = vpop.f32.mrb[0].mxu0
        %v449 = vadd.f32 %v283, %v448
        %v450 = vpop.f32.mrb[0].mxu0
        %v451 = vadd.f32 %v283, %v450
        %452 = vdwg.mxu0
        %v453 = vmax.f32 %v435, 0.0
        %v454 = vmax.f32 %v437, 0.0
        %v455 = vmax.f32 %v439, 0.0
        %v456 = vmax.f32 %v441, 0.0
        %v457 = vmax.f32 %v445, 0.0
        %v458 = vmax.f32 %v447, 0.0
        %v459 = vmax.f32 %v449, 0.0
        %v460 = vmax.f32 %v451, 0.0
        %v461 = vpack.c.bf16 %v455, %v453
        %v462 = vpack.c.bf16 %v456, %v454
        %v463 = vpack.c.bf16 %v459, %v457
        %v464 = vpack.c.bf16 %v460, %v458
        %v469 = vunpack.c.l.b16 %v461
        %v470 = vunpack.c.l.b16 %v462
        %v471 = vunpack.c.h.b16 %v461
        %v472 = vunpack.c.h.b16 %v462
        %v473 = vunpack.c.l.b16 %v463
        %v474 = vunpack.c.l.b16 %v464
        %v475 = vunpack.c.h.b16 %v463
        %v476 = vunpack.c.h.b16 %v464
        %v477 = vpack.c.b16 %v470, %v469
        %v478 = vpack.c.b16 %v472, %v471
        %v479 = vpack.c.b16 %v474, %v473
        %v480 = vpack.c.b16 %v476, %v475
        %485 = vst [vmem:[%s235] sm:$0xff] %v477
        %486 = vst [vmem:[%s235 + $0x8] sm:$0xff] %v478
        %487 = vst [vmem:[%s235 + $0x10] sm:$0xff] %v479
        %488 = vst [vmem:[%s235 + $0x18] sm:$0xff] %v480
        %s489 = sand.u32 %s113, 1
        %s490 = scalar_lea.sflag [#allocation4], %s489
        %s491 = sand.u32 %s113, 1
        %s492 = smul.addr %s491, 32
        %s493 = scalar_lea.vmem [#allocation8], %s492
        // Predicated region
        $region45: #{_forward_impl.6} parent=31 // pred_check
          %p494 = pneg %p123
        $region46: #{_forward_impl.6} parent=31 // pred_check_branch
          %496 = sbr.rel (%p494) target = $region48
        $region47: #{_forward_impl.6} parent=31 // pred_region
          %s497 = smul.u32 2, %s26
          %s499 = ssub.s32 512, 512
          %500 = vsyncadd %s490, %s499
          %s501 = smul.addr %s25, 8
          %s502 = sadd.s32 %s497, %s501
          %s503 = smul.addr %s502, 64
          %s504 = scalar_lea.hbm %s3, %s503
          %s505 = sshll.u32 %s493, 4
          %s506 = int_to_ptr.vmem [resolvable:$true] %s505
          %511 = dma.vmem_to_hbm [thread:$0]  %s506, 512, %s504, %s490, 128, 128, 8
        $region48: #{_forward_impl.6} parent=31 // pred_fallthru
          _
      $region32: #{_forward_impl.6} parent=5 // pred_fallthru
        _
      %p512 = scmp.le.s32.totalorder 2, %s16
      // Predicated region
      $region49: #{_forward_impl.6} parent=5 // pred_check
        %p513 = pneg %p512
      $region50: #{_forward_impl.6} parent=5 // pred_check_branch
        %515 = sbr.rel (%p513) target = $region52
      $region51: #{_forward_impl.6} parent=5 // pred_region
        %s516 = ssub.s32 %s16, 2
        // Predicated region
        $region53: #{_forward_impl.6} parent=51 // pred_check
          %p517 = pneg %p129
        $region54: #{_forward_impl.6} parent=51 // pred_check_branch
          %519 = sbr.rel (%p517) target = $region56
        $region55: #{_forward_impl.6} parent=51 // pred_region
          %s520 = sand.u32 %s114, 1
          %s521 = scalar_lea.sflag [#allocation4], %s520
          %s522 = sand.u32 %s114, 1
          %s523 = smul.addr %s522, 32
          %s524 = scalar_lea.vmem [#allocation8], %s523
          %525 = dma.done %s521, 512
        $region56: #{_forward_impl.6} parent=51 // pred_fallthru
          _
      $region52: #{_forward_impl.6} parent=5 // pred_fallthru
        _
    $region6: #{_forward_impl.6} parent=1 // loop_footer
      %s20 = sadd.s32 1, %s16
    $region7: #{_forward_impl.6} parent=1 // loop_footer_branch
      %15 = sbr.rel target = $region3
    $region8: #{_forward_impl.6} parent=1 // loop_exit
      _
    %526 = vsyncpa [#allocation3], 1
    %s527 = scalar_lea.sflag [#allocation3], 1
    %528 = vsyncpa %s527, 1
    %529 = vsyncpa [#allocation6], 1
    %530 = vsyncpa [#allocation4], 1
    %s531 = scalar_lea.sflag [#allocation4], 1
    %532 = vsyncpa %s531, 1

// kernel: _forward_impl.7
$region0: #{_forward_impl.7}
  #allocation0 [shape = 'u32[]', space=smem, size = 0x4, offset = 0x4, fixed_abs, tag = 'smem constant byte address 0x4 - core index']
  #allocation1 [shape = 'u32[144,128]{1,0:T(1,128)}', space=vmem, size = 0x12000, scoped, tag = 'internal scratch']
  %s0 = inlined_call_operand.hbm [shape: bf16[2,288,64], index: 0, kind: input, shape index: {}]
  %s1 = inlined_call_operand.hbm [shape: bf16[64,288], index: 1, kind: input, shape index: {}]
  %s2 = inlined_call_operand.hbm [shape: f32[64,1], index: 2, kind: input, shape index: {}]
  %s3 = inlined_call_operand.hbm [shape: bf16[2,64,64], index: 3, kind: output, shape index: {}]
  %s4 = sld [smem:[#allocation0]]
  $region57: #{_forward_impl.7} parent=0
    _
  %s6 = ssub.s32 1, %s4
  %s7 = scalar_select 0, %s6, %s4
  $region1: #{_forward_impl.7} parent=0
    #allocation2 [shape = 'u8[147456]{0}', space=vmem, size = 0x24000, scoped, tag = 'input window, operand 0']
    #allocation3 [shape = 's32[2]{0}', space=sflag, size = 0x8, scoped, tag = 'scoped memory for _forward_impl.7']
    #allocation4 [shape = 's32[2]{0}', space=sflag, size = 0x8, scoped, tag = 'scoped memory for _forward_impl.7']
    #allocation5 [shape = 'u8[49152]{0}', space=vmem, size = 0xc000, scoped, tag = 'input window, operand 1, single buffered']
    #allocation6 [shape = 's32[1]{0}', space=sflag, size = 0x4, scoped, tag = 'scoped memory for _forward_impl.7']
    #allocation7 [shape = 'u8[32768]{0}', space=vmem, size = 0x8000, scoped, tag = 'input window, operand 2, single buffered']
    #allocation8 [shape = 'u8[32768]{0}', space=vmem, size = 0x8000, scoped, tag = 'output window, operand 0']
    %8 = vsyncpa [#allocation3], 0
    %s9 = scalar_lea.sflag [#allocation3], 1
    %10 = vsyncpa %s9, 0
    %11 = vsyncpa [#allocation6], 0
    %12 = vsyncpa [#allocation4], 0
    %s13 = scalar_lea.sflag [#allocation4], 1
    %14 = vsyncpa %s13, 0
    loop: start=0, step=1, limit=4
    $region2: #{_forward_impl.7} parent=1 // loop_pre_header
      _
    $region3: #{_forward_impl.7} parent=1 // loop_header
      %s16 = sphi 0, %s20
      %p17 = scmp.ge.s32.totalorder %s16, 4
      %s23 = sphi 0, %s35
      %s24 = sphi 0, %s31
      %s25 = sphi 0, %s23
      %s26 = sphi 0, %s24
      %s27 = sphi 0, %s25
      %s28 = sphi 0, %s26
      %s40 = sphi 0, %s42
      %s43 = sphi 0, %s40
      %s44 = sphi 0, %s43
      %s60 = sphi 0, %s44
      %s64 = sphi 0, %s64
      %s66 = sphi 0, %s64
      %s67 = sphi 0, %s66
      %s81 = sphi 0, %s67
      %s85 = sphi 0, %s85
      %s87 = sphi 0, %s85
      %s88 = sphi 0, %s87
      %s102 = sphi 0, %s88
      %s110 = sphi 0, %s112
      %s113 = sphi 0, %s110
      %s114 = sphi 0, %s113
      %s130 = sphi 0, %s114
    $region4: #{_forward_impl.7} parent=1 // loop_header_branch
      %19 = sbr.rel (%p17) target = $region8
    $region5: #{_forward_impl.7} parent=1 // loop_body
      %s21 = ssub.s32 %s16, 1
      %s22 = ssub.s32 %s16, 2
      %s29 = sadd.s32 1, %s24
      %p30 = scmp.ge.s32.totalorder %s29, 1
      %s31 = scalar_select %p30, 0, %s29
      %s32 = sadd.s32 1, %s23
      %s33 = scalar_select %p30, %s32, %s23
      %p34 = scmp.ge.s32.totalorder %s33, 2
      %s35 = scalar_select %p34, 0, %s33
      %s36 = ssub.s32 %s23, %s35
      %s37 = ssub.s32 %s24, %s31
      %s38 = sor.u32 %s36, %s37
      %p39 = scmp.eq.s32.totalorder %s38, 0
      %s41 = sadd.s32 %s40, 1
      %s42 = scalar_select %p39, %s40, %s41
      %p45 = pneg %p39
      %p46 = scmp.eq.s32.totalorder %s16, 1
      %p47 = por %p45, %p46
      %p48 = scmp.ne.s32.totalorder %s40, %s43
      %p49 = scmp.eq.s32.totalorder %s16, 0
      %p50 = por %p48, %p49
      %p51 = scmp.ne.s32.totalorder %s40, %s43
      %p52 = scmp.eq.s32.totalorder %s21, 1
      %p53 = por %p51, %p52
      %p54 = scmp.ne.s32.totalorder %s43, %s44
      %p55 = scmp.eq.s32.totalorder %s21, 0
      %p56 = por %p54, %p55
      %p57 = scmp.ne.s32.totalorder %s43, %s44
      %p58 = scmp.eq.s32.totalorder %s22, 1
      %p59 = por %p57, %p58
      %p61 = scmp.ne.s32.totalorder %s44, %s60
      %p62 = scmp.eq.s32.totalorder %s22, 0
      %p63 = por %p61, %p62
      %s65 = sadd.s32 %s64, 1
      %p68 = scmp.eq.s32.totalorder %s16, 1
      %p69 = scmp.ne.s32.totalorder %s64, %s66
      %p70 = scmp.eq.s32.totalorder %s16, 0
      %p71 = por %p69, %p70
      %p72 = scmp.ne.s32.totalorder %s64, %s66
      %p73 = scmp.eq.s32.totalorder %s21, 1
      %p74 = por %p72, %p73
      %p75 = scmp.ne.s32.totalorder %s66, %s67
      %p76 = scmp.eq.s32.totalorder %s21, 0
      %p77 = por %p75, %p76
      %p78 = scmp.ne.s32.totalorder %s66, %s67
      %p79 = scmp.eq.s32.totalorder %s22, 1
      %p80 = por %p78, %p79
      %p82 = scmp.ne.s32.totalorder %s67, %s81
      %p83 = scmp.eq.s32.totalorder %s22, 0
      %p84 = por %p82, %p83
      %s86 = sadd.s32 %s85, 1
      %p89 = scmp.eq.s32.totalorder %s16, 1
      %p90 = scmp.ne.s32.totalorder %s85, %s87
      %p91 = scmp.eq.s32.totalorder %s16, 0
      %p92 = por %p90, %p91
      %p93 = scmp.ne.s32.totalorder %s85, %s87
      %p94 = scmp.eq.s32.totalorder %s21, 1
      %p95 = por %p93, %p94
      %p96 = scmp.ne.s32.totalorder %s87, %s88
      %p97 = scmp.eq.s32.totalorder %s21, 0
      %p98 = por %p96, %p97
      %p99 = scmp.ne.s32.totalorder %s87, %s88
      %p100 = scmp.eq.s32.totalorder %s22, 1
      %p101 = por %p99, %p100
      %p103 = scmp.ne.s32.totalorder %s88, %s102
      %p104 = scmp.eq.s32.totalorder %s22, 0
      %p105 = por %p103, %p104
      %s106 = ssub.s32 %s23, %s35
      %s107 = ssub.s32 %s24, %s31
      %s108 = sor.u32 %s106, %s107
      %p109 = scmp.eq.s32.totalorder %s108, 0
      %s111 = sadd.s32 %s110, 1
      %s112 = scalar_select %p109, %s110, %s111
      %p115 = pneg %p109
      %p116 = scmp.eq.s32.totalorder %s16, 1
      %p117 = por %p115, %p116
      %p118 = scmp.ne.s32.totalorder %s110, %s113
      %p119 = scmp.eq.s32.totalorder %s16, 0
      %p120 = por %p118, %p119
      %p121 = scmp.ne.s32.totalorder %s110, %s113
      %p122 = scmp.eq.s32.totalorder %s21, 1
      %p123 = por %p121, %p122
      %p124 = scmp.ne.s32.totalorder %s113, %s114
      %p125 = scmp.eq.s32.totalorder %s21, 0
      %p126 = por %p124, %p125
      %p127 = scmp.ne.s32.totalorder %s113, %s114
      %p128 = scmp.eq.s32.totalorder %s22, 1
      %p129 = por %p127, %p128
      %p131 = scmp.ne.s32.totalorder %s114, %s130
      %p132 = scmp.eq.s32.totalorder %s22, 0
      %p133 = por %p131, %p132
      %p134 = scmp.le.s32.totalorder 1, %s16
      %p135 = scmp.lt.s32.totalorder %s16, 3
      %p136 = pnand %p134, %p135
      %p137 = pneg %p136
      // Predicated region
      $region9: #{_forward_impl.7} parent=5 // pred_check
        _
      $region10: #{_forward_impl.7} parent=5 // pred_check_branch
        %139 = sbr.rel (%p136) target = $region12
      $region11: #{_forward_impl.7} parent=5 // pred_region
        %s140 = ssub.s32 %s16, 1
        // Predicated region
        $region13: #{_forward_impl.7} parent=11 // pred_check
          %p141 = pneg %p77
        $region14: #{_forward_impl.7} parent=11 // pred_check_branch
          %143 = sbr.rel (%p141) target = $region16
        $region15: #{_forward_impl.7} parent=11 // pred_region
          %s145 = ssub.s32 1536, 1536
          %146 = vsyncadd [#allocation6], %s145
          %s147 = sshll.u32 [#allocation5], 4
          %s148 = int_to_ptr.vmem [resolvable:$true] %s147
          %153 = dma.hbm_to_vmem [thread:$0]  %s1, 1536, %s148, [#allocation6], 192, 192, 12
        $region16: #{_forward_impl.7} parent=11 // pred_fallthru
          _
        // Predicated region
        $region17: #{_forward_impl.7} parent=11 // pred_check
          %p154 = pneg %p98
        $region18: #{_forward_impl.7} parent=11 // pred_check_branch
          %156 = sbr.rel (%p154) target = $region20
        $region19: #{_forward_impl.7} parent=11 // pred_region
          %s158 = ssub.s32 1024, 1024
          %159 = vsyncadd [#allocation6], %s158
          %s160 = sshll.u32 [#allocation7], 4
          %s161 = int_to_ptr.vmem [resolvable:$true] %s160
          %166 = dma.hbm_to_vmem [thread:$0]  %s2, 1024, %s161, [#allocation6], 128, 128, 8
        $region20: #{_forward_impl.7} parent=11 // pred_fallthru
          _
      $region12: #{_forward_impl.7} parent=5 // pred_fallthru
        _
      %p167 = scmp.lt.s32.totalorder %s16, 2
      // Predicated region
      $region21: #{_forward_impl.7} parent=5 // pred_check
        %p168 = pneg %p167
      $region22: #{_forward_impl.7} parent=5 // pred_check_branch
        %170 = sbr.rel (%p168) target = $region24
      $region23: #{_forward_impl.7} parent=5 // pred_region
        // Predicated region
        $region25: #{_forward_impl.7} parent=23 // pred_check
          %p171 = pneg %p50
        $region26: #{_forward_impl.7} parent=23 // pred_check_branch
          %173 = sbr.rel (%p171) target = $region28
        $region27: #{_forward_impl.7} parent=23 // pred_region
          %s174 = sand.u32 %s40, 1
          %s175 = scalar_lea.sflag [#allocation3], %s174
          %s176 = sand.u32 %s40, 1
          %s177 = smul.addr %s176, 144
          %s178 = scalar_lea.vmem [#allocation2], %s177
          %s180 = ssub.s32 2304, 2304
          %181 = vsyncadd %s175, %s180
          %s182 = smul.addr %s23, 36
          %s183 = sadd.s32 %s24, %s182
          %s184 = smul.addr %s183, 64
          %s185 = scalar_lea.hbm %s0, %s184
          %s186 = sshll.u32 %s178, 4
          %s187 = int_to_ptr.vmem [resolvable:$true] %s186
          %192 = dma.hbm_to_vmem [thread:$0]  %s185, 2304, %s187, %s175, 64, 64, 4
        $region28: #{_forward_impl.7} parent=23 // pred_fallthru
          _
      $region24: #{_forward_impl.7} parent=5 // pred_fallthru
        _
      %p193 = scmp.le.s32.totalorder 1, %s16
      %p194 = scmp.lt.s32.totalorder %s16, 3
      %p195 = pnand %p193, %p194
      %p196 = pneg %p195
      // Predicated region
      $region29: #{_forward_impl.7} parent=5 // pred_check
        _
      $region30: #{_forward_impl.7} parent=5 // pred_check_branch
        %198 = sbr.rel (%p195) target = $region32
      $region31: #{_forward_impl.7} parent=5 // pred_region
        %s199 = ssub.s32 %s16, 1
        %s200 = sand.u32 %s43, 1
        %s201 = scalar_lea.sflag [#allocation3], %s200
        %s202 = sand.u32 %s43, 1
        %s203 = smul.addr %s202, 144
        %s204 = scalar_lea.vmem [#allocation2], %s203
        // Predicated region
        $region33: #{_forward_impl.7} parent=31 // pred_check
          %p205 = pneg %p56
        $region34: #{_forward_impl.7} parent=31 // pred_check_branch
          %207 = sbr.rel (%p205) target = $region36
        $region35: #{_forward_impl.7} parent=31 // pred_region
          %208 = dma.done %s201, 2304
        $region36: #{_forward_impl.7} parent=31 // pred_fallthru
          _
        // Predicated region
        $region37: #{_forward_impl.7} parent=31 // pred_check
          %p209 = pneg %p77
        $region38: #{_forward_impl.7} parent=31 // pred_check_branch
          %211 = sbr.rel (%p209) target = $region40
        $region39: #{_forward_impl.7} parent=31 // pred_region
          %212 = dma.done [#allocation6], 1536
        $region40: #{_forward_impl.7} parent=31 // pred_fallthru
          _
        // Predicated region
        $region41: #{_forward_impl.7} parent=31 // pred_check
          %p213 = pneg %p98
        $region42: #{_forward_impl.7} parent=31 // pred_check_branch
          %215 = sbr.rel (%p213) target = $region44
        $region43: #{_forward_impl.7} parent=31 // pred_region
          %216 = dma.done [#allocation6], 1024
        $region44: #{_forward_impl.7} parent=31 // pred_fallthru
          _
        %s217 = sand.u32 %s43, 1
        %s218 = scalar_lea.sflag [#allocation3], %s217
        %s219 = sand.u32 %s43, 1
        %s220 = smul.addr %s219, 144
        %s221 = scalar_lea.vmem [#allocation2], %s220
        %p222 = pneg %p56
        %p223 = pneg %p53
        %p224 = pneg %p77
        %p225 = pneg %p74
        %p226 = pneg %p98
        %p227 = pneg %p95
        %p228 = pneg %p126
        %p229 = pneg %p123
        %s230 = sand.u32 %s113, 1
        %s231 = scalar_lea.sflag [#allocation4], %s230
        %s232 = sand.u32 %s113, 1
        %s233 = smul.addr %s232, 32
        %s234 = scalar_lea.vmem [#allocation8], %s233
        %v236 = vld [vmem:[#allocation5] sm:$0xff]
        %v237 = vld [vmem:[#allocation5 + $0x8] sm:$0xf]
        %v238 = vld [vmem:[#allocation5 + $0xc] sm:$0xff]
        %v239 = vld [vmem:[#allocation5 + $0x14] sm:$0xf]
        %v240 = vld [vmem:[#allocation5 + $0x18] sm:$0xff]
        %v241 = vld [vmem:[#allocation5 + $0x20] sm:$0xf]
        %v242 = vld [vmem:[#allocation5 + $0x24] sm:$0xff]
        %v243 = vld [vmem:[#allocation5 + $0x2c] sm:$0xf]
        %v244 = vld [vmem:[#allocation5 + $0x30] sm:$0xff]
        %v245 = vld [vmem:[#allocation5 + $0x38] sm:$0xf]
        %v246 = vld [vmem:[#allocation5 + $0x3c] sm:$0xff]
        %v247 = vld [vmem:[#allocation5 + $0x44] sm:$0xf]
        %v248 = vld [vmem:[#allocation5 + $0x48] sm:$0xff]
        %v249 = vld [vmem:[#allocation5 + $0x50] sm:$0xf]
        %v250 = vld [vmem:[#allocation5 + $0x54] sm:$0xff]
        %v251 = vld [vmem:[#allocation5 + $0x5c] sm:$0xf]
        %v252 = vld [vmem:[%s204] sm:$0xf]
        %v253 = vld [vmem:[%s204 + $0x4] sm:$0xf]
        %v254 = vld [vmem:[%s204 + $0x8] sm:$0xf]
        %v255 = vld [vmem:[%s204 + $0xc] sm:$0xf]
        %v256 = vld [vmem:[%s204 + $0x10] sm:$0xf]
        %v257 = vld [vmem:[%s204 + $0x14] sm:$0xf]
        %v258 = vld [vmem:[%s204 + $0x18] sm:$0xf]
        %v259 = vld [vmem:[%s204 + $0x1c] sm:$0xf]
        %v260 = vld [vmem:[%s204 + $0x20] sm:$0xf]
        %v261 = vld [vmem:[%s204 + $0x24] sm:$0xf]
        %v262 = vld [vmem:[%s204 + $0x28] sm:$0xf]
        %v263 = vld [vmem:[%s204 + $0x2c] sm:$0xf]
        %v264 = vld [vmem:[%s204 + $0x30] sm:$0xf]
        %v265 = vld [vmem:[%s204 + $0x34] sm:$0xf]
        %v266 = vld [vmem:[%s204 + $0x38] sm:$0xf]
        %v267 = vld [vmem:[%s204 + $0x3c] sm:$0xf]
        %v268 = vld [vmem:[%s204 + $0x40] sm:$0xf]
        %v269 = vld [vmem:[%s204 + $0x44] sm:$0xf]
        %v270 = vld [vmem:[%s204 + $0x48] sm:$0xf]
        %v271 = vld [vmem:[%s204 + $0x4c] sm:$0xf]
        %v272 = vld [vmem:[%s204 + $0x50] sm:$0xf]
        %v273 = vld [vmem:[%s204 + $0x54] sm:$0xf]
        %v274 = vld [vmem:[%s204 + $0x58] sm:$0xf]
        %v275 = vld [vmem:[%s204 + $0x5c] sm:$0xf]
        %v276 = vld [vmem:[%s204 + $0x60] sm:$0xf]
        %v277 = vld [vmem:[%s204 + $0x64] sm:$0xf]
        %v278 = vld [vmem:[%s204 + $0x68] sm:$0xf]
        %v279 = vld [vmem:[%s204 + $0x6c] sm:$0xf]
        %v280 = vld [vmem:[%s204 + $0x70] sm:$0xf]
        %v281 = vld [vmem:[%s204 + $0x74] sm:$0xf]
        %v282 = vld [vmem:[%s204 + $0x78] sm:$0xf]
        %v283 = vld [vmem:[%s204 + $0x7c] sm:$0xf]
        %v284 = vld [vmem:[%s204 + $0x80] sm:$0xf]
        %v285 = vld [vmem:[%s204 + $0x84] sm:$0xf]
        %v286 = vld [vmem:[%s204 + $0x88] sm:$0xf]
        %v287 = vld [vmem:[%s204 + $0x8c] sm:$0xf]
        %v288 = vld [vmem:[#allocation7] sm:$0xff]
        %v289 = vld [vmem:[#allocation7 + $0x8] sm:$0xff]
        %v290 = vld [vmem:[#allocation7 + $0x10] sm:$0xff]
        %v291 = vld [vmem:[#allocation7 + $0x18] sm:$0xff]
        %v292 = vld [vmem:[#allocation7 + $0x20] sm:$0xff]
        %v293 = vld [vmem:[#allocation7 + $0x28] sm:$0xff]
        %v294 = vld [vmem:[#allocation7 + $0x30] sm:$0xff]
        %v295 = vld [vmem:[#allocation7 + $0x38] sm:$0xff]
        %297 = vset.pattern.permute.xlu0 0
        %298 = vperm.xlu0 %297, %v288
        %v299 = vpop.permute.xlu0 %298
        %302 = vset.pattern.permute.xlu0 0
        %303 = vperm.xlu0 %302, %v289
        %v304 = vpop.permute.xlu0 %303
        %307 = vset.pattern.permute.xlu0 0
        %308 = vperm.xlu0 %307, %v290
        %v309 = vpop.permute.xlu0 %308
        %312 = vset.pattern.permute.xlu0 0
        %313 = vperm.xlu0 %312, %v291
        %v314 = vpop.permute.xlu0 %313
        %317 = vset.pattern.permute.xlu0 0
        %318 = vperm.xlu0 %317, %v292
        %v319 = vpop.permute.xlu0 %318
        %322 = vset.pattern.permute.xlu0 0
        %323 = vperm.xlu0 %322, %v293
        %v324 = vpop.permute.xlu0 %323
        %327 = vset.pattern.permute.xlu0 0
        %328 = vperm.xlu0 %327, %v294
        %v329 = vpop.permute.xlu0 %328
        %332 = vset.pattern.permute.xlu0 0
        %333 = vperm.xlu0 %332, %v295
        %v334 = vpop.permute.xlu0 %333
        %v352 = vunpack.c.l.b16 %v236
        %v353 = vunpack.c.h.b16 %v236
        %v354 = vunpack.c.l.b16 %v237
        %v355 = vunpack.c.l.b16 %v238
        %v356 = vunpack.c.h.b16 %v238
        %v357 = vunpack.c.l.b16 %v239
        %v358 = vunpack.c.l.b16 %v240
        %v359 = vunpack.c.h.b16 %v240
        %v360 = vunpack.c.l.b16 %v241
        %v361 = vunpack.c.l.b16 %v242
        %v362 = vunpack.c.h.b16 %v242
        %v363 = vunpack.c.l.b16 %v243
        %v364 = vunpack.c.l.b16 %v244
        %v365 = vunpack.c.h.b16 %v244
        %v366 = vunpack.c.l.b16 %v245
        %v367 = vunpack.c.l.b16 %v246
        %v368 = vunpack.c.h.b16 %v246
        %v369 = vunpack.c.l.b16 %v247
        %v370 = vunpack.c.l.b16 %v248
        %v371 = vunpack.c.h.b16 %v248
        %v372 = vunpack.c.l.b16 %v249
        %v373 = vunpack.c.l.b16 %v250
        %v374 = vunpack.c.h.b16 %v250
        %v375 = vunpack.c.l.b16 %v251
        %v376 = vpack.c.b16 %v355, %v352
        %v377 = vpack.c.b16 %v356, %v353
        %v378 = vpack.c.b16 %v357, %v354
        %v379 = vpack.c.b16 %v361, %v358
        %v380 = vpack.c.b16 %v362, %v359
        %v381 = vpack.c.b16 %v363, %v360
        %v382 = vpack.c.b16 %v367, %v364
        %v383 = vpack.c.b16 %v368, %v365
        %v384 = vpack.c.b16 %v369, %v366
        %v385 = vpack.c.b16 %v373, %v370
        %v386 = vpack.c.b16 %v374, %v371
        %v387 = vpack.c.b16 %v375, %v372
        %v432 = vunpack.c.l.b16 %v252
        %v433 = vunpack.c.l.b16 %v253
        %v434 = vunpack.c.l.b16 %v254
        %v435 = vunpack.c.l.b16 %v255
        %v436 = vunpack.c.l.b16 %v256
        %v437 = vunpack.c.l.b16 %v257
        %v438 = vunpack.c.l.b16 %v258
        %v439 = vunpack.c.l.b16 %v259
        %v440 = vunpack.c.l.b16 %v260
        %v441 = vunpack.c.l.b16 %v261
        %v442 = vunpack.c.l.b16 %v262
        %v443 = vunpack.c.l.b16 %v263
        %v444 = vunpack.c.l.b16 %v264
        %v445 = vunpack.c.l.b16 %v265
        %v446 = vunpack.c.l.b16 %v266
        %v447 = vunpack.c.l.b16 %v267
        %v448 = vunpack.c.l.b16 %v268
        %v449 = vunpack.c.l.b16 %v269
        %v450 = vunpack.c.l.b16 %v270
        %v451 = vunpack.c.l.b16 %v271
        %v452 = vunpack.c.l.b16 %v272
        %v453 = vunpack.c.l.b16 %v273
        %v454 = vunpack.c.l.b16 %v274
        %v455 = vunpack.c.l.b16 %v275
        %v456 = vunpack.c.l.b16 %v276
        %v457 = vunpack.c.l.b16 %v277
        %v458 = vunpack.c.l.b16 %v278
        %v459 = vunpack.c.l.b16 %v279
        %v460 = vunpack.c.l.b16 %v280
        %v461 = vunpack.c.l.b16 %v281
        %v462 = vunpack.c.l.b16 %v282
        %v463 = vunpack.c.l.b16 %v283
        %v464 = vunpack.c.l.b16 %v284
        %v465 = vunpack.c.l.b16 %v285
        %v466 = vunpack.c.l.b16 %v286
        %v467 = vunpack.c.l.b16 %v287
        %v468 = vpack.c.b16 %v433, %v432
        %v469 = vpack.c.b16 %v435, %v434
        %v470 = vpack.c.b16 %v437, %v436
        %v471 = vpack.c.b16 %v439, %v438
        %v472 = vpack.c.b16 %v441, %v440
        %v473 = vpack.c.b16 %v443, %v442
        %v474 = vpack.c.b16 %v445, %v444
        %v475 = vpack.c.b16 %v447, %v446
        %v476 = vpack.c.b16 %v449, %v448
        %v477 = vpack.c.b16 %v451, %v450
        %v478 = vpack.c.b16 %v453, %v452
        %v479 = vpack.c.b16 %v455, %v454
        %v480 = vpack.c.b16 %v457, %v456
        %v481 = vpack.c.b16 %v459, %v458
        %v482 = vpack.c.b16 %v461, %v460
        %v483 = vpack.c.b16 %v463, %v462
        %v484 = vpack.c.b16 %v465, %v464
        %v485 = vpack.c.b16 %v467, %v466
        %vm504 = vcmask 261120
        %v506 = vsel %vm504, %v378, 0
        %v509 = vsel %vm504, %v381, 0
        %v512 = vsel %vm504, %v384, 0
        %v515 = vsel %vm504, %v387, 0
        %517 = vmatprep.subr.bf16.mxu0 0
        %518 = vmatpush1.bf16.msra.mxu0 %v468
        %519 = vmatprep.subr.bf16.mxu0 0
        %520 = vmatpush1.bf16.msra.mxu0 %v469
        %521 = vmatprep.subr.bf16.mxu0 0
        %522 = vmatpush1.bf16.msra.mxu0 %v470
        %523 = vmatprep.subr.bf16.mxu0 0
        %524 = vmatpush1.bf16.msra.mxu0 %v471
        %525 = vmatprep.subr.bf16.mxu0 0
        %526 = vmatpush1.bf16.msra.mxu0 %v472
        %527 = vmatprep.subr.bf16.mxu0 0
        %528 = vmatpush1.bf16.msra.mxu0 %v473
        %529 = vmatprep.subr.bf16.mxu0 0
        %530 = vmatpush1.bf16.msra.mxu0 %v474
        %531 = vmatprep.subr.bf16.mxu0 0
        %532 = vmatpush1.bf16.msra.mxu0 %v475
        %533 = vmatprep.subr.bf16.mxu0 0
        %534 = vmatpush1.bf16.msra.mxu0 %v476
        %535 = vmatprep.subr.bf16.mxu0 0
        %536 = vmatpush1.bf16.msra.mxu0 %v477
        %537 = vmatprep.subr.bf16.mxu0 0
        %538 = vmatpush1.bf16.msra.mxu0 %v478
        %539 = vmatprep.subr.bf16.mxu0 0
        %540 = vmatpush1.bf16.msra.mxu0 %v479
        %541 = vmatprep.subr.bf16.mxu0 0
        %542 = vmatpush1.bf16.msra.mxu0 %v480
        %543 = vmatprep.subr.bf16.mxu0 0
        %544 = vmatpush1.bf16.msra.mxu0 %v481
        %545 = vmatprep.subr.bf16.mxu0 0
        %546 = vmatpush1.bf16.msra.mxu0 %v482
        %547 = vmatprep.subr.bf16.mxu0 0
        %548 = vmatpush1.bf16.msra.mxu0 %v483
        %549 = vmatprep.mubr.bf16.mxu0 %v377
        %550 = vmatmul.mubr.bf16.gmra.mrb[0].mxu0 %v376
        %v551 = vpop.f32.mrb[0].mxu0
        %v552 = vadd.f32 %v299, %v551
        %v553 = vpop.f32.mrb[0].mxu0
        %v554 = vpop.f32.mrb[0].mxu0
        %v555 = vadd.f32 %v304, %v554
        %v556 = vpop.f32.mrb[0].mxu0
        %557 = vmatprep.mubr.bf16.mxu0 %v380
        %558 = vmatmul.mubr.bf16.gmra.mrb[0].mxu0 %v379
        %v559 = vpop.f32.mrb[0].mxu0
        %v560 = vadd.f32 %v309, %v559
        %v561 = vpop.f32.mrb[0].mxu0
        %v562 = vpop.f32.mrb[0].mxu0
        %v563 = vadd.f32 %v314, %v562
        %v564 = vpop.f32.mrb[0].mxu0
        %565 = vmatprep.mubr.bf16.mxu0 %v383
        %566 = vmatmul.mubr.bf16.gmra.mrb[0].mxu0 %v382
        %v567 = vpop.f32.mrb[0].mxu0
        %v568 = vadd.f32 %v319, %v567
        %v569 = vpop.f32.mrb[0].mxu0
        %v570 = vpop.f32.mrb[0].mxu0
        %v571 = vadd.f32 %v324, %v570
        %v572 = vpop.f32.mrb[0].mxu0
        %573 = vmatprep.mubr.bf16.mxu0 %v386
        %574 = vmatmul.mubr.bf16.gmra.mrb[0].mxu0 %v385
        %v575 = vpop.f32.mrb[0].mxu0
        %v576 = vadd.f32 %v329, %v575
        %v577 = vpop.f32.mrb[0].mxu0
        %v578 = vpop.f32.mrb[0].mxu0
        %v579 = vadd.f32 %v334, %v578
        %v580 = vpop.f32.mrb[0].mxu0
        %581 = vdwg.mxu0
        %582 = vmatprep.subr.bf16.mxu0 0
        %583 = vmatpush1.bf16.msra.mxu0 %v484
        %584 = vmatprep.subr.bf16.mxu0 0
        %585 = vmatpush1.bf16.msra.mxu0 %v485
        %586 = vmatprep.subr.bf16.mxu0 0
        %587 = vmatpush1.bf16.msra.mxu0 0
        %588 = vmatprep.subr.bf16.mxu0 0
        %589 = vmatpush1.bf16.msra.mxu0 0
        %590 = vmatprep.subr.bf16.mxu0 0
        %591 = vmatpush1.bf16.msra.mxu0 0
        %592 = vmatprep.subr.bf16.mxu0 0
        %593 = vmatpush1.bf16.msra.mxu0 0
        %594 = vmatprep.subr.bf16.mxu0 0
        %595 = vmatpush1.bf16.msra.mxu0 0
        %596 = vmatprep.subr.bf16.mxu0 0
        %597 = vmatpush1.bf16.msra.mxu0 0
        %598 = vmatprep.subr.bf16.mxu0 0
        %599 = vmatpush1.bf16.msra.mxu0 0
        %600 = vmatprep.subr.bf16.mxu0 0
        %601 = vmatpush1.bf16.msra.mxu0 0
        %602 = vmatprep.subr.bf16.mxu0 0
        %603 = vmatpush1.bf16.msra.mxu0 0
        %604 = vmatprep.subr.bf16.mxu0 0
        %605 = vmatpush1.bf16.msra.mxu0 0
        %606 = vmatprep.subr.bf16.mxu0 0
        %607 = vmatpush1.bf16.msra.mxu0 0
        %608 = vmatprep.subr.bf16.mxu0 0
        %609 = vmatpush1.bf16.msra.mxu0 0
        %610 = vmatprep.subr.bf16.mxu0 0
        %611 = vmatpush1.bf16.msra.mxu0 0
        %612 = vmatprep.subr.bf16.mxu0 0
        %613 = vmatpush1.bf16.msra.mxu0 0
        %614 = vmatprep.mubr.bf16.mxu0 0
        %615 = vmatmul.mubr.bf16.gmra.mrb[0].mxu0 %v506
        %v616 = vpop.f32.mrb[0].mxu0
        %v617 = vadd.f32 %v552, %v616
        %v618 = vpop.f32.mrb[0].mxu0
        %v619 = vpop.f32.mrb[0].mxu0
        %v620 = vadd.f32 %v555, %v619
        %v621 = vpop.f32.mrb[0].mxu0
        %622 = vmatprep.mubr.bf16.mxu0 0
        %623 = vmatmul.mubr.bf16.gmra.mrb[0].mxu0 %v509
        %v624 = vpop.f32.mrb[0].mxu0
        %v625 = vadd.f32 %v560, %v624
        %v626 = vpop.f32.mrb[0].mxu0
        %v627 = vpop.f32.mrb[0].mxu0
        %v628 = vadd.f32 %v563, %v627
        %v629 = vpop.f32.mrb[0].mxu0
        %630 = vmatprep.mubr.bf16.mxu0 0
        %631 = vmatmul.mubr.bf16.gmra.mrb[0].mxu0 %v512
        %v632 = vpop.f32.mrb[0].mxu0
        %v633 = vadd.f32 %v568, %v632
        %v634 = vpop.f32.mrb[0].mxu0
        %v635 = vpop.f32.mrb[0].mxu0
        %v636 = vadd.f32 %v571, %v635
        %v637 = vpop.f32.mrb[0].mxu0
        %638 = vmatprep.mubr.bf16.mxu0 0
        %639 = vmatmul.mubr.bf16.gmra.mrb[0].mxu0 %v515
        %v640 = vpop.f32.mrb[0].mxu0
        %v641 = vadd.f32 %v576, %v640
        %v642 = vpop.f32.mrb[0].mxu0
        %v643 = vpop.f32.mrb[0].mxu0
        %v644 = vadd.f32 %v579, %v643
        %v645 = vpop.f32.mrb[0].mxu0
        %646 = vdwg.mxu0
        %v647 = vmax.f32 %v617, 0.0
        %v648 = vmax.f32 %v620, 0.0
        %v649 = vmax.f32 %v625, 0.0
        %v650 = vmax.f32 %v628, 0.0
        %v651 = vmax.f32 %v633, 0.0
        %v652 = vmax.f32 %v636, 0.0
        %v653 = vmax.f32 %v641, 0.0
        %v654 = vmax.f32 %v644, 0.0
        %v655 = vpack.c.bf16 %v648, %v647
        %v656 = vpack.c.bf16 %v650, %v649
        %v657 = vpack.c.bf16 %v652, %v651
        %v658 = vpack.c.bf16 %v654, %v653
        %v663 = vunpack.c.l.b16 %v655
        %v664 = vunpack.c.h.b16 %v655
        %v665 = vunpack.c.l.b16 %v656
        %v666 = vunpack.c.h.b16 %v656
        %v667 = vunpack.c.l.b16 %v657
        %v668 = vunpack.c.h.b16 %v657
        %v669 = vunpack.c.l.b16 %v658
        %v670 = vunpack.c.h.b16 %v658
        %v671 = vpack.c.b16 %v663, %v663
        %v672 = vpack.c.b16 %v664, %v664
        %v673 = vpack.c.b16 %v665, %v665
        %v674 = vpack.c.b16 %v666, %v666
        %v675 = vpack.c.b16 %v667, %v667
        %v676 = vpack.c.b16 %v668, %v668
        %v677 = vpack.c.b16 %v669, %v669
        %v678 = vpack.c.b16 %v670, %v670
        %vm687 = vcmask 519168
        %688 = vst.msk [vmem:[%s234] sm:$0xf] %vm687, %v671
        %689 = vst.msk [vmem:[%s234 + $0x4] sm:$0xf] %vm687, %v672
        %690 = vst.msk [vmem:[%s234 + $0x8] sm:$0xf] %vm687, %v673
        %691 = vst.msk [vmem:[%s234 + $0xc] sm:$0xf] %vm687, %v674
        %692 = vst.msk [vmem:[%s234 + $0x10] sm:$0xf] %vm687, %v675
        %693 = vst.msk [vmem:[%s234 + $0x14] sm:$0xf] %vm687, %v676
        %694 = vst.msk [vmem:[%s234 + $0x18] sm:$0xf] %vm687, %v677
        %695 = vst.msk [vmem:[%s234 + $0x1c] sm:$0xf] %vm687, %v678
        %s696 = sand.u32 %s113, 1
        %s697 = scalar_lea.sflag [#allocation4], %s696
        %s698 = sand.u32 %s113, 1
        %s699 = smul.addr %s698, 32
        %s700 = scalar_lea.vmem [#allocation8], %s699
        // Predicated region
        $region45: #{_forward_impl.7} parent=31 // pred_check
          %p701 = pneg %p123
        $region46: #{_forward_impl.7} parent=31 // pred_check_branch
          %703 = sbr.rel (%p701) target = $region48
        $region47: #{_forward_impl.7} parent=31 // pred_region
          %s705 = ssub.s32 512, 512
          %706 = vsyncadd %s697, %s705
          %s707 = smul.addr %s25, 8
          %s708 = sadd.s32 %s26, %s707
          %s709 = smul.addr %s708, 64
          %s710 = scalar_lea.hbm %s3, %s709
          %s711 = sshll.u32 %s700, 4
          %s712 = int_to_ptr.vmem [resolvable:$true] %s711
          %717 = dma.vmem_to_hbm [thread:$0]  %s712, 512, %s710, %s697, 64, 64, 4
        $region48: #{_forward_impl.7} parent=31 // pred_fallthru
          _
      $region32: #{_forward_impl.7} parent=5 // pred_fallthru
        _
      %p718 = scmp.le.s32.totalorder 2, %s16
      // Predicated region
      $region49: #{_forward_impl.7} parent=5 // pred_check
        %p719 = pneg %p718
      $region50: #{_forward_impl.7} parent=5 // pred_check_branch
        %721 = sbr.rel (%p719) target = $region52
      $region51: #{_forward_impl.7} parent=5 // pred_region
        %s722 = ssub.s32 %s16, 2
        // Predicated region
        $region53: #{_forward_impl.7} parent=51 // pred_check
          %p723 = pneg %p129
        $region54: #{_forward_impl.7} parent=51 // pred_check_branch
          %725 = sbr.rel (%p723) target = $region56
        $region55: #{_forward_impl.7} parent=51 // pred_region
          %s726 = sand.u32 %s114, 1
          %s727 = scalar_lea.sflag [#allocation4], %s726
          %s728 = sand.u32 %s114, 1
          %s729 = smul.addr %s728, 32
          %s730 = scalar_lea.vmem [#allocation8], %s729
          %731 = dma.done %s727, 512
        $region56: #{_forward_impl.7} parent=51 // pred_fallthru
          _
      $region52: #{_forward_impl.7} parent=5 // pred_fallthru
        _
    $region6: #{_forward_impl.7} parent=1 // loop_footer
      %s20 = sadd.s32 1, %s16
    $region7: #{_forward_impl.7} parent=1 // loop_footer_branch
      %15 = sbr.rel target = $region3
    $region8: #{_forward_impl.7} parent=1 // loop_exit
      _
    %732 = vsyncpa [#allocation3], 1
    %s733 = scalar_lea.sflag [#allocation3], 1
    %734 = vsyncpa %s733, 1
    %735 = vsyncpa [#allocation6], 1
    %736 = vsyncpa [#allocation4], 1
    %s737 = scalar_lea.sflag [#allocation4], 1
    %738 = vsyncpa %s737, 1

// kernel: _forward_impl.8
$region0: #{_forward_impl.8}
  #allocation0 [shape = 'u32[]', space=smem, size = 0x4, offset = 0x4, fixed_abs, tag = 'smem constant byte address 0x4 - core index']
  #allocation1 [shape = 'u32[144,128]{1,0:T(1,128)}', space=vmem, size = 0x12000, scoped, tag = 'internal scratch']
  %s0 = inlined_call_operand.hbm [shape: bf16[2,576,16], index: 0, kind: input, shape index: {}]
  %s1 = inlined_call_operand.hbm [shape: bf16[128,576], index: 1, kind: input, shape index: {}]
  %s2 = inlined_call_operand.hbm [shape: f32[128,1], index: 2, kind: input, shape index: {}]
  %s3 = inlined_call_operand.hbm [shape: bf16[2,128,16], index: 3, kind: output, shape index: {}]
  %s4 = sld [smem:[#allocation0]]
  $region57: #{_forward_impl.8} parent=0
    _
  %s6 = ssub.s32 1, %s4
  %s7 = scalar_select 0, %s6, %s4
  $region1: #{_forward_impl.8} parent=0
    #allocation2 [shape = 'u8[294912]{0}', space=vmem, size = 0x48000, scoped, tag = 'input window, operand 0']
    #allocation3 [shape = 's32[2]{0}', space=sflag, size = 0x8, scoped, tag = 'scoped memory for _forward_impl.8']
    #allocation4 [shape = 's32[2]{0}', space=sflag, size = 0x8, scoped, tag = 'scoped memory for _forward_impl.8']
    #allocation5 [shape = 'u8[163840]{0}', space=vmem, size = 0x28000, scoped, tag = 'input window, operand 1, single buffered']
    #allocation6 [shape = 's32[1]{0}', space=sflag, size = 0x4, scoped, tag = 'scoped memory for _forward_impl.8']
    #allocation7 [shape = 'u8[65536]{0}', space=vmem, size = 0x10000, scoped, tag = 'input window, operand 2, single buffered']
    #allocation8 [shape = 'u8[65536]{0}', space=vmem, size = 0x10000, scoped, tag = 'output window, operand 0']
    %8 = vsyncpa [#allocation3], 0
    %s9 = scalar_lea.sflag [#allocation3], 1
    %10 = vsyncpa %s9, 0
    %11 = vsyncpa [#allocation6], 0
    %12 = vsyncpa [#allocation4], 0
    %s13 = scalar_lea.sflag [#allocation4], 1
    %14 = vsyncpa %s13, 0
    loop: start=0, step=1, limit=4
    $region2: #{_forward_impl.8} parent=1 // loop_pre_header
      _
    $region3: #{_forward_impl.8} parent=1 // loop_header
      %s16 = sphi 0, %s20
      %p17 = scmp.ge.s32.totalorder %s16, 4
      %s23 = sphi 0, %s35
      %s24 = sphi 0, %s31
      %s25 = sphi 0, %s23
      %s26 = sphi 0, %s24
      %s27 = sphi 0, %s25
      %s28 = sphi 0, %s26
      %s40 = sphi 0, %s42
      %s43 = sphi 0, %s40
      %s44 = sphi 0, %s43
      %s60 = sphi 0, %s44
      %s64 = sphi 0, %s64
      %s66 = sphi 0, %s64
      %s67 = sphi 0, %s66
      %s81 = sphi 0, %s67
      %s85 = sphi 0, %s85
      %s87 = sphi 0, %s85
      %s88 = sphi 0, %s87
      %s102 = sphi 0, %s88
      %s110 = sphi 0, %s112
      %s113 = sphi 0, %s110
      %s114 = sphi 0, %s113
      %s130 = sphi 0, %s114
    $region4: #{_forward_impl.8} parent=1 // loop_header_branch
      %19 = sbr.rel (%p17) target = $region8
    $region5: #{_forward_impl.8} parent=1 // loop_body
      %s21 = ssub.s32 %s16, 1
      %s22 = ssub.s32 %s16, 2
      %s29 = sadd.s32 1, %s24
      %p30 = scmp.ge.s32.totalorder %s29, 1
      %s31 = scalar_select %p30, 0, %s29
      %s32 = sadd.s32 1, %s23
      %s33 = scalar_select %p30, %s32, %s23
      %p34 = scmp.ge.s32.totalorder %s33, 2
      %s35 = scalar_select %p34, 0, %s33
      %s36 = ssub.s32 %s23, %s35
      %s37 = ssub.s32 %s24, %s31
      %s38 = sor.u32 %s36, %s37
      %p39 = scmp.eq.s32.totalorder %s38, 0
      %s41 = sadd.s32 %s40, 1
      %s42 = scalar_select %p39, %s40, %s41
      %p45 = pneg %p39
      %p46 = scmp.eq.s32.totalorder %s16, 1
      %p47 = por %p45, %p46
      %p48 = scmp.ne.s32.totalorder %s40, %s43
      %p49 = scmp.eq.s32.totalorder %s16, 0
      %p50 = por %p48, %p49
      %p51 = scmp.ne.s32.totalorder %s40, %s43
      %p52 = scmp.eq.s32.totalorder %s21, 1
      %p53 = por %p51, %p52
      %p54 = scmp.ne.s32.totalorder %s43, %s44
      %p55 = scmp.eq.s32.totalorder %s21, 0
      %p56 = por %p54, %p55
      %p57 = scmp.ne.s32.totalorder %s43, %s44
      %p58 = scmp.eq.s32.totalorder %s22, 1
      %p59 = por %p57, %p58
      %p61 = scmp.ne.s32.totalorder %s44, %s60
      %p62 = scmp.eq.s32.totalorder %s22, 0
      %p63 = por %p61, %p62
      %s65 = sadd.s32 %s64, 1
      %p68 = scmp.eq.s32.totalorder %s16, 1
      %p69 = scmp.ne.s32.totalorder %s64, %s66
      %p70 = scmp.eq.s32.totalorder %s16, 0
      %p71 = por %p69, %p70
      %p72 = scmp.ne.s32.totalorder %s64, %s66
      %p73 = scmp.eq.s32.totalorder %s21, 1
      %p74 = por %p72, %p73
      %p75 = scmp.ne.s32.totalorder %s66, %s67
      %p76 = scmp.eq.s32.totalorder %s21, 0
      %p77 = por %p75, %p76
      %p78 = scmp.ne.s32.totalorder %s66, %s67
      %p79 = scmp.eq.s32.totalorder %s22, 1
      %p80 = por %p78, %p79
      %p82 = scmp.ne.s32.totalorder %s67, %s81
      %p83 = scmp.eq.s32.totalorder %s22, 0
      %p84 = por %p82, %p83
      %s86 = sadd.s32 %s85, 1
      %p89 = scmp.eq.s32.totalorder %s16, 1
      %p90 = scmp.ne.s32.totalorder %s85, %s87
      %p91 = scmp.eq.s32.totalorder %s16, 0
      %p92 = por %p90, %p91
      %p93 = scmp.ne.s32.totalorder %s85, %s87
      %p94 = scmp.eq.s32.totalorder %s21, 1
      %p95 = por %p93, %p94
      %p96 = scmp.ne.s32.totalorder %s87, %s88
      %p97 = scmp.eq.s32.totalorder %s21, 0
      %p98 = por %p96, %p97
      %p99 = scmp.ne.s32.totalorder %s87, %s88
      %p100 = scmp.eq.s32.totalorder %s22, 1
      %p101 = por %p99, %p100
      %p103 = scmp.ne.s32.totalorder %s88, %s102
      %p104 = scmp.eq.s32.totalorder %s22, 0
      %p105 = por %p103, %p104
      %s106 = ssub.s32 %s23, %s35
      %s107 = ssub.s32 %s24, %s31
      %s108 = sor.u32 %s106, %s107
      %p109 = scmp.eq.s32.totalorder %s108, 0
      %s111 = sadd.s32 %s110, 1
      %s112 = scalar_select %p109, %s110, %s111
      %p115 = pneg %p109
      %p116 = scmp.eq.s32.totalorder %s16, 1
      %p117 = por %p115, %p116
      %p118 = scmp.ne.s32.totalorder %s110, %s113
      %p119 = scmp.eq.s32.totalorder %s16, 0
      %p120 = por %p118, %p119
      %p121 = scmp.ne.s32.totalorder %s110, %s113
      %p122 = scmp.eq.s32.totalorder %s21, 1
      %p123 = por %p121, %p122
      %p124 = scmp.ne.s32.totalorder %s113, %s114
      %p125 = scmp.eq.s32.totalorder %s21, 0
      %p126 = por %p124, %p125
      %p127 = scmp.ne.s32.totalorder %s113, %s114
      %p128 = scmp.eq.s32.totalorder %s22, 1
      %p129 = por %p127, %p128
      %p131 = scmp.ne.s32.totalorder %s114, %s130
      %p132 = scmp.eq.s32.totalorder %s22, 0
      %p133 = por %p131, %p132
      %p134 = scmp.le.s32.totalorder 1, %s16
      %p135 = scmp.lt.s32.totalorder %s16, 3
      %p136 = pnand %p134, %p135
      %p137 = pneg %p136
      // Predicated region
      $region9: #{_forward_impl.8} parent=5 // pred_check
        _
      $region10: #{_forward_impl.8} parent=5 // pred_check_branch
        %139 = sbr.rel (%p136) target = $region12
      $region11: #{_forward_impl.8} parent=5 // pred_region
        %s140 = ssub.s32 %s16, 1
        // Predicated region
        $region13: #{_forward_impl.8} parent=11 // pred_check
          %p141 = pneg %p77
        $region14: #{_forward_impl.8} parent=11 // pred_check_branch
          %143 = sbr.rel (%p141) target = $region16
        $region15: #{_forward_impl.8} parent=11 // pred_region
          %s145 = ssub.s32 5120, 5120
          %146 = vsyncadd [#allocation6], %s145
          %s147 = sshll.u32 [#allocation5], 4
          %s148 = int_to_ptr.vmem [resolvable:$true] %s147
          %153 = dma.hbm_to_vmem [thread:$0]  %s1, 5120, %s148, [#allocation6], 320, 320, 20
        $region16: #{_forward_impl.8} parent=11 // pred_fallthru
          _
        // Predicated region
        $region17: #{_forward_impl.8} parent=11 // pred_check
          %p154 = pneg %p98
        $region18: #{_forward_impl.8} parent=11 // pred_check_branch
          %156 = sbr.rel (%p154) target = $region20
        $region19: #{_forward_impl.8} parent=11 // pred_region
          %s158 = ssub.s32 2048, 2048
          %159 = vsyncadd [#allocation6], %s158
          %s160 = sshll.u32 [#allocation7], 4
          %s161 = int_to_ptr.vmem [resolvable:$true] %s160
          %166 = dma.hbm_to_vmem [thread:$0]  %s2, 2048, %s161, [#allocation6], 128, 128, 8
        $region20: #{_forward_impl.8} parent=11 // pred_fallthru
          _
      $region12: #{_forward_impl.8} parent=5 // pred_fallthru
        _
      %p167 = scmp.lt.s32.totalorder %s16, 2
      // Predicated region
      $region21: #{_forward_impl.8} parent=5 // pred_check
        %p168 = pneg %p167
      $region22: #{_forward_impl.8} parent=5 // pred_check_branch
        %170 = sbr.rel (%p168) target = $region24
      $region23: #{_forward_impl.8} parent=5 // pred_region
        // Predicated region
        $region25: #{_forward_impl.8} parent=23 // pred_check
          %p171 = pneg %p50
        $region26: #{_forward_impl.8} parent=23 // pred_check_branch
          %173 = sbr.rel (%p171) target = $region28
        $region27: #{_forward_impl.8} parent=23 // pred_region
          %s174 = sand.u32 %s40, 1
          %s175 = scalar_lea.sflag [#allocation3], %s174
          %s176 = sand.u32 %s40, 1
          %s177 = smul.addr %s176, 288
          %s178 = scalar_lea.vmem [#allocation2], %s177
          %s180 = ssub.s32 4608, 4608
          %181 = vsyncadd %s175, %s180
          %s182 = smul.addr %s23, 72
          %s183 = sadd.s32 %s24, %s182
          %s184 = smul.addr %s183, 64
          %s185 = scalar_lea.hbm %s0, %s184
          %s186 = sshll.u32 %s178, 4
          %s187 = int_to_ptr.vmem [resolvable:$true] %s186
          %192 = dma.hbm_to_vmem [thread:$0]  %s185, 4608, %s187, %s175, 64, 64, 4
        $region28: #{_forward_impl.8} parent=23 // pred_fallthru
          _
      $region24: #{_forward_impl.8} parent=5 // pred_fallthru
        _
      %p193 = scmp.le.s32.totalorder 1, %s16
      %p194 = scmp.lt.s32.totalorder %s16, 3
      %p195 = pnand %p193, %p194
      %p196 = pneg %p195
      // Predicated region
      $region29: #{_forward_impl.8} parent=5 // pred_check
        _
      $region30: #{_forward_impl.8} parent=5 // pred_check_branch
        %198 = sbr.rel (%p195) target = $region32
      $region31: #{_forward_impl.8} parent=5 // pred_region
        %s199 = ssub.s32 %s16, 1
        %s200 = sand.u32 %s43, 1
        %s201 = scalar_lea.sflag [#allocation3], %s200
        %s202 = sand.u32 %s43, 1
        %s203 = smul.addr %s202, 288
        %s204 = scalar_lea.vmem [#allocation2], %s203
        // Predicated region
        $region33: #{_forward_impl.8} parent=31 // pred_check
          %p205 = pneg %p56
        $region34: #{_forward_impl.8} parent=31 // pred_check_branch
          %207 = sbr.rel (%p205) target = $region36
        $region35: #{_forward_impl.8} parent=31 // pred_region
          %208 = dma.done %s201, 4608
        $region36: #{_forward_impl.8} parent=31 // pred_fallthru
          _
        // Predicated region
        $region37: #{_forward_impl.8} parent=31 // pred_check
          %p209 = pneg %p77
        $region38: #{_forward_impl.8} parent=31 // pred_check_branch
          %211 = sbr.rel (%p209) target = $region40
        $region39: #{_forward_impl.8} parent=31 // pred_region
          %212 = dma.done [#allocation6], 5120
        $region40: #{_forward_impl.8} parent=31 // pred_fallthru
          _
        // Predicated region
        $region41: #{_forward_impl.8} parent=31 // pred_check
          %p213 = pneg %p98
        $region42: #{_forward_impl.8} parent=31 // pred_check_branch
          %215 = sbr.rel (%p213) target = $region44
        $region43: #{_forward_impl.8} parent=31 // pred_region
          %216 = dma.done [#allocation6], 2048
        $region44: #{_forward_impl.8} parent=31 // pred_fallthru
          _
        %s217 = sand.u32 %s43, 1
        %s218 = scalar_lea.sflag [#allocation3], %s217
        %s219 = sand.u32 %s43, 1
        %s220 = smul.addr %s219, 288
        %s221 = scalar_lea.vmem [#allocation2], %s220
        %p222 = pneg %p56
        %p223 = pneg %p53
        %p224 = pneg %p77
        %p225 = pneg %p74
        %p226 = pneg %p98
        %p227 = pneg %p95
        %p228 = pneg %p126
        %p229 = pneg %p123
        %s230 = sand.u32 %s113, 1
        %s231 = scalar_lea.sflag [#allocation4], %s230
        %s232 = sand.u32 %s113, 1
        %s233 = smul.addr %s232, 64
        %s234 = scalar_lea.vmem [#allocation8], %s233
        %v236 = vld [vmem:[#allocation5] sm:$0xff]
        %v237 = vld [vmem:[#allocation5 + $0x8] sm:$0xff]
        %v238 = vld [vmem:[#allocation5 + $0x10] sm:$0xf]
        %v239 = vld [vmem:[#allocation5 + $0x14] sm:$0xff]
        %v240 = vld [vmem:[#allocation5 + $0x1c] sm:$0xff]
        %v241 = vld [vmem:[#allocation5 + $0x24] sm:$0xf]
        %v242 = vld [vmem:[#allocation5 + $0x28] sm:$0xff]
        %v243 = vld [vmem:[#allocation5 + $0x30] sm:$0xff]
        %v244 = vld [vmem:[#allocation5 + $0x38] sm:$0xf]
        %v245 = vld [vmem:[#allocation5 + $0x3c] sm:$0xff]
        %v246 = vld [vmem:[#allocation5 + $0x44] sm:$0xff]
        %v247 = vld [vmem:[#allocation5 + $0x4c] sm:$0xf]
        %v248 = vld [vmem:[#allocation5 + $0x50] sm:$0xff]
        %v249 = vld [vmem:[#allocation5 + $0x58] sm:$0xff]
        %v250 = vld [vmem:[#allocation5 + $0x60] sm:$0xf]
        %v251 = vld [vmem:[#allocation5 + $0x64] sm:$0xff]
        %v252 = vld [vmem:[#allocation5 + $0x6c] sm:$0xff]
        %v253 = vld [vmem:[#allocation5 + $0x74] sm:$0xf]
        %v254 = vld [vmem:[#allocation5 + $0x78] sm:$0xff]
        %v255 = vld [vmem:[#allocation5 + $0x80] sm:$0xff]
        %v256 = vld [vmem:[#allocation5 + $0x88] sm:$0xf]
        %v257 = vld [vmem:[#allocation5 + $0x8c] sm:$0xff]
        %v258 = vld [vmem:[#allocation5 + $0x94] sm:$0xff]
        %v259 = vld [vmem:[#allocation5 + $0x9c] sm:$0xf]
        %v260 = vld [vmem:[#allocation5 + $0xa0] sm:$0xff]
        %v261 = vld [vmem:[#allocation5 + $0xa8] sm:$0xff]
        %v262 = vld [vmem:[#allocation5 + $0xb0] sm:$0xf]
        %v263 = vld [vmem:[#allocation5 + $0xb4] sm:$0xff]
        %v264 = vld [vmem:[#allocation5 + $0xbc] sm:$0xff]
        %v265 = vld [vmem:[#allocation5 + $0xc4] sm:$0xf]
        %v266 = vld [vmem:[#allocation5 + $0xc8] sm:$0xff]
        %v267 = vld [vmem:[#allocation5 + $0xd0] sm:$0xff]
        %v268 = vld [vmem:[#allocation5 + $0xd8] sm:$0xf]
        %v269 = vld [vmem:[#allocation5 + $0xdc] sm:$0xff]
        %v270 = vld [vmem:[#allocation5 + $0xe4] sm:$0xff]
        %v271 = vld [vmem:[#allocation5 + $0xec] sm:$0xf]
        %v272 = vld [vmem:[#allocation5 + $0xf0] sm:$0xff]
        %v273 = vld [vmem:[#allocation5 + $0xf8] sm:$0xff]
        %v274 = vld [vmem:[#allocation5 + $0x100] sm:$0xf]
        %v275 = vld [vmem:[#allocation5 + $0x104] sm:$0xff]
        %v276 = vld [vmem:[#allocation5 + $0x10c] sm:$0xff]
        %v277 = vld [vmem:[#allocation5 + $0x114] sm:$0xf]
        %v278 = vld [vmem:[#allocation5 + $0x118] sm:$0xff]
        %v279 = vld [vmem:[#allocation5 + $0x120] sm:$0xff]
        %v280 = vld [vmem:[#allocation5 + $0x128] sm:$0xf]
        %v281 = vld [vmem:[#allocation5 + $0x12c] sm:$0xff]
        %v282 = vld [vmem:[#allocation5 + $0x134] sm:$0xff]
        %v283 = vld [vmem:[#allocation5 + $0x13c] sm:$0xf]
        %v284 = vld [vmem:[%s204] sm:$0xf]
        %v285 = vld [vmem:[%s204 + $0x4] sm:$0xf]
        %v286 = vld [vmem:[%s204 + $0x8] sm:$0xf]
        %v287 = vld [vmem:[%s204 + $0xc] sm:$0xf]
        %v288 = vld [vmem:[%s204 + $0x10] sm:$0xf]
        %v289 = vld [vmem:[%s204 + $0x14] sm:$0xf]
        %v290 = vld [vmem:[%s204 + $0x18] sm:$0xf]
        %v291 = vld [vmem:[%s204 + $0x1c] sm:$0xf]
        %v292 = vld [vmem:[%s204 + $0x20] sm:$0xf]
        %v293 = vld [vmem:[%s204 + $0x24] sm:$0xf]
        %v294 = vld [vmem:[%s204 + $0x28] sm:$0xf]
        %v295 = vld [vmem:[%s204 + $0x2c] sm:$0xf]
        %v296 = vld [vmem:[%s204 + $0x30] sm:$0xf]
        %v297 = vld [vmem:[%s204 + $0x34] sm:$0xf]
        %v298 = vld [vmem:[%s204 + $0x38] sm:$0xf]
        %v299 = vld [vmem:[%s204 + $0x3c] sm:$0xf]
        %v300 = vld [vmem:[%s204 + $0x40] sm:$0xf]
        %v301 = vld [vmem:[%s204 + $0x44] sm:$0xf]
        %v302 = vld [vmem:[%s204 + $0x48] sm:$0xf]
        %v303 = vld [vmem:[%s204 + $0x4c] sm:$0xf]
        %v304 = vld [vmem:[%s204 + $0x50] sm:$0xf]
        %v305 = vld [vmem:[%s204 + $0x54] sm:$0xf]
        %v306 = vld [vmem:[%s204 + $0x58] sm:$0xf]
        %v307 = vld [vmem:[%s204 + $0x5c] sm:$0xf]
        %v308 = vld [vmem:[%s204 + $0x60] sm:$0xf]
        %v309 = vld [vmem:[%s204 + $0x64] sm:$0xf]
        %v310 = vld [vmem:[%s204 + $0x68] sm:$0xf]
        %v311 = vld [vmem:[%s204 + $0x6c] sm:$0xf]
        %v312 = vld [vmem:[%s204 + $0x70] sm:$0xf]
        %v313 = vld [vmem:[%s204 + $0x74] sm:$0xf]
        %v314 = vld [vmem:[%s204 + $0x78] sm:$0xf]
        %v315 = vld [vmem:[%s204 + $0x7c] sm:$0xf]
        %v316 = vld [vmem:[%s204 + $0x80] sm:$0xf]
        %v317 = vld [vmem:[%s204 + $0x84] sm:$0xf]
        %v318 = vld [vmem:[%s204 + $0x88] sm:$0xf]
        %v319 = vld [vmem:[%s204 + $0x8c] sm:$0xf]
        %v320 = vld [vmem:[%s204 + $0x90] sm:$0xf]
        %v321 = vld [vmem:[%s204 + $0x94] sm:$0xf]
        %v322 = vld [vmem:[%s204 + $0x98] sm:$0xf]
        %v323 = vld [vmem:[%s204 + $0x9c] sm:$0xf]
        %v324 = vld [vmem:[%s204 + $0xa0] sm:$0xf]
        %v325 = vld [vmem:[%s204 + $0xa4] sm:$0xf]
        %v326 = vld [vmem:[%s204 + $0xa8] sm:$0xf]
        %v327 = vld [vmem:[%s204 + $0xac] sm:$0xf]
        %v328 = vld [vmem:[%s204 + $0xb0] sm:$0xf]
        %v329 = vld [vmem:[%s204 + $0xb4] sm:$0xf]
        %v330 = vld [vmem:[%s204 + $0xb8] sm:$0xf]
        %v331 = vld [vmem:[%s204 + $0xbc] sm:$0xf]
        %v332 = vld [vmem:[%s204 + $0xc0] sm:$0xf]
        %v333 = vld [vmem:[%s204 + $0xc4] sm:$0xf]
        %v334 = vld [vmem:[%s204 + $0xc8] sm:$0xf]
        %v335 = vld [vmem:[%s204 + $0xcc] sm:$0xf]
        %v336 = vld [vmem:[%s204 + $0xd0] sm:$0xf]
        %v337 = vld [vmem:[%s204 + $0xd4] sm:$0xf]
        %v338 = vld [vmem:[%s204 + $0xd8] sm:$0xf]
        %v339 = vld [vmem:[%s204 + $0xdc] sm:$0xf]
        %v340 = vld [vmem:[%s204 + $0xe0] sm:$0xf]
        %v341 = vld [vmem:[%s204 + $0xe4] sm:$0xf]
        %v342 = vld [vmem:[%s204 + $0xe8] sm:$0xf]
        %v343 = vld [vmem:[%s204 + $0xec] sm:$0xf]
        %v344 = vld [vmem:[%s204 + $0xf0] sm:$0xf]
        %v345 = vld [vmem:[%s204 + $0xf4] sm:$0xf]
        %v346 = vld [vmem:[%s204 + $0xf8] sm:$0xf]
        %v347 = vld [vmem:[%s204 + $0xfc] sm:$0xf]
        %v348 = vld [vmem:[%s204 + $0x100] sm:$0xf]
        %v349 = vld [vmem:[%s204 + $0x104] sm:$0xf]
        %v350 = vld [vmem:[%s204 + $0x108] sm:$0xf]
        %v351 = vld [vmem:[%s204 + $0x10c] sm:$0xf]
        %v352 = vld [vmem:[%s204 + $0x110] sm:$0xf]
        %v353 = vld [vmem:[%s204 + $0x114] sm:$0xf]
        %v354 = vld [vmem:[%s204 + $0x118] sm:$0xf]
        %v355 = vld [vmem:[%s204 + $0x11c] sm:$0xf]
        %v356 = vld [vmem:[#allocation7] sm:$0xff]
        %v357 = vld [vmem:[#allocation7 + $0x8] sm:$0xff]
        %v358 = vld [vmem:[#allocation7 + $0x10] sm:$0xff]
        %v359 = vld [vmem:[#allocation7 + $0x18] sm:$0xff]
        %v360 = vld [vmem:[#allocation7 + $0x20] sm:$0xff]
        %v361 = vld [vmem:[#allocation7 + $0x28] sm:$0xff]
        %v362 = vld [vmem:[#allocation7 + $0x30] sm:$0xff]
        %v363 = vld [vmem:[#allocation7 + $0x38] sm:$0xff]
        %v364 = vld [vmem:[#allocation7 + $0x40] sm:$0xff]
        %v365 = vld [vmem:[#allocation7 + $0x48] sm:$0xff]
        %v366 = vld [vmem:[#allocation7 + $0x50] sm:$0xff]
        %v367 = vld [vmem:[#allocation7 + $0x58] sm:$0xff]
        %v368 = vld [vmem:[#allocation7 + $0x60] sm:$0xff]
        %v369 = vld [vmem:[#allocation7 + $0x68] sm:$0xff]
        %v370 = vld [vmem:[#allocation7 + $0x70] sm:$0xff]
        %v371 = vld [vmem:[#allocation7 + $0x78] sm:$0xff]
        %373 = vset.pattern.permute.xlu0 0
        %374 = vperm.xlu0 %373, %v356
        %v375 = vpop.permute.xlu0 %374
        %378 = vset.pattern.permute.xlu0 0
        %379 = vperm.xlu0 %378, %v357
        %v380 = vpop.permute.xlu0 %379
        %383 = vset.pattern.permute.xlu0 0
        %384 = vperm.xlu0 %383, %v358
        %v385 = vpop.permute.xlu0 %384
        %388 = vset.pattern.permute.xlu0 0
        %389 = vperm.xlu0 %388, %v359
        %v390 = vpop.permute.xlu0 %389
        %393 = vset.pattern.permute.xlu0 0
        %394 = vperm.xlu0 %393, %v360
        %v395 = vpop.permute.xlu0 %394
        %398 = vset.pattern.permute.xlu0 0
        %399 = vperm.xlu0 %398, %v361
        %v400 = vpop.permute.xlu0 %399
        %403 = vset.pattern.permute.xlu0 0
        %404 = vperm.xlu0 %403, %v362
        %v405 = vpop.permute.xlu0 %404
        %408 = vset.pattern.permute.xlu0 0
        %409 = vperm.xlu0 %408, %v363
        %v410 = vpop.permute.xlu0 %409
        %413 = vset.pattern.permute.xlu0 0
        %414 = vperm.xlu0 %413, %v364
        %v415 = vpop.permute.xlu0 %414
        %418 = vset.pattern.permute.xlu0 0
        %419 = vperm.xlu0 %418, %v365
        %v420 = vpop.permute.xlu0 %419
        %423 = vset.pattern.permute.xlu0 0
        %424 = vperm.xlu0 %423, %v366
        %v425 = vpop.permute.xlu0 %424
        %428 = vset.pattern.permute.xlu0 0
        %429 = vperm.xlu0 %428, %v367
        %v430 = vpop.permute.xlu0 %429
        %433 = vset.pattern.permute.xlu0 0
        %434 = vperm.xlu0 %433, %v368
        %v435 = vpop.permute.xlu0 %434
        %438 = vset.pattern.permute.xlu0 0
        %439 = vperm.xlu0 %438, %v369
        %v440 = vpop.permute.xlu0 %439
        %443 = vset.pattern.permute.xlu0 0
        %444 = vperm.xlu0 %443, %v370
        %v445 = vpop.permute.xlu0 %444
        %448 = vset.pattern.permute.xlu0 0
        %449 = vperm.xlu0 %448, %v371
        %v450 = vpop.permute.xlu0 %449
        %v500 = vunpack.c.l.b16 %v236
        %v501 = vunpack.c.h.b16 %v236
        %v502 = vunpack.c.l.b16 %v237
        %v503 = vunpack.c.h.b16 %v237
        %v504 = vunpack.c.l.b16 %v238
        %v505 = vunpack.c.l.b16 %v239
        %v506 = vunpack.c.h.b16 %v239
        %v507 = vunpack.c.l.b16 %v240
        %v508 = vunpack.c.h.b16 %v240
        %v509 = vunpack.c.l.b16 %v241
        %v510 = vunpack.c.l.b16 %v242
        %v511 = vunpack.c.h.b16 %v242
        %v512 = vunpack.c.l.b16 %v243
        %v513 = vunpack.c.h.b16 %v243
        %v514 = vunpack.c.l.b16 %v244
        %v515 = vunpack.c.l.b16 %v245
        %v516 = vunpack.c.h.b16 %v245
        %v517 = vunpack.c.l.b16 %v246
        %v518 = vunpack.c.h.b16 %v246
        %v519 = vunpack.c.l.b16 %v247
        %v520 = vunpack.c.l.b16 %v248
        %v521 = vunpack.c.h.b16 %v248
        %v522 = vunpack.c.l.b16 %v249
        %v523 = vunpack.c.h.b16 %v249
        %v524 = vunpack.c.l.b16 %v250
        %v525 = vunpack.c.l.b16 %v251
        %v526 = vunpack.c.h.b16 %v251
        %v527 = vunpack.c.l.b16 %v252
        %v528 = vunpack.c.h.b16 %v252
        %v529 = vunpack.c.l.b16 %v253
        %v530 = vunpack.c.l.b16 %v254
        %v531 = vunpack.c.h.b16 %v254
        %v532 = vunpack.c.l.b16 %v255
        %v533 = vunpack.c.h.b16 %v255
        %v534 = vunpack.c.l.b16 %v256
        %v535 = vunpack.c.l.b16 %v257
        %v536 = vunpack.c.h.b16 %v257
        %v537 = vunpack.c.l.b16 %v258
        %v538 = vunpack.c.h.b16 %v258
        %v539 = vunpack.c.l.b16 %v259
        %v540 = vunpack.c.l.b16 %v260
        %v541 = vunpack.c.h.b16 %v260
        %v542 = vunpack.c.l.b16 %v261
        %v543 = vunpack.c.h.b16 %v261
        %v544 = vunpack.c.l.b16 %v262
        %v545 = vunpack.c.l.b16 %v263
        %v546 = vunpack.c.h.b16 %v263
        %v547 = vunpack.c.l.b16 %v264
        %v548 = vunpack.c.h.b16 %v264
        %v549 = vunpack.c.l.b16 %v265
        %v550 = vunpack.c.l.b16 %v266
        %v551 = vunpack.c.h.b16 %v266
        %v552 = vunpack.c.l.b16 %v267
        %v553 = vunpack.c.h.b16 %v267
        %v554 = vunpack.c.l.b16 %v268
        %v555 = vunpack.c.l.b16 %v269
        %v556 = vunpack.c.h.b16 %v269
        %v557 = vunpack.c.l.b16 %v270
        %v558 = vunpack.c.h.b16 %v270
        %v559 = vunpack.c.l.b16 %v271
        %v560 = vunpack.c.l.b16 %v272
        %v561 = vunpack.c.h.b16 %v272
        %v562 = vunpack.c.l.b16 %v273
        %v563 = vunpack.c.h.b16 %v273
        %v564 = vunpack.c.l.b16 %v274
        %v565 = vunpack.c.l.b16 %v275
        %v566 = vunpack.c.h.b16 %v275
        %v567 = vunpack.c.l.b16 %v276
        %v568 = vunpack.c.h.b16 %v276
        %v569 = vunpack.c.l.b16 %v277
        %v570 = vunpack.c.l.b16 %v278
        %v571 = vunpack.c.h.b16 %v278
        %v572 = vunpack.c.l.b16 %v279
        %v573 = vunpack.c.h.b16 %v279
        %v574 = vunpack.c.l.b16 %v280
        %v575 = vunpack.c.l.b16 %v281
        %v576 = vunpack.c.h.b16 %v281
        %v577 = vunpack.c.l.b16 %v282
        %v578 = vunpack.c.h.b16 %v282
        %v579 = vunpack.c.l.b16 %v283
        %v580 = vpack.c.b16 %v505, %v500
        %v581 = vpack.c.b16 %v506, %v501
        %v582 = vpack.c.b16 %v507, %v502
        %v583 = vpack.c.b16 %v508, %v503
        %v584 = vpack.c.b16 %v509, %v504
        %v585 = vpack.c.b16 %v515, %v510
        %v586 = vpack.c.b16 %v516, %v511
        %v587 = vpack.c.b16 %v517, %v512
        %v588 = vpack.c.b16 %v518, %v513
        %v589 = vpack.c.b16 %v519, %v514
        %v590 = vpack.c.b16 %v525, %v520
        %v591 = vpack.c.b16 %v526, %v521
        %v592 = vpack.c.b16 %v527, %v522
        %v593 = vpack.c.b16 %v528, %v523
        %v594 = vpack.c.b16 %v529, %v524
        %v595 = vpack.c.b16 %v535, %v530
        %v596 = vpack.c.b16 %v536, %v531
        %v597 = vpack.c.b16 %v537, %v532
        %v598 = vpack.c.b16 %v538, %v533
        %v599 = vpack.c.b16 %v539, %v534
        %v600 = vpack.c.b16 %v545, %v540
        %v601 = vpack.c.b16 %v546, %v541
        %v602 = vpack.c.b16 %v547, %v542
        %v603 = vpack.c.b16 %v548, %v543
        %v604 = vpack.c.b16 %v549, %v544
        %v605 = vpack.c.b16 %v555, %v550
        %v606 = vpack.c.b16 %v556, %v551
        %v607 = vpack.c.b16 %v557, %v552
        %v608 = vpack.c.b16 %v558, %v553
        %v609 = vpack.c.b16 %v559, %v554
        %v610 = vpack.c.b16 %v565, %v560
        %v611 = vpack.c.b16 %v566, %v561
        %v612 = vpack.c.b16 %v567, %v562
        %v613 = vpack.c.b16 %v568, %v563
        %v614 = vpack.c.b16 %v569, %v564
        %v615 = vpack.c.b16 %v575, %v570
        %v616 = vpack.c.b16 %v576, %v571
        %v617 = vpack.c.b16 %v577, %v572
        %v618 = vpack.c.b16 %v578, %v573
        %v619 = vpack.c.b16 %v579, %v574
        %v724 = vunpack.c.l.b16 %v284
        %v725 = vunpack.c.l.b16 %v285
        %v726 = vunpack.c.l.b16 %v286
        %v727 = vunpack.c.l.b16 %v287
        %v728 = vunpack.c.l.b16 %v288
        %v729 = vunpack.c.l.b16 %v289
        %v730 = vunpack.c.l.b16 %v290
        %v731 = vunpack.c.l.b16 %v291
        %v732 = vunpack.c.l.b16 %v292
        %v733 = vunpack.c.l.b16 %v293
        %v734 = vunpack.c.l.b16 %v294
        %v735 = vunpack.c.l.b16 %v295
        %v736 = vunpack.c.l.b16 %v296
        %v737 = vunpack.c.l.b16 %v297
        %v738 = vunpack.c.l.b16 %v298
        %v739 = vunpack.c.l.b16 %v299
        %v740 = vunpack.c.l.b16 %v300
        %v741 = vunpack.c.l.b16 %v301
        %v742 = vunpack.c.l.b16 %v302
        %v743 = vunpack.c.l.b16 %v303
        %v744 = vunpack.c.l.b16 %v304
        %v745 = vunpack.c.l.b16 %v305
        %v746 = vunpack.c.l.b16 %v306
        %v747 = vunpack.c.l.b16 %v307
        %v748 = vunpack.c.l.b16 %v308
        %v749 = vunpack.c.l.b16 %v309
        %v750 = vunpack.c.l.b16 %v310
        %v751 = vunpack.c.l.b16 %v311
        %v752 = vunpack.c.l.b16 %v312
        %v753 = vunpack.c.l.b16 %v313
        %v754 = vunpack.c.l.b16 %v314
        %v755 = vunpack.c.l.b16 %v315
        %v756 = vunpack.c.l.b16 %v316
        %v757 = vunpack.c.l.b16 %v317
        %v758 = vunpack.c.l.b16 %v318
        %v759 = vunpack.c.l.b16 %v319
        %v760 = vunpack.c.l.b16 %v320
        %v761 = vunpack.c.l.b16 %v321
        %v762 = vunpack.c.l.b16 %v322
        %v763 = vunpack.c.l.b16 %v323
        %v764 = vunpack.c.l.b16 %v324
        %v765 = vunpack.c.l.b16 %v325
        %v766 = vunpack.c.l.b16 %v326
        %v767 = vunpack.c.l.b16 %v327
        %v768 = vunpack.c.l.b16 %v328
        %v769 = vunpack.c.l.b16 %v329
        %v770 = vunpack.c.l.b16 %v330
        %v771 = vunpack.c.l.b16 %v331
        %v772 = vunpack.c.l.b16 %v332
        %v773 = vunpack.c.l.b16 %v333
        %v774 = vunpack.c.l.b16 %v334
        %v775 = vunpack.c.l.b16 %v335
        %v776 = vunpack.c.l.b16 %v336
        %v777 = vunpack.c.l.b16 %v337
        %v778 = vunpack.c.l.b16 %v338
        %v779 = vunpack.c.l.b16 %v339
        %v780 = vunpack.c.l.b16 %v340
        %v781 = vunpack.c.l.b16 %v341
        %v782 = vunpack.c.l.b16 %v342
        %v783 = vunpack.c.l.b16 %v343
        %v784 = vunpack.c.l.b16 %v344
        %v785 = vunpack.c.l.b16 %v345
        %v786 = vunpack.c.l.b16 %v346
        %v787 = vunpack.c.l.b16 %v347
        %v788 = vunpack.c.l.b16 %v348
        %v789 = vunpack.c.l.b16 %v349
        %v790 = vunpack.c.l.b16 %v350
        %v791 = vunpack.c.l.b16 %v351
        %v792 = vunpack.c.l.b16 %v352
        %v793 = vunpack.c.l.b16 %v353
        %v794 = vunpack.c.l.b16 %v354
        %v795 = vunpack.c.l.b16 %v355
        %v796 = vpack.c.b16 %v725, %v724
        %v797 = vpack.c.b16 %v727, %v726
        %v798 = vpack.c.b16 %v729, %v728
        %v799 = vpack.c.b16 %v731, %v730
        %v800 = vpack.c.b16 %v733, %v732
        %v801 = vpack.c.b16 %v735, %v734
        %v802 = vpack.c.b16 %v737, %v736
        %v803 = vpack.c.b16 %v739, %v738
        %v804 = vpack.c.b16 %v741, %v740
        %v805 = vpack.c.b16 %v743, %v742
        %v806 = vpack.c.b16 %v745, %v744
        %v807 = vpack.c.b16 %v747, %v746
        %v808 = vpack.c.b16 %v749, %v748
        %v809 = vpack.c.b16 %v751, %v750
        %v810 = vpack.c.b16 %v753, %v752
        %v811 = vpack.c.b16 %v755, %v754
        %v812 = vpack.c.b16 %v757, %v756
        %v813 = vpack.c.b16 %v759, %v758
        %v814 = vpack.c.b16 %v761, %v760
        %v815 = vpack.c.b16 %v763, %v762
        %v816 = vpack.c.b16 %v765, %v764
        %v817 = vpack.c.b16 %v767, %v766
        %v818 = vpack.c.b16 %v769, %v768
        %v819 = vpack.c.b16 %v771, %v770
        %v820 = vpack.c.b16 %v773, %v772
        %v821 = vpack.c.b16 %v775, %v774
        %v822 = vpack.c.b16 %v777, %v776
        %v823 = vpack.c.b16 %v779, %v778
        %v824 = vpack.c.b16 %v781, %v780
        %v825 = vpack.c.b16 %v783, %v782
        %v826 = vpack.c.b16 %v785, %v784
        %v827 = vpack.c.b16 %v787, %v786
        %v828 = vpack.c.b16 %v789, %v788
        %v829 = vpack.c.b16 %v791, %v790
        %v830 = vpack.c.b16 %v793, %v792
        %v831 = vpack.c.b16 %v795, %v794
        %vm868 = vcmask 523264
        %v870 = vsel %vm868, %v584, 0
        %v873 = vsel %vm868, %v589, 0
        %v876 = vsel %vm868, %v594, 0
        %v879 = vsel %vm868, %v599, 0
        %v882 = vsel %vm868, %v604, 0
        %v885 = vsel %vm868, %v609, 0
        %v888 = vsel %vm868, %v614, 0
        %v891 = vsel %vm868, %v619, 0
        %893 = vmatprep.subr.bf16.mxu0 0
        %894 = vmatpush1.bf16.msra.mxu0 %v796
        %895 = vmatprep.subr.bf16.mxu0 0
        %896 = vmatpush1.bf16.msra.mxu0 %v797
        %897 = vmatprep.subr.bf16.mxu0 0
        %898 = vmatpush1.bf16.msra.mxu0 %v798
        %899 = vmatprep.subr.bf16.mxu0 0
        %900 = vmatpush1.bf16.msra.mxu0 %v799
        %901 = vmatprep.subr.bf16.mxu0 0
        %902 = vmatpush1.bf16.msra.mxu0 %v800
        %903 = vmatprep.subr.bf16.mxu0 0
        %904 = vmatpush1.bf16.msra.mxu0 %v801
        %905 = vmatprep.subr.bf16.mxu0 0
        %906 = vmatpush1.bf16.msra.mxu0 %v802
        %907 = vmatprep.subr.bf16.mxu0 0
        %908 = vmatpush1.bf16.msra.mxu0 %v803
        %909 = vmatprep.subr.bf16.mxu0 0
        %910 = vmatpush1.bf16.msra.mxu0 %v804
        %911 = vmatprep.subr.bf16.mxu0 0
        %912 = vmatpush1.bf16.msra.mxu0 %v805
        %913 = vmatprep.subr.bf16.mxu0 0
        %914 = vmatpush1.bf16.msra.mxu0 %v806
        %915 = vmatprep.subr.bf16.mxu0 0
        %916 = vmatpush1.bf16.msra.mxu0 %v807
        %917 = vmatprep.subr.bf16.mxu0 0
        %918 = vmatpush1.bf16.msra.mxu0 %v808
        %919 = vmatprep.subr.bf16.mxu0 0
        %920 = vmatpush1.bf16.msra.mxu0 %v809
        %921 = vmatprep.subr.bf16.mxu0 0
        %922 = vmatpush1.bf16.msra.mxu0 %v810
        %923 = vmatprep.subr.bf16.mxu0 0
        %924 = vmatpush1.bf16.msra.mxu0 %v811
        %925 = vmatprep.mubr.bf16.mxu0 %v581
        %926 = vmatmul.mubr.bf16.gmra.mrb[0].mxu0 %v580
        %v927 = vpop.f32.mrb[0].mxu0
        %v928 = vadd.f32 %v375, %v927
        %v929 = vpop.f32.mrb[0].mxu0
        %v930 = vpop.f32.mrb[0].mxu0
        %v931 = vadd.f32 %v380, %v930
        %v932 = vpop.f32.mrb[0].mxu0
        %933 = vmatprep.mubr.bf16.mxu0 %v586
        %934 = vmatmul.mubr.bf16.gmra.mrb[0].mxu0 %v585
        %v935 = vpop.f32.mrb[0].mxu0
        %v936 = vadd.f32 %v385, %v935
        %v937 = vpop.f32.mrb[0].mxu0
        %v938 = vpop.f32.mrb[0].mxu0
        %v939 = vadd.f32 %v390, %v938
        %v940 = vpop.f32.mrb[0].mxu0
        %941 = vmatprep.mubr.bf16.mxu0 %v591
        %942 = vmatmul.mubr.bf16.gmra.mrb[0].mxu0 %v590
        %v943 = vpop.f32.mrb[0].mxu0
        %v944 = vadd.f32 %v395, %v943
        %v945 = vpop.f32.mrb[0].mxu0
        %v946 = vpop.f32.mrb[0].mxu0
        %v947 = vadd.f32 %v400, %v946
        %v948 = vpop.f32.mrb[0].mxu0
        %949 = vmatprep.mubr.bf16.mxu0 %v596
        %950 = vmatmul.mubr.bf16.gmra.mrb[0].mxu0 %v595
        %v951 = vpop.f32.mrb[0].mxu0
        %v952 = vadd.f32 %v405, %v951
        %v953 = vpop.f32.mrb[0].mxu0
        %v954 = vpop.f32.mrb[0].mxu0
        %v955 = vadd.f32 %v410, %v954
        %v956 = vpop.f32.mrb[0].mxu0
        %957 = vmatprep.mubr.bf16.mxu0 %v601
        %958 = vmatmul.mubr.bf16.gmra.mrb[0].mxu0 %v600
        %v959 = vpop.f32.mrb[0].mxu0
        %v960 = vadd.f32 %v415, %v959
        %v961 = vpop.f32.mrb[0].mxu0
        %v962 = vpop.f32.mrb[0].mxu0
        %v963 = vadd.f32 %v420, %v962
        %v964 = vpop.f32.mrb[0].mxu0
        %965 = vmatprep.mubr.bf16.mxu0 %v606
        %966 = vmatmul.mubr.bf16.gmra.mrb[0].mxu0 %v605
        %v967 = vpop.f32.mrb[0].mxu0
        %v968 = vadd.f32 %v425, %v967
        %v969 = vpop.f32.mrb[0].mxu0
        %v970 = vpop.f32.mrb[0].mxu0
        %v971 = vadd.f32 %v430, %v970
        %v972 = vpop.f32.mrb[0].mxu0
        %973 = vmatprep.mubr.bf16.mxu0 %v611
        %974 = vmatmul.mubr.bf16.gmra.mrb[0].mxu0 %v610
        %v975 = vpop.f32.mrb[0].mxu0
        %v976 = vadd.f32 %v435, %v975
        %v977 = vpop.f32.mrb[0].mxu0
        %v978 = vpop.f32.mrb[0].mxu0
        %v979 = vadd.f32 %v440, %v978
        %v980 = vpop.f32.mrb[0].mxu0
        %981 = vmatprep.mubr.bf16.mxu0 %v616
        %982 = vmatmul.mubr.bf16.gmra.mrb[0].mxu0 %v615
        %v983 = vpop.f32.mrb[0].mxu0
        %v984 = vadd.f32 %v445, %v983
        %v985 = vpop.f32.mrb[0].mxu0
        %v986 = vpop.f32.mrb[0].mxu0
        %v987 = vadd.f32 %v450, %v986
        %v988 = vpop.f32.mrb[0].mxu0
        %989 = vdwg.mxu0
        %990 = vmatprep.subr.bf16.mxu0 0
        %991 = vmatpush1.bf16.msra.mxu0 %v812
        %992 = vmatprep.subr.bf16.mxu0 0
        %993 = vmatpush1.bf16.msra.mxu0 %v813
        %994 = vmatprep.subr.bf16.mxu0 0
        %995 = vmatpush1.bf16.msra.mxu0 %v814
        %996 = vmatprep.subr.bf16.mxu0 0
        %997 = vmatpush1.bf16.msra.mxu0 %v815
        %998 = vmatprep.subr.bf16.mxu0 0
        %999 = vmatpush1.bf16.msra.mxu0 %v816
        %1000 = vmatprep.subr.bf16.mxu0 0
        %1001 = vmatpush1.bf16.msra.mxu0 %v817
        %1002 = vmatprep.subr.bf16.mxu0 0
        %1003 = vmatpush1.bf16.msra.mxu0 %v818
        %1004 = vmatprep.subr.bf16.mxu0 0
        %1005 = vmatpush1.bf16.msra.mxu0 %v819
        %1006 = vmatprep.subr.bf16.mxu0 0
        %1007 = vmatpush1.bf16.msra.mxu0 %v820
        %1008 = vmatprep.subr.bf16.mxu0 0
        %1009 = vmatpush1.bf16.msra.mxu0 %v821
        %1010 = vmatprep.subr.bf16.mxu0 0
        %1011 = vmatpush1.bf16.msra.mxu0 %v822
        %1012 = vmatprep.subr.bf16.mxu0 0
        %1013 = vmatpush1.bf16.msra.mxu0 %v823
        %1014 = vmatprep.subr.bf16.mxu0 0
        %1015 = vmatpush1.bf16.msra.mxu0 %v824
        %1016 = vmatprep.subr.bf16.mxu0 0
        %1017 = vmatpush1.bf16.msra.mxu0 %v825
        %1018 = vmatprep.subr.bf16.mxu0 0
        %1019 = vmatpush1.bf16.msra.mxu0 %v826
        %1020 = vmatprep.subr.bf16.mxu0 0
        %1021 = vmatpush1.bf16.msra.mxu0 %v827
        %1022 = vmatprep.mubr.bf16.mxu0 %v583
        %1023 = vmatmul.mubr.bf16.gmra.mrb[0].mxu0 %v582
        %v1024 = vpop.f32.mrb[0].mxu0
        %v1025 = vadd.f32 %v928, %v1024
        %v1026 = vpop.f32.mrb[0].mxu0
        %v1027 = vpop.f32.mrb[0].mxu0
        %v1028 = vadd.f32 %v931, %v1027
        %v1029 = vpop.f32.mrb[0].mxu0
        %1030 = vmatprep.mubr.bf16.mxu0 %v588
        %1031 = vmatmul.mubr.bf16.gmra.mrb[0].mxu0 %v587
        %v1032 = vpop.f32.mrb[0].mxu0
        %v1033 = vadd.f32 %v936, %v1032
        %v1034 = vpop.f32.mrb[0].mxu0
        %v1035 = vpop.f32.mrb[0].mxu0
        %v1036 = vadd.f32 %v939, %v1035
        %v1037 = vpop.f32.mrb[0].mxu0
        %1038 = vmatprep.mubr.bf16.mxu0 %v593
        %1039 = vmatmul.mubr.bf16.gmra.mrb[0].mxu0 %v592
        %v1040 = vpop.f32.mrb[0].mxu0
        %v1041 = vadd.f32 %v944, %v1040
        %v1042 = vpop.f32.mrb[0].mxu0
        %v1043 = vpop.f32.mrb[0].mxu0
        %v1044 = vadd.f32 %v947, %v1043
        %v1045 = vpop.f32.mrb[0].mxu0
        %1046 = vmatprep.mubr.bf16.mxu0 %v598
        %1047 = vmatmul.mubr.bf16.gmra.mrb[0].mxu0 %v597
        %v1048 = vpop.f32.mrb[0].mxu0
        %v1049 = vadd.f32 %v952, %v1048
        %v1050 = vpop.f32.mrb[0].mxu0
        %v1051 = vpop.f32.mrb[0].mxu0
        %v1052 = vadd.f32 %v955, %v1051
        %v1053 = vpop.f32.mrb[0].mxu0
        %1054 = vmatprep.mubr.bf16.mxu0 %v603
        %1055 = vmatmul.mubr.bf16.gmra.mrb[0].mxu0 %v602
        %v1056 = vpop.f32.mrb[0].mxu0
        %v1057 = vadd.f32 %v960, %v1056
        %v1058 = vpop.f32.mrb[0].mxu0
        %v1059 = vpop.f32.mrb[0].mxu0
        %v1060 = vadd.f32 %v963, %v1059
        %v1061 = vpop.f32.mrb[0].mxu0
        %1062 = vmatprep.mubr.bf16.mxu0 %v608
        %1063 = vmatmul.mubr.bf16.gmra.mrb[0].mxu0 %v607
        %v1064 = vpop.f32.mrb[0].mxu0
        %v1065 = vadd.f32 %v968, %v1064
        %v1066 = vpop.f32.mrb[0].mxu0
        %v1067 = vpop.f32.mrb[0].mxu0
        %v1068 = vadd.f32 %v971, %v1067
        %v1069 = vpop.f32.mrb[0].mxu0
        %1070 = vmatprep.mubr.bf16.mxu0 %v613
        %1071 = vmatmul.mubr.bf16.gmra.mrb[0].mxu0 %v612
        %v1072 = vpop.f32.mrb[0].mxu0
        %v1073 = vadd.f32 %v976, %v1072
        %v1074 = vpop.f32.mrb[0].mxu0
        %v1075 = vpop.f32.mrb[0].mxu0
        %v1076 = vadd.f32 %v979, %v1075
        %v1077 = vpop.f32.mrb[0].mxu0
        %1078 = vmatprep.mubr.bf16.mxu0 %v618
        %1079 = vmatmul.mubr.bf16.gmra.mrb[0].mxu0 %v617
        %v1080 = vpop.f32.mrb[0].mxu0
        %v1081 = vadd.f32 %v984, %v1080
        %v1082 = vpop.f32.mrb[0].mxu0
        %v1083 = vpop.f32.mrb[0].mxu0
        %v1084 = vadd.f32 %v987, %v1083
        %v1085 = vpop.f32.mrb[0].mxu0
        %1086 = vdwg.mxu0
        %1087 = vmatprep.subr.bf16.mxu0 0
        %1088 = vmatpush1.bf16.msra.mxu0 %v828
        %1089 = vmatprep.subr.bf16.mxu0 0
        %1090 = vmatpush1.bf16.msra.mxu0 %v829
        %1091 = vmatprep.subr.bf16.mxu0 0
        %1092 = vmatpush1.bf16.msra.mxu0 %v830
        %1093 = vmatprep.subr.bf16.mxu0 0
        %1094 = vmatpush1.bf16.msra.mxu0 %v831
        %1095 = vmatprep.subr.bf16.mxu0 0
        %1096 = vmatpush1.bf16.msra.mxu0 0
        %1097 = vmatprep.subr.bf16.mxu0 0
        %1098 = vmatpush1.bf16.msra.mxu0 0
        %1099 = vmatprep.subr.bf16.mxu0 0
        %1100 = vmatpush1.bf16.msra.mxu0 0
        %1101 = vmatprep.subr.bf16.mxu0 0
        %1102 = vmatpush1.bf16.msra.mxu0 0
        %1103 = vmatprep.subr.bf16.mxu0 0
        %1104 = vmatpush1.bf16.msra.mxu0 0
        %1105 = vmatprep.subr.bf16.mxu0 0
        %1106 = vmatpush1.bf16.msra.mxu0 0
        %1107 = vmatprep.subr.bf16.mxu0 0
        %1108 = vmatpush1.bf16.msra.mxu0 0
        %1109 = vmatprep.subr.bf16.mxu0 0
        %1110 = vmatpush1.bf16.msra.mxu0 0
        %1111 = vmatprep.subr.bf16.mxu0 0
        %1112 = vmatpush1.bf16.msra.mxu0 0
        %1113 = vmatprep.subr.bf16.mxu0 0
        %1114 = vmatpush1.bf16.msra.mxu0 0
        %1115 = vmatprep.subr.bf16.mxu0 0
        %1116 = vmatpush1.bf16.msra.mxu0 0
        %1117 = vmatprep.subr.bf16.mxu0 0
        %1118 = vmatpush1.bf16.msra.mxu0 0
        %1119 = vmatprep.mubr.bf16.mxu0 0
        %1120 = vmatmul.mubr.bf16.gmra.mrb[0].mxu0 %v870
        %v1121 = vpop.f32.mrb[0].mxu0
        %v1122 = vadd.f32 %v1025, %v1121
        %v1123 = vpop.f32.mrb[0].mxu0
        %v1124 = vpop.f32.mrb[0].mxu0
        %v1125 = vadd.f32 %v1028, %v1124
        %v1126 = vpop.f32.mrb[0].mxu0
        %1127 = vmatprep.mubr.bf16.mxu0 0
        %1128 = vmatmul.mubr.bf16.gmra.mrb[0].mxu0 %v873
        %v1129 = vpop.f32.mrb[0].mxu0
        %v1130 = vadd.f32 %v1033, %v1129
        %v1131 = vpop.f32.mrb[0].mxu0
        %v1132 = vpop.f32.mrb[0].mxu0
        %v1133 = vadd.f32 %v1036, %v1132
        %v1134 = vpop.f32.mrb[0].mxu0
        %1135 = vmatprep.mubr.bf16.mxu0 0
        %1136 = vmatmul.mubr.bf16.gmra.mrb[0].mxu0 %v876
        %v1137 = vpop.f32.mrb[0].mxu0
        %v1138 = vadd.f32 %v1041, %v1137
        %v1139 = vpop.f32.mrb[0].mxu0
        %v1140 = vpop.f32.mrb[0].mxu0
        %v1141 = vadd.f32 %v1044, %v1140
        %v1142 = vpop.f32.mrb[0].mxu0
        %1143 = vmatprep.mubr.bf16.mxu0 0
        %1144 = vmatmul.mubr.bf16.gmra.mrb[0].mxu0 %v879
        %v1145 = vpop.f32.mrb[0].mxu0
        %v1146 = vadd.f32 %v1049, %v1145
        %v1147 = vpop.f32.mrb[0].mxu0
        %v1148 = vpop.f32.mrb[0].mxu0
        %v1149 = vadd.f32 %v1052, %v1148
        %v1150 = vpop.f32.mrb[0].mxu0
        %1151 = vmatprep.mubr.bf16.mxu0 0
        %1152 = vmatmul.mubr.bf16.gmra.mrb[0].mxu0 %v882
        %v1153 = vpop.f32.mrb[0].mxu0
        %v1154 = vadd.f32 %v1057, %v1153
        %v1155 = vpop.f32.mrb[0].mxu0
        %v1156 = vpop.f32.mrb[0].mxu0
        %v1157 = vadd.f32 %v1060, %v1156
        %v1158 = vpop.f32.mrb[0].mxu0
        %1159 = vmatprep.mubr.bf16.mxu0 0
        %1160 = vmatmul.mubr.bf16.gmra.mrb[0].mxu0 %v885
        %v1161 = vpop.f32.mrb[0].mxu0
        %v1162 = vadd.f32 %v1065, %v1161
        %v1163 = vpop.f32.mrb[0].mxu0
        %v1164 = vpop.f32.mrb[0].mxu0
        %v1165 = vadd.f32 %v1068, %v1164
        %v1166 = vpop.f32.mrb[0].mxu0
        %1167 = vmatprep.mubr.bf16.mxu0 0
        %1168 = vmatmul.mubr.bf16.gmra.mrb[0].mxu0 %v888
        %v1169 = vpop.f32.mrb[0].mxu0
        %v1170 = vadd.f32 %v1073, %v1169
        %v1171 = vpop.f32.mrb[0].mxu0
        %v1172 = vpop.f32.mrb[0].mxu0
        %v1173 = vadd.f32 %v1076, %v1172
        %v1174 = vpop.f32.mrb[0].mxu0
        %1175 = vmatprep.mubr.bf16.mxu0 0
        %1176 = vmatmul.mubr.bf16.gmra.mrb[0].mxu0 %v891
        %v1177 = vpop.f32.mrb[0].mxu0
        %v1178 = vadd.f32 %v1081, %v1177
        %v1179 = vpop.f32.mrb[0].mxu0
        %v1180 = vpop.f32.mrb[0].mxu0
        %v1181 = vadd.f32 %v1084, %v1180
        %v1182 = vpop.f32.mrb[0].mxu0
        %1183 = vdwg.mxu0
        %v1184 = vmax.f32 %v1122, 0.0
        %v1185 = vmax.f32 %v1125, 0.0
        %v1186 = vmax.f32 %v1130, 0.0
        %v1187 = vmax.f32 %v1133, 0.0
        %v1188 = vmax.f32 %v1138, 0.0
        %v1189 = vmax.f32 %v1141, 0.0
        %v1190 = vmax.f32 %v1146, 0.0
        %v1191 = vmax.f32 %v1149, 0.0
        %v1192 = vmax.f32 %v1154, 0.0
        %v1193 = vmax.f32 %v1157, 0.0
        %v1194 = vmax.f32 %v1162, 0.0
        %v1195 = vmax.f32 %v1165, 0.0
        %v1196 = vmax.f32 %v1170, 0.0
        %v1197 = vmax.f32 %v1173, 0.0
        %v1198 = vmax.f32 %v1178, 0.0
        %v1199 = vmax.f32 %v1181, 0.0
        %v1200 = vpack.c.bf16 %v1185, %v1184
        %v1201 = vpack.c.bf16 %v1187, %v1186
        %v1202 = vpack.c.bf16 %v1189, %v1188
        %v1203 = vpack.c.bf16 %v1191, %v1190
        %v1204 = vpack.c.bf16 %v1193, %v1192
        %v1205 = vpack.c.bf16 %v1195, %v1194
        %v1206 = vpack.c.bf16 %v1197, %v1196
        %v1207 = vpack.c.bf16 %v1199, %v1198
        %v1216 = vunpack.c.l.b16 %v1200
        %v1217 = vunpack.c.h.b16 %v1200
        %v1218 = vunpack.c.l.b16 %v1201
        %v1219 = vunpack.c.h.b16 %v1201
        %v1220 = vunpack.c.l.b16 %v1202
        %v1221 = vunpack.c.h.b16 %v1202
        %v1222 = vunpack.c.l.b16 %v1203
        %v1223 = vunpack.c.h.b16 %v1203
        %v1224 = vunpack.c.l.b16 %v1204
        %v1225 = vunpack.c.h.b16 %v1204
        %v1226 = vunpack.c.l.b16 %v1205
        %v1227 = vunpack.c.h.b16 %v1205
        %v1228 = vunpack.c.l.b16 %v1206
        %v1229 = vunpack.c.h.b16 %v1206
        %v1230 = vunpack.c.l.b16 %v1207
        %v1231 = vunpack.c.h.b16 %v1207
        %v1232 = vpack.c.b16 %v1216, %v1216
        %v1233 = vpack.c.b16 %v1217, %v1217
        %v1234 = vpack.c.b16 %v1218, %v1218
        %v1235 = vpack.c.b16 %v1219, %v1219
        %v1236 = vpack.c.b16 %v1220, %v1220
        %v1237 = vpack.c.b16 %v1221, %v1221
        %v1238 = vpack.c.b16 %v1222, %v1222
        %v1239 = vpack.c.b16 %v1223, %v1223
        %v1240 = vpack.c.b16 %v1224, %v1224
        %v1241 = vpack.c.b16 %v1225, %v1225
        %v1242 = vpack.c.b16 %v1226, %v1226
        %v1243 = vpack.c.b16 %v1227, %v1227
        %v1244 = vpack.c.b16 %v1228, %v1228
        %v1245 = vpack.c.b16 %v1229, %v1229
        %v1246 = vpack.c.b16 %v1230, %v1230
        %v1247 = vpack.c.b16 %v1231, %v1231
        %vm1264 = vcmask 125952
        %1265 = vst.msk [vmem:[%s234] sm:$0xf] %vm1264, %v1232
        %1266 = vst.msk [vmem:[%s234 + $0x4] sm:$0xf] %vm1264, %v1233
        %1267 = vst.msk [vmem:[%s234 + $0x8] sm:$0xf] %vm1264, %v1234
        %1268 = vst.msk [vmem:[%s234 + $0xc] sm:$0xf] %vm1264, %v1235
        %1269 = vst.msk [vmem:[%s234 + $0x10] sm:$0xf] %vm1264, %v1236
        %1270 = vst.msk [vmem:[%s234 + $0x14] sm:$0xf] %vm1264, %v1237
        %1271 = vst.msk [vmem:[%s234 + $0x18] sm:$0xf] %vm1264, %v1238
        %1272 = vst.msk [vmem:[%s234 + $0x1c] sm:$0xf] %vm1264, %v1239
        %1273 = vst.msk [vmem:[%s234 + $0x20] sm:$0xf] %vm1264, %v1240
        %1274 = vst.msk [vmem:[%s234 + $0x24] sm:$0xf] %vm1264, %v1241
        %1275 = vst.msk [vmem:[%s234 + $0x28] sm:$0xf] %vm1264, %v1242
        %1276 = vst.msk [vmem:[%s234 + $0x2c] sm:$0xf] %vm1264, %v1243
        %1277 = vst.msk [vmem:[%s234 + $0x30] sm:$0xf] %vm1264, %v1244
        %1278 = vst.msk [vmem:[%s234 + $0x34] sm:$0xf] %vm1264, %v1245
        %1279 = vst.msk [vmem:[%s234 + $0x38] sm:$0xf] %vm1264, %v1246
        %1280 = vst.msk [vmem:[%s234 + $0x3c] sm:$0xf] %vm1264, %v1247
        %s1281 = sand.u32 %s113, 1
        %s1282 = scalar_lea.sflag [#allocation4], %s1281
        %s1283 = sand.u32 %s113, 1
        %s1284 = smul.addr %s1283, 64
        %s1285 = scalar_lea.vmem [#allocation8], %s1284
        // Predicated region
        $region45: #{_forward_impl.8} parent=31 // pred_check
          %p1286 = pneg %p123
        $region46: #{_forward_impl.8} parent=31 // pred_check_branch
          %1288 = sbr.rel (%p1286) target = $region48
        $region47: #{_forward_impl.8} parent=31 // pred_region
          %s1290 = ssub.s32 1024, 1024
          %1291 = vsyncadd %s1282, %s1290
          %s1292 = smul.addr %s25, 16
          %s1293 = sadd.s32 %s26, %s1292
          %s1294 = smul.addr %s1293, 64
          %s1295 = scalar_lea.hbm %s3, %s1294
          %s1296 = sshll.u32 %s1285, 4
          %s1297 = int_to_ptr.vmem [resolvable:$true] %s1296
          %1302 = dma.vmem_to_hbm [thread:$0]  %s1297, 1024, %s1295, %s1282, 64, 64, 4
        $region48: #{_forward_impl.8} parent=31 // pred_fallthru
          _
      $region32: #{_forward_impl.8} parent=5 // pred_fallthru
        _
      %p1303 = scmp.le.s32.totalorder 2, %s16
      // Predicated region
      $region49: #{_forward_impl.8} parent=5 // pred_check
        %p1304 = pneg %p1303
      $region50: #{_forward_impl.8} parent=5 // pred_check_branch
        %1306 = sbr.rel (%p1304) target = $region52
      $region51: #{_forward_impl.8} parent=5 // pred_region
        %s1307 = ssub.s32 %s16, 2
        // Predicated region
        $region53: #{_forward_impl.8} parent=51 // pred_check
          %p1308 = pneg %p129
        $region54: #{_forward_impl.8} parent=51 // pred_check_branch
          %1310 = sbr.rel (%p1308) target = $region56
        $region55: #{_forward_impl.8} parent=51 // pred_region
          %s1311 = sand.u32 %s114, 1
          %s1312 = scalar_lea.sflag [#allocation4], %s1311
          %s1313 = sand.u32 %s114, 1
          %s1314 = smul.addr %s1313, 64
          %s1315 = scalar_lea.vmem [#allocation8], %s1314
          %1316 = dma.done %s1312, 1024
        $region56: #{_forward_impl.8} parent=51 // pred_fallthru
          _
      $region52: #{_forward_impl.8} parent=5 // pred_fallthru
        _
    $region6: #{_forward_impl.8} parent=1 // loop_footer
      %s20 = sadd.s32 1, %s16
    $region7: #{_forward_impl.8} parent=1 // loop_footer_branch
      %15 = sbr.rel target = $region3
    $region8: #{_forward_impl.8} parent=1 // loop_exit
      _
    %1317 = vsyncpa [#allocation3], 1
    %s1318 = scalar_lea.sflag [#allocation3], 1
    %1319 = vsyncpa %s1318, 1
    %1320 = vsyncpa [#allocation6], 1
    %1321 = vsyncpa [#allocation4], 1
    %s1322 = scalar_lea.sflag [#allocation4], 1
    %1323 = vsyncpa %s1322, 1

// kernel: _forward_impl.9
$region0: #{_forward_impl.9}
  #allocation0 [shape = 'u32[]', space=smem, size = 0x4, offset = 0x4, fixed_abs, tag = 'smem constant byte address 0x4 - core index']
  #allocation1 [shape = 'u32[144,128]{1,0:T(1,128)}', space=vmem, size = 0x12000, scoped, tag = 'internal scratch']
  %s0 = inlined_call_operand.hbm [shape: bf16[2,1152,4], index: 0, kind: input, shape index: {}]
  %s1 = inlined_call_operand.hbm [shape: bf16[256,1152], index: 1, kind: input, shape index: {}]
  %s2 = inlined_call_operand.hbm [shape: f32[256,1], index: 2, kind: input, shape index: {}]
  %s3 = inlined_call_operand.hbm [shape: bf16[2,256,4], index: 3, kind: output, shape index: {}]
  %s4 = sld [smem:[#allocation0]]
  $region57: #{_forward_impl.9} parent=0
    _
  %s6 = ssub.s32 1, %s4
  %s7 = scalar_select 0, %s6, %s4
  $region1: #{_forward_impl.9} parent=0
    #allocation2 [shape = 'u8[589824]{0}', space=vmem, size = 0x90000, scoped, tag = 'input window, operand 0']
    #allocation3 [shape = 's32[2]{0}', space=sflag, size = 0x8, scoped, tag = 'scoped memory for _forward_impl.9']
    #allocation4 [shape = 's32[2]{0}', space=sflag, size = 0x8, scoped, tag = 'scoped memory for _forward_impl.9']
    #allocation5 [shape = 'u8[589824]{0}', space=vmem, size = 0x90000, scoped, tag = 'input window, operand 1, single buffered']
    #allocation6 [shape = 's32[1]{0}', space=sflag, size = 0x4, scoped, tag = 'scoped memory for _forward_impl.9']
    #allocation7 [shape = 'u8[131072]{0}', space=vmem, size = 0x20000, scoped, tag = 'input window, operand 2, single buffered']
    #allocation8 [shape = 'u8[131072]{0}', space=vmem, size = 0x20000, scoped, tag = 'output window, operand 0']
    %8 = vsyncpa [#allocation3], 0
    %s9 = scalar_lea.sflag [#allocation3], 1
    %10 = vsyncpa %s9, 0
    %11 = vsyncpa [#allocation6], 0
    %12 = vsyncpa [#allocation4], 0
    %s13 = scalar_lea.sflag [#allocation4], 1
    %14 = vsyncpa %s13, 0
    loop: start=0, step=1, limit=4
    $region2: #{_forward_impl.9} parent=1 // loop_pre_header
      _
    $region3: #{_forward_impl.9} parent=1 // loop_header
      %s16 = sphi 0, %s20
      %p17 = scmp.ge.s32.totalorder %s16, 4
      %s23 = sphi 0, %s35
      %s24 = sphi 0, %s31
      %s25 = sphi 0, %s23
      %s26 = sphi 0, %s24
      %s27 = sphi 0, %s25
      %s28 = sphi 0, %s26
      %s40 = sphi 0, %s42
      %s43 = sphi 0, %s40
      %s44 = sphi 0, %s43
      %s60 = sphi 0, %s44
      %s64 = sphi 0, %s64
      %s66 = sphi 0, %s64
      %s67 = sphi 0, %s66
      %s81 = sphi 0, %s67
      %s85 = sphi 0, %s85
      %s87 = sphi 0, %s85
      %s88 = sphi 0, %s87
      %s102 = sphi 0, %s88
      %s110 = sphi 0, %s112
      %s113 = sphi 0, %s110
      %s114 = sphi 0, %s113
      %s130 = sphi 0, %s114
    $region4: #{_forward_impl.9} parent=1 // loop_header_branch
      %19 = sbr.rel (%p17) target = $region8
    $region5: #{_forward_impl.9} parent=1 // loop_body
      %s21 = ssub.s32 %s16, 1
      %s22 = ssub.s32 %s16, 2
      %s29 = sadd.s32 1, %s24
      %p30 = scmp.ge.s32.totalorder %s29, 1
      %s31 = scalar_select %p30, 0, %s29
      %s32 = sadd.s32 1, %s23
      %s33 = scalar_select %p30, %s32, %s23
      %p34 = scmp.ge.s32.totalorder %s33, 2
      %s35 = scalar_select %p34, 0, %s33
      %s36 = ssub.s32 %s23, %s35
      %s37 = ssub.s32 %s24, %s31
      %s38 = sor.u32 %s36, %s37
      %p39 = scmp.eq.s32.totalorder %s38, 0
      %s41 = sadd.s32 %s40, 1
      %s42 = scalar_select %p39, %s40, %s41
      %p45 = pneg %p39
      %p46 = scmp.eq.s32.totalorder %s16, 1
      %p47 = por %p45, %p46
      %p48 = scmp.ne.s32.totalorder %s40, %s43
      %p49 = scmp.eq.s32.totalorder %s16, 0
      %p50 = por %p48, %p49
      %p51 = scmp.ne.s32.totalorder %s40, %s43
      %p52 = scmp.eq.s32.totalorder %s21, 1
      %p53 = por %p51, %p52
      %p54 = scmp.ne.s32.totalorder %s43, %s44
      %p55 = scmp.eq.s32.totalorder %s21, 0
      %p56 = por %p54, %p55
      %p57 = scmp.ne.s32.totalorder %s43, %s44
      %p58 = scmp.eq.s32.totalorder %s22, 1
      %p59 = por %p57, %p58
      %p61 = scmp.ne.s32.totalorder %s44, %s60
      %p62 = scmp.eq.s32.totalorder %s22, 0
      %p63 = por %p61, %p62
      %s65 = sadd.s32 %s64, 1
      %p68 = scmp.eq.s32.totalorder %s16, 1
      %p69 = scmp.ne.s32.totalorder %s64, %s66
      %p70 = scmp.eq.s32.totalorder %s16, 0
      %p71 = por %p69, %p70
      %p72 = scmp.ne.s32.totalorder %s64, %s66
      %p73 = scmp.eq.s32.totalorder %s21, 1
      %p74 = por %p72, %p73
      %p75 = scmp.ne.s32.totalorder %s66, %s67
      %p76 = scmp.eq.s32.totalorder %s21, 0
      %p77 = por %p75, %p76
      %p78 = scmp.ne.s32.totalorder %s66, %s67
      %p79 = scmp.eq.s32.totalorder %s22, 1
      %p80 = por %p78, %p79
      %p82 = scmp.ne.s32.totalorder %s67, %s81
      %p83 = scmp.eq.s32.totalorder %s22, 0
      %p84 = por %p82, %p83
      %s86 = sadd.s32 %s85, 1
      %p89 = scmp.eq.s32.totalorder %s16, 1
      %p90 = scmp.ne.s32.totalorder %s85, %s87
      %p91 = scmp.eq.s32.totalorder %s16, 0
      %p92 = por %p90, %p91
      %p93 = scmp.ne.s32.totalorder %s85, %s87
      %p94 = scmp.eq.s32.totalorder %s21, 1
      %p95 = por %p93, %p94
      %p96 = scmp.ne.s32.totalorder %s87, %s88
      %p97 = scmp.eq.s32.totalorder %s21, 0
      %p98 = por %p96, %p97
      %p99 = scmp.ne.s32.totalorder %s87, %s88
      %p100 = scmp.eq.s32.totalorder %s22, 1
      %p101 = por %p99, %p100
      %p103 = scmp.ne.s32.totalorder %s88, %s102
      %p104 = scmp.eq.s32.totalorder %s22, 0
      %p105 = por %p103, %p104
      %s106 = ssub.s32 %s23, %s35
      %s107 = ssub.s32 %s24, %s31
      %s108 = sor.u32 %s106, %s107
      %p109 = scmp.eq.s32.totalorder %s108, 0
      %s111 = sadd.s32 %s110, 1
      %s112 = scalar_select %p109, %s110, %s111
      %p115 = pneg %p109
      %p116 = scmp.eq.s32.totalorder %s16, 1
      %p117 = por %p115, %p116
      %p118 = scmp.ne.s32.totalorder %s110, %s113
      %p119 = scmp.eq.s32.totalorder %s16, 0
      %p120 = por %p118, %p119
      %p121 = scmp.ne.s32.totalorder %s110, %s113
      %p122 = scmp.eq.s32.totalorder %s21, 1
      %p123 = por %p121, %p122
      %p124 = scmp.ne.s32.totalorder %s113, %s114
      %p125 = scmp.eq.s32.totalorder %s21, 0
      %p126 = por %p124, %p125
      %p127 = scmp.ne.s32.totalorder %s113, %s114
      %p128 = scmp.eq.s32.totalorder %s22, 1
      %p129 = por %p127, %p128
      %p131 = scmp.ne.s32.totalorder %s114, %s130
      %p132 = scmp.eq.s32.totalorder %s22, 0
      %p133 = por %p131, %p132
      %p134 = scmp.le.s32.totalorder 1, %s16
      %p135 = scmp.lt.s32.totalorder %s16, 3
      %p136 = pnand %p134, %p135
      %p137 = pneg %p136
      // Predicated region
      $region9: #{_forward_impl.9} parent=5 // pred_check
        _
      $region10: #{_forward_impl.9} parent=5 // pred_check_branch
        %139 = sbr.rel (%p136) target = $region12
      $region11: #{_forward_impl.9} parent=5 // pred_region
        %s140 = ssub.s32 %s16, 1
        // Predicated region
        $region13: #{_forward_impl.9} parent=11 // pred_check
          %p141 = pneg %p77
        $region14: #{_forward_impl.9} parent=11 // pred_check_branch
          %143 = sbr.rel (%p141) target = $region16
        $region15: #{_forward_impl.9} parent=11 // pred_region
          %s145 = ssub.s32 18432, 18432
          %146 = vsyncadd [#allocation6], %s145
          %s147 = sshll.u32 [#allocation5], 4
          %s148 = int_to_ptr.vmem [resolvable:$true] %s147
          %153 = dma.hbm_to_vmem [thread:$0]  %s1, 18432, %s148, [#allocation6], 576, 576, 36
        $region16: #{_forward_impl.9} parent=11 // pred_fallthru
          _
        // Predicated region
        $region17: #{_forward_impl.9} parent=11 // pred_check
          %p154 = pneg %p98
        $region18: #{_forward_impl.9} parent=11 // pred_check_branch
          %156 = sbr.rel (%p154) target = $region20
        $region19: #{_forward_impl.9} parent=11 // pred_region
          %s158 = ssub.s32 4096, 4096
          %159 = vsyncadd [#allocation6], %s158
          %s160 = sshll.u32 [#allocation7], 4
          %s161 = int_to_ptr.vmem [resolvable:$true] %s160
          %166 = dma.hbm_to_vmem [thread:$0]  %s2, 4096, %s161, [#allocation6], 128, 128, 8
        $region20: #{_forward_impl.9} parent=11 // pred_fallthru
          _
      $region12: #{_forward_impl.9} parent=5 // pred_fallthru
        _
      %p167 = scmp.lt.s32.totalorder %s16, 2
      // Predicated region
      $region21: #{_forward_impl.9} parent=5 // pred_check
        %p168 = pneg %p167
      $region22: #{_forward_impl.9} parent=5 // pred_check_branch
        %170 = sbr.rel (%p168) target = $region24
      $region23: #{_forward_impl.9} parent=5 // pred_region
        // Predicated region
        $region25: #{_forward_impl.9} parent=23 // pred_check
          %p171 = pneg %p50
        $region26: #{_forward_impl.9} parent=23 // pred_check_branch
          %173 = sbr.rel (%p171) target = $region28
        $region27: #{_forward_impl.9} parent=23 // pred_region
          %s174 = sand.u32 %s40, 1
          %s175 = scalar_lea.sflag [#allocation3], %s174
          %s176 = sand.u32 %s40, 1
          %s177 = smul.addr %s176, 576
          %s178 = scalar_lea.vmem [#allocation2], %s177
          %s180 = ssub.s32 9216, 9216
          %181 = vsyncadd %s175, %s180
          %s182 = smul.addr %s23, 144
          %s183 = sadd.s32 %s24, %s182
          %s184 = smul.addr %s183, 64
          %s185 = scalar_lea.hbm %s0, %s184
          %s186 = sshll.u32 %s178, 4
          %s187 = int_to_ptr.vmem [resolvable:$true] %s186
          %192 = dma.hbm_to_vmem [thread:$0]  %s185, 9216, %s187, %s175, 64, 64, 4
        $region28: #{_forward_impl.9} parent=23 // pred_fallthru
          _
      $region24: #{_forward_impl.9} parent=5 // pred_fallthru
        _
      %p193 = scmp.le.s32.totalorder 1, %s16
      %p194 = scmp.lt.s32.totalorder %s16, 3
      %p195 = pnand %p193, %p194
      %p196 = pneg %p195
      // Predicated region
      $region29: #{_forward_impl.9} parent=5 // pred_check
        _
      $region30: #{_forward_impl.9} parent=5 // pred_check_branch
        %198 = sbr.rel (%p195) target = $region32
      $region31: #{_forward_impl.9} parent=5 // pred_region
        %s199 = ssub.s32 %s16, 1
        %s200 = sand.u32 %s43, 1
        %s201 = scalar_lea.sflag [#allocation3], %s200
        %s202 = sand.u32 %s43, 1
        %s203 = smul.addr %s202, 576
        %s204 = scalar_lea.vmem [#allocation2], %s203
        // Predicated region
        $region33: #{_forward_impl.9} parent=31 // pred_check
          %p205 = pneg %p56
        $region34: #{_forward_impl.9} parent=31 // pred_check_branch
          %207 = sbr.rel (%p205) target = $region36
        $region35: #{_forward_impl.9} parent=31 // pred_region
          %208 = dma.done %s201, 9216
        $region36: #{_forward_impl.9} parent=31 // pred_fallthru
          _
        // Predicated region
        $region37: #{_forward_impl.9} parent=31 // pred_check
          %p209 = pneg %p77
        $region38: #{_forward_impl.9} parent=31 // pred_check_branch
          %211 = sbr.rel (%p209) target = $region40
        $region39: #{_forward_impl.9} parent=31 // pred_region
          %212 = dma.done [#allocation6], 18432
        $region40: #{_forward_impl.9} parent=31 // pred_fallthru
          _
        // Predicated region
        $region41: #{_forward_impl.9} parent=31 // pred_check
          %p213 = pneg %p98
        $region42: #{_forward_impl.9} parent=31 // pred_check_branch
          %215 = sbr.rel (%p213) target = $region44
        $region43: #{_forward_impl.9} parent=31 // pred_region
          %216 = dma.done [#allocation6], 4096
        $region44: #{_forward_impl.9} parent=31 // pred_fallthru
          _
        %s217 = sand.u32 %s43, 1
        %s218 = scalar_lea.sflag [#allocation3], %s217
        %s219 = sand.u32 %s43, 1
        %s220 = smul.addr %s219, 576
        %s221 = scalar_lea.vmem [#allocation2], %s220
        %p222 = pneg %p56
        %p223 = pneg %p53
        %p224 = pneg %p77
        %p225 = pneg %p74
        %p226 = pneg %p98
        %p227 = pneg %p95
        %p228 = pneg %p126
        %p229 = pneg %p123
        %s230 = sand.u32 %s113, 1
        %s231 = scalar_lea.sflag [#allocation4], %s230
        %s232 = sand.u32 %s113, 1
        %s233 = smul.addr %s232, 128
        %s234 = scalar_lea.vmem [#allocation8], %s233
        %v236 = vld [vmem:[#allocation5] sm:$0xff]
        %v237 = vld [vmem:[#allocation5 + $0x8] sm:$0xff]
        %v238 = vld [vmem:[#allocation5 + $0x10] sm:$0xff]
        %v239 = vld [vmem:[#allocation5 + $0x18] sm:$0xff]
        %v240 = vld [vmem:[#allocation5 + $0x20] sm:$0xf]
        %v241 = vld [vmem:[#allocation5 + $0x24] sm:$0xff]
        %v242 = vld [vmem:[#allocation5 + $0x2c] sm:$0xff]
        %v243 = vld [vmem:[#allocation5 + $0x34] sm:$0xff]
        %v244 = vld [vmem:[#allocation5 + $0x3c] sm:$0xff]
        %v245 = vld [vmem:[#allocation5 + $0x44] sm:$0xf]
        %v246 = vld [vmem:[#allocation5 + $0x48] sm:$0xff]
        %v247 = vld [vmem:[#allocation5 + $0x50] sm:$0xff]
        %v248 = vld [vmem:[#allocation5 + $0x58] sm:$0xff]
        %v249 = vld [vmem:[#allocation5 + $0x60] sm:$0xff]
        %v250 = vld [vmem:[#allocation5 + $0x68] sm:$0xf]
        %v251 = vld [vmem:[#allocation5 + $0x6c] sm:$0xff]
        %v252 = vld [vmem:[#allocation5 + $0x74] sm:$0xff]
        %v253 = vld [vmem:[#allocation5 + $0x7c] sm:$0xff]
        %v254 = vld [vmem:[#allocation5 + $0x84] sm:$0xff]
        %v255 = vld [vmem:[#allocation5 + $0x8c] sm:$0xf]
        %v256 = vld [vmem:[#allocation5 + $0x90] sm:$0xff]
        %v257 = vld [vmem:[#allocation5 + $0x98] sm:$0xff]
        %v258 = vld [vmem:[#allocation5 + $0xa0] sm:$0xff]
        %v259 = vld [vmem:[#allocation5 + $0xa8] sm:$0xff]
        %v260 = vld [vmem:[#allocation5 + $0xb0] sm:$0xf]
        %v261 = vld [vmem:[#allocation5 + $0xb4] sm:$0xff]
        %v262 = vld [vmem:[#allocation5 + $0xbc] sm:$0xff]
        %v263 = vld [vmem:[#allocation5 + $0xc4] sm:$0xff]
        %v264 = vld [vmem:[#allocation5 + $0xcc] sm:$0xff]
        %v265 = vld [vmem:[#allocation5 + $0xd4] sm:$0xf]
        %v266 = vld [vmem:[#allocation5 + $0xd8] sm:$0xff]
        %v267 = vld [vmem:[#allocation5 + $0xe0] sm:$0xff]
        %v268 = vld [vmem:[#allocation5 + $0xe8] sm:$0xff]
        %v269 = vld [vmem:[#allocation5 + $0xf0] sm:$0xff]
        %v270 = vld [vmem:[#allocation5 + $0xf8] sm:$0xf]
        %v271 = vld [vmem:[#allocation5 + $0xfc] sm:$0xff]
        %v272 = vld [vmem:[#allocation5 + $0x104] sm:$0xff]
        %v273 = vld [vmem:[#allocation5 + $0x10c] sm:$0xff]
        %v274 = vld [vmem:[#allocation5 + $0x114] sm:$0xff]
        %v275 = vld [vmem:[#allocation5 + $0x11c] sm:$0xf]
        %v276 = vld [vmem:[#allocation5 + $0x120] sm:$0xff]
        %v277 = vld [vmem:[#allocation5 + $0x128] sm:$0xff]
        %v278 = vld [vmem:[#allocation5 + $0x130] sm:$0xff]
        %v279 = vld [vmem:[#allocation5 + $0x138] sm:$0xff]
        %v280 = vld [vmem:[#allocation5 + $0x140] sm:$0xf]
        %v281 = vld [vmem:[#allocation5 + $0x144] sm:$0xff]
        %v282 = vld [vmem:[#allocation5 + $0x14c] sm:$0xff]
        %v283 = vld [vmem:[#allocation5 + $0x154] sm:$0xff]
        %v284 = vld [vmem:[#allocation5 + $0x15c] sm:$0xff]
        %v285 = vld [vmem:[#allocation5 + $0x164] sm:$0xf]
        %v286 = vld [vmem:[#allocation5 + $0x168] sm:$0xff]
        %v287 = vld [vmem:[#allocation5 + $0x170] sm:$0xff]
        %v288 = vld [vmem:[#allocation5 + $0x178] sm:$0xff]
        %v289 = vld [vmem:[#allocation5 + $0x180] sm:$0xff]
        %v290 = vld [vmem:[#allocation5 + $0x188] sm:$0xf]
        %v291 = vld [vmem:[#allocation5 + $0x18c] sm:$0xff]
        %v292 = vld [vmem:[#allocation5 + $0x194] sm:$0xff]
        %v293 = vld [vmem:[#allocation5 + $0x19c] sm:$0xff]
        %v294 = vld [vmem:[#allocation5 + $0x1a4] sm:$0xff]
        %v295 = vld [vmem:[#allocation5 + $0x1ac] sm:$0xf]
        %v296 = vld [vmem:[#allocation5 + $0x1b0] sm:$0xff]
        %v297 = vld [vmem:[#allocation5 + $0x1b8] sm:$0xff]
        %v298 = vld [vmem:[#allocation5 + $0x1c0] sm:$0xff]
        %v299 = vld [vmem:[#allocation5 + $0x1c8] sm:$0xff]
        %v300 = vld [vmem:[#allocation5 + $0x1d0] sm:$0xf]
        %v301 = vld [vmem:[#allocation5 + $0x1d4] sm:$0xff]
        %v302 = vld [vmem:[#allocation5 + $0x1dc] sm:$0xff]
        %v303 = vld [vmem:[#allocation5 + $0x1e4] sm:$0xff]
        %v304 = vld [vmem:[#allocation5 + $0x1ec] sm:$0xff]
        %v305 = vld [vmem:[#allocation5 + $0x1f4] sm:$0xf]
        %v306 = vld [vmem:[#allocation5 + $0x1f8] sm:$0xff]
        %v307 = vld [vmem:[#allocation5 + $0x200] sm:$0xff]
        %v308 = vld [vmem:[#allocation5 + $0x208] sm:$0xff]
        %v309 = vld [vmem:[#allocation5 + $0x210] sm:$0xff]
        %v310 = vld [vmem:[#allocation5 + $0x218] sm:$0xf]
        %v311 = vld [vmem:[#allocation5 + $0x21c] sm:$0xff]
        %v312 = vld [vmem:[#allocation5 + $0x224] sm:$0xff]
        %v313 = vld [vmem:[#allocation5 + $0x22c] sm:$0xff]
        %v314 = vld [vmem:[#allocation5 + $0x234] sm:$0xff]
        %v315 = vld [vmem:[#allocation5 + $0x23c] sm:$0xf]
        %v316 = vld [vmem:[#allocation5 + $0x240] sm:$0xff]
        %v317 = vld [vmem:[#allocation5 + $0x248] sm:$0xff]
        %v318 = vld [vmem:[#allocation5 + $0x250] sm:$0xff]
        %v319 = vld [vmem:[#allocation5 + $0x258] sm:$0xff]
        %v320 = vld [vmem:[#allocation5 + $0x260] sm:$0xf]
        %v321 = vld [vmem:[#allocation5 + $0x264] sm:$0xff]
        %v322 = vld [vmem:[#allocation5 + $0x26c] sm:$0xff]
        %v323 = vld [vmem:[#allocation5 + $0x274] sm:$0xff]
        %v324 = vld [vmem:[#allocation5 + $0x27c] sm:$0xff]
        %v325 = vld [vmem:[#allocation5 + $0x284] sm:$0xf]
        %v326 = vld [vmem:[#allocation5 + $0x288] sm:$0xff]
        %v327 = vld [vmem:[#allocation5 + $0x290] sm:$0xff]
        %v328 = vld [vmem:[#allocation5 + $0x298] sm:$0xff]
        %v329 = vld [vmem:[#allocation5 + $0x2a0] sm:$0xff]
        %v330 = vld [vmem:[#allocation5 + $0x2a8] sm:$0xf]
        %v331 = vld [vmem:[#allocation5 + $0x2ac] sm:$0xff]
        %v332 = vld [vmem:[#allocation5 + $0x2b4] sm:$0xff]
        %v333 = vld [vmem:[#allocation5 + $0x2bc] sm:$0xff]
        %v334 = vld [vmem:[#allocation5 + $0x2c4] sm:$0xff]
        %v335 = vld [vmem:[#allocation5 + $0x2cc] sm:$0xf]
        %v336 = vld [vmem:[#allocation5 + $0x2d0] sm:$0xff]
        %v337 = vld [vmem:[#allocation5 + $0x2d8] sm:$0xff]
        %v338 = vld [vmem:[#allocation5 + $0x2e0] sm:$0xff]
        %v339 = vld [vmem:[#allocation5 + $0x2e8] sm:$0xff]
        %v340 = vld [vmem:[#allocation5 + $0x2f0] sm:$0xf]
        %v341 = vld [vmem:[#allocation5 + $0x2f4] sm:$0xff]
        %v342 = vld [vmem:[#allocation5 + $0x2fc] sm:$0xff]
        %v343 = vld [vmem:[#allocation5 + $0x304] sm:$0xff]
        %v344 = vld [vmem:[#allocation5 + $0x30c] sm:$0xff]
        %v345 = vld [vmem:[#allocation5 + $0x314] sm:$0xf]
        %v346 = vld [vmem:[#allocation5 + $0x318] sm:$0xff]
        %v347 = vld [vmem:[#allocation5 + $0x320] sm:$0xff]
        %v348 = vld [vmem:[#allocation5 + $0x328] sm:$0xff]
        %v349 = vld [vmem:[#allocation5 + $0x330] sm:$0xff]
        %v350 = vld [vmem:[#allocation5 + $0x338] sm:$0xf]
        %v351 = vld [vmem:[#allocation5 + $0x33c] sm:$0xff]
        %v352 = vld [vmem:[#allocation5 + $0x344] sm:$0xff]
        %v353 = vld [vmem:[#allocation5 + $0x34c] sm:$0xff]
        %v354 = vld [vmem:[#allocation5 + $0x354] sm:$0xff]
        %v355 = vld [vmem:[#allocation5 + $0x35c] sm:$0xf]
        %v356 = vld [vmem:[#allocation5 + $0x360] sm:$0xff]
        %v357 = vld [vmem:[#allocation5 + $0x368] sm:$0xff]
        %v358 = vld [vmem:[#allocation5 + $0x370] sm:$0xff]
        %v359 = vld [vmem:[#allocation5 + $0x378] sm:$0xff]
        %v360 = vld [vmem:[#allocation5 + $0x380] sm:$0xf]
        %v361 = vld [vmem:[#allocation5 + $0x384] sm:$0xff]
        %v362 = vld [vmem:[#allocation5 + $0x38c] sm:$0xff]
        %v363 = vld [vmem:[#allocation5 + $0x394] sm:$0xff]
        %v364 = vld [vmem:[#allocation5 + $0x39c] sm:$0xff]
        %v365 = vld [vmem:[#allocation5 + $0x3a4] sm:$0xf]
        %v366 = vld [vmem:[#allocation5 + $0x3a8] sm:$0xff]
        %v367 = vld [vmem:[#allocation5 + $0x3b0] sm:$0xff]
        %v368 = vld [vmem:[#allocation5 + $0x3b8] sm:$0xff]
        %v369 = vld [vmem:[#allocation5 + $0x3c0] sm:$0xff]
        %v370 = vld [vmem:[#allocation5 + $0x3c8] sm:$0xf]
        %v371 = vld [vmem:[#allocation5 + $0x3cc] sm:$0xff]
        %v372 = vld [vmem:[#allocation5 + $0x3d4] sm:$0xff]
        %v373 = vld [vmem:[#allocation5 + $0x3dc] sm:$0xff]
        %v374 = vld [vmem:[#allocation5 + $0x3e4] sm:$0xff]
        %v375 = vld [vmem:[#allocation5 + $0x3ec] sm:$0xf]
        %v376 = vld [vmem:[#allocation5 + $0x3f0] sm:$0xff]
        %v377 = vld [vmem:[#allocation5 + $0x3f8] sm:$0xff]
        %v378 = vld [vmem:[#allocation5 + $0x400] sm:$0xff]
        %v379 = vld [vmem:[#allocation5 + $0x408] sm:$0xff]
        %v380 = vld [vmem:[#allocation5 + $0x410] sm:$0xf]
        %v381 = vld [vmem:[#allocation5 + $0x414] sm:$0xff]
        %v382 = vld [vmem:[#allocation5 + $0x41c] sm:$0xff]
        %v383 = vld [vmem:[#allocation5 + $0x424] sm:$0xff]
        %v384 = vld [vmem:[#allocation5 + $0x42c] sm:$0xff]
        %v385 = vld [vmem:[#allocation5 + $0x434] sm:$0xf]
        %v386 = vld [vmem:[#allocation5 + $0x438] sm:$0xff]
        %v387 = vld [vmem:[#allocation5 + $0x440] sm:$0xff]
        %v388 = vld [vmem:[#allocation5 + $0x448] sm:$0xff]
        %v389 = vld [vmem:[#allocation5 + $0x450] sm:$0xff]
        %v390 = vld [vmem:[#allocation5 + $0x458] sm:$0xf]
        %v391 = vld [vmem:[#allocation5 + $0x45c] sm:$0xff]
        %v392 = vld [vmem:[#allocation5 + $0x464] sm:$0xff]
        %v393 = vld [vmem:[#allocation5 + $0x46c] sm:$0xff]
        %v394 = vld [vmem:[#allocation5 + $0x474] sm:$0xff]
        %v395 = vld [vmem:[#allocation5 + $0x47c] sm:$0xf]
        %v396 = vld [vmem:[%s204] sm:$0xf]
        %v397 = vld [vmem:[%s204 + $0x4] sm:$0xf]
        %v398 = vld [vmem:[%s204 + $0x8] sm:$0xf]
        %v399 = vld [vmem:[%s204 + $0xc] sm:$0xf]
        %v400 = vld [vmem:[%s204 + $0x10] sm:$0xf]
        %v401 = vld [vmem:[%s204 + $0x14] sm:$0xf]
        %v402 = vld [vmem:[%s204 + $0x18] sm:$0xf]
        %v403 = vld [vmem:[%s204 + $0x1c] sm:$0xf]
        %v404 = vld [vmem:[%s204 + $0x20] sm:$0xf]
        %v405 = vld [vmem:[%s204 + $0x24] sm:$0xf]
        %v406 = vld [vmem:[%s204 + $0x28] sm:$0xf]
        %v407 = vld [vmem:[%s204 + $0x2c] sm:$0xf]
        %v408 = vld [vmem:[%s204 + $0x30] sm:$0xf]
        %v409 = vld [vmem:[%s204 + $0x34] sm:$0xf]
        %v410 = vld [vmem:[%s204 + $0x38] sm:$0xf]
        %v411 = vld [vmem:[%s204 + $0x3c] sm:$0xf]
        %v412 = vld [vmem:[%s204 + $0x40] sm:$0xf]
        %v413 = vld [vmem:[%s204 + $0x44] sm:$0xf]
        %v414 = vld [vmem:[%s204 + $0x48] sm:$0xf]
        %v415 = vld [vmem:[%s204 + $0x4c] sm:$0xf]
        %v416 = vld [vmem:[%s204 + $0x50] sm:$0xf]
        %v417 = vld [vmem:[%s204 + $0x54] sm:$0xf]
        %v418 = vld [vmem:[%s204 + $0x58] sm:$0xf]
        %v419 = vld [vmem:[%s204 + $0x5c] sm:$0xf]
        %v420 = vld [vmem:[%s204 + $0x60] sm:$0xf]
        %v421 = vld [vmem:[%s204 + $0x64] sm:$0xf]
        %v422 = vld [vmem:[%s204 + $0x68] sm:$0xf]
        %v423 = vld [vmem:[%s204 + $0x6c] sm:$0xf]
        %v424 = vld [vmem:[%s204 + $0x70] sm:$0xf]
        %v425 = vld [vmem:[%s204 + $0x74] sm:$0xf]
        %v426 = vld [vmem:[%s204 + $0x78] sm:$0xf]
        %v427 = vld [vmem:[%s204 + $0x7c] sm:$0xf]
        %v428 = vld [vmem:[%s204 + $0x80] sm:$0xf]
        %v429 = vld [vmem:[%s204 + $0x84] sm:$0xf]
        %v430 = vld [vmem:[%s204 + $0x88] sm:$0xf]
        %v431 = vld [vmem:[%s204 + $0x8c] sm:$0xf]
        %v432 = vld [vmem:[%s204 + $0x90] sm:$0xf]
        %v433 = vld [vmem:[%s204 + $0x94] sm:$0xf]
        %v434 = vld [vmem:[%s204 + $0x98] sm:$0xf]
        %v435 = vld [vmem:[%s204 + $0x9c] sm:$0xf]
        %v436 = vld [vmem:[%s204 + $0xa0] sm:$0xf]
        %v437 = vld [vmem:[%s204 + $0xa4] sm:$0xf]
        %v438 = vld [vmem:[%s204 + $0xa8] sm:$0xf]
        %v439 = vld [vmem:[%s204 + $0xac] sm:$0xf]
        %v440 = vld [vmem:[%s204 + $0xb0] sm:$0xf]
        %v441 = vld [vmem:[%s204 + $0xb4] sm:$0xf]
        %v442 = vld [vmem:[%s204 + $0xb8] sm:$0xf]
        %v443 = vld [vmem:[%s204 + $0xbc] sm:$0xf]
        %v444 = vld [vmem:[%s204 + $0xc0] sm:$0xf]
        %v445 = vld [vmem:[%s204 + $0xc4] sm:$0xf]
        %v446 = vld [vmem:[%s204 + $0xc8] sm:$0xf]
        %v447 = vld [vmem:[%s204 + $0xcc] sm:$0xf]
        %v448 = vld [vmem:[%s204 + $0xd0] sm:$0xf]
        %v449 = vld [vmem:[%s204 + $0xd4] sm:$0xf]
        %v450 = vld [vmem:[%s204 + $0xd8] sm:$0xf]
        %v451 = vld [vmem:[%s204 + $0xdc] sm:$0xf]
        %v452 = vld [vmem:[%s204 + $0xe0] sm:$0xf]
        %v453 = vld [vmem:[%s204 + $0xe4] sm:$0xf]
        %v454 = vld [vmem:[%s204 + $0xe8] sm:$0xf]
        %v455 = vld [vmem:[%s204 + $0xec] sm:$0xf]
        %v456 = vld [vmem:[%s204 + $0xf0] sm:$0xf]
        %v457 = vld [vmem:[%s204 + $0xf4] sm:$0xf]
        %v458 = vld [vmem:[%s204 + $0xf8] sm:$0xf]
        %v459 = vld [vmem:[%s204 + $0xfc] sm:$0xf]
        %v460 = vld [vmem:[%s204 + $0x100] sm:$0xf]
        %v461 = vld [vmem:[%s204 + $0x104] sm:$0xf]
        %v462 = vld [vmem:[%s204 + $0x108] sm:$0xf]
        %v463 = vld [vmem:[%s204 + $0x10c] sm:$0xf]
        %v464 = vld [vmem:[%s204 + $0x110] sm:$0xf]
        %v465 = vld [vmem:[%s204 + $0x114] sm:$0xf]
        %v466 = vld [vmem:[%s204 + $0x118] sm:$0xf]
        %v467 = vld [vmem:[%s204 + $0x11c] sm:$0xf]
        %v468 = vld [vmem:[%s204 + $0x120] sm:$0xf]
        %v469 = vld [vmem:[%s204 + $0x124] sm:$0xf]
        %v470 = vld [vmem:[%s204 + $0x128] sm:$0xf]
        %v471 = vld [vmem:[%s204 + $0x12c] sm:$0xf]
        %v472 = vld [vmem:[%s204 + $0x130] sm:$0xf]
        %v473 = vld [vmem:[%s204 + $0x134] sm:$0xf]
        %v474 = vld [vmem:[%s204 + $0x138] sm:$0xf]
        %v475 = vld [vmem:[%s204 + $0x13c] sm:$0xf]
        %v476 = vld [vmem:[%s204 + $0x140] sm:$0xf]
        %v477 = vld [vmem:[%s204 + $0x144] sm:$0xf]
        %v478 = vld [vmem:[%s204 + $0x148] sm:$0xf]
        %v479 = vld [vmem:[%s204 + $0x14c] sm:$0xf]
        %v480 = vld [vmem:[%s204 + $0x150] sm:$0xf]
        %v481 = vld [vmem:[%s204 + $0x154] sm:$0xf]
        %v482 = vld [vmem:[%s204 + $0x158] sm:$0xf]
        %v483 = vld [vmem:[%s204 + $0x15c] sm:$0xf]
        %v484 = vld [vmem:[%s204 + $0x160] sm:$0xf]
        %v485 = vld [vmem:[%s204 + $0x164] sm:$0xf]
        %v486 = vld [vmem:[%s204 + $0x168] sm:$0xf]
        %v487 = vld [vmem:[%s204 + $0x16c] sm:$0xf]
        %v488 = vld [vmem:[%s204 + $0x170] sm:$0xf]
        %v489 = vld [vmem:[%s204 + $0x174] sm:$0xf]
        %v490 = vld [vmem:[%s204 + $0x178] sm:$0xf]
        %v491 = vld [vmem:[%s204 + $0x17c] sm:$0xf]
        %v492 = vld [vmem:[%s204 + $0x180] sm:$0xf]
        %v493 = vld [vmem:[%s204 + $0x184] sm:$0xf]
        %v494 = vld [vmem:[%s204 + $0x188] sm:$0xf]
        %v495 = vld [vmem:[%s204 + $0x18c] sm:$0xf]
        %v496 = vld [vmem:[%s204 + $0x190] sm:$0xf]
        %v497 = vld [vmem:[%s204 + $0x194] sm:$0xf]
        %v498 = vld [vmem:[%s204 + $0x198] sm:$0xf]
        %v499 = vld [vmem:[%s204 + $0x19c] sm:$0xf]
        %v500 = vld [vmem:[%s204 + $0x1a0] sm:$0xf]
        %v501 = vld [vmem:[%s204 + $0x1a4] sm:$0xf]
        %v502 = vld [vmem:[%s204 + $0x1a8] sm:$0xf]
        %v503 = vld [vmem:[%s204 + $0x1ac] sm:$0xf]
        %v504 = vld [vmem:[%s204 + $0x1b0] sm:$0xf]
        %v505 = vld [vmem:[%s204 + $0x1b4] sm:$0xf]
        %v506 = vld [vmem:[%s204 + $0x1b8] sm:$0xf]
        %v507 = vld [vmem:[%s204 + $0x1bc] sm:$0xf]
        %v508 = vld [vmem:[%s204 + $0x1c0] sm:$0xf]
        %v509 = vld [vmem:[%s204 + $0x1c4] sm:$0xf]
        %v510 = vld [vmem:[%s204 + $0x1c8] sm:$0xf]
        %v511 = vld [vmem:[%s204 + $0x1cc] sm:$0xf]
        %v512 = vld [vmem:[%s204 + $0x1d0] sm:$0xf]
        %v513 = vld [vmem:[%s204 + $0x1d4] sm:$0xf]
        %v514 = vld [vmem:[%s204 + $0x1d8] sm:$0xf]
        %v515 = vld [vmem:[%s204 + $0x1dc] sm:$0xf]
        %v516 = vld [vmem:[%s204 + $0x1e0] sm:$0xf]
        %v517 = vld [vmem:[%s204 + $0x1e4] sm:$0xf]
        %v518 = vld [vmem:[%s204 + $0x1e8] sm:$0xf]
        %v519 = vld [vmem:[%s204 + $0x1ec] sm:$0xf]
        %v520 = vld [vmem:[%s204 + $0x1f0] sm:$0xf]
        %v521 = vld [vmem:[%s204 + $0x1f4] sm:$0xf]
        %v522 = vld [vmem:[%s204 + $0x1f8] sm:$0xf]
        %v523 = vld [vmem:[%s204 + $0x1fc] sm:$0xf]
        %v524 = vld [vmem:[%s204 + $0x200] sm:$0xf]
        %v525 = vld [vmem:[%s204 + $0x204] sm:$0xf]
        %v526 = vld [vmem:[%s204 + $0x208] sm:$0xf]
        %v527 = vld [vmem:[%s204 + $0x20c] sm:$0xf]
        %v528 = vld [vmem:[%s204 + $0x210] sm:$0xf]
        %v529 = vld [vmem:[%s204 + $0x214] sm:$0xf]
        %v530 = vld [vmem:[%s204 + $0x218] sm:$0xf]
        %v531 = vld [vmem:[%s204 + $0x21c] sm:$0xf]
        %v532 = vld [vmem:[%s204 + $0x220] sm:$0xf]
        %v533 = vld [vmem:[%s204 + $0x224] sm:$0xf]
        %v534 = vld [vmem:[%s204 + $0x228] sm:$0xf]
        %v535 = vld [vmem:[%s204 + $0x22c] sm:$0xf]
        %v536 = vld [vmem:[%s204 + $0x230] sm:$0xf]
        %v537 = vld [vmem:[%s204 + $0x234] sm:$0xf]
        %v538 = vld [vmem:[%s204 + $0x238] sm:$0xf]
        %v539 = vld [vmem:[%s204 + $0x23c] sm:$0xf]
        %v540 = vld [vmem:[#allocation7] sm:$0xff]
        %v541 = vld [vmem:[#allocation7 + $0x8] sm:$0xff]
        %v542 = vld [vmem:[#allocation7 + $0x10] sm:$0xff]
        %v543 = vld [vmem:[#allocation7 + $0x18] sm:$0xff]
        %v544 = vld [vmem:[#allocation7 + $0x20] sm:$0xff]
        %v545 = vld [vmem:[#allocation7 + $0x28] sm:$0xff]
        %v546 = vld [vmem:[#allocation7 + $0x30] sm:$0xff]
        %v547 = vld [vmem:[#allocation7 + $0x38] sm:$0xff]
        %v548 = vld [vmem:[#allocation7 + $0x40] sm:$0xff]
        %v549 = vld [vmem:[#allocation7 + $0x48] sm:$0xff]
        %v550 = vld [vmem:[#allocation7 + $0x50] sm:$0xff]
        %v551 = vld [vmem:[#allocation7 + $0x58] sm:$0xff]
        %v552 = vld [vmem:[#allocation7 + $0x60] sm:$0xff]
        %v553 = vld [vmem:[#allocation7 + $0x68] sm:$0xff]
        %v554 = vld [vmem:[#allocation7 + $0x70] sm:$0xff]
        %v555 = vld [vmem:[#allocation7 + $0x78] sm:$0xff]
        %v556 = vld [vmem:[#allocation7 + $0x80] sm:$0xff]
        %v557 = vld [vmem:[#allocation7 + $0x88] sm:$0xff]
        %v558 = vld [vmem:[#allocation7 + $0x90] sm:$0xff]
        %v559 = vld [vmem:[#allocation7 + $0x98] sm:$0xff]
        %v560 = vld [vmem:[#allocation7 + $0xa0] sm:$0xff]
        %v561 = vld [vmem:[#allocation7 + $0xa8] sm:$0xff]
        %v562 = vld [vmem:[#allocation7 + $0xb0] sm:$0xff]
        %v563 = vld [vmem:[#allocation7 + $0xb8] sm:$0xff]
        %v564 = vld [vmem:[#allocation7 + $0xc0] sm:$0xff]
        %v565 = vld [vmem:[#allocation7 + $0xc8] sm:$0xff]
        %v566 = vld [vmem:[#allocation7 + $0xd0] sm:$0xff]
        %v567 = vld [vmem:[#allocation7 + $0xd8] sm:$0xff]
        %v568 = vld [vmem:[#allocation7 + $0xe0] sm:$0xff]
        %v569 = vld [vmem:[#allocation7 + $0xe8] sm:$0xff]
        %v570 = vld [vmem:[#allocation7 + $0xf0] sm:$0xff]
        %v571 = vld [vmem:[#allocation7 + $0xf8] sm:$0xff]
        %573 = vset.pattern.permute.xlu0 0
        %574 = vperm.xlu0 %573, %v540
        %v575 = vpop.permute.xlu0 %574
        %578 = vset.pattern.permute.xlu0 0
        %579 = vperm.xlu0 %578, %v541
        %v580 = vpop.permute.xlu0 %579
        %583 = vset.pattern.permute.xlu0 0
        %584 = vperm.xlu0 %583, %v542
        %v585 = vpop.permute.xlu0 %584
        %588 = vset.pattern.permute.xlu0 0
        %589 = vperm.xlu0 %588, %v543
        %v590 = vpop.permute.xlu0 %589
        %593 = vset.pattern.permute.xlu0 0
        %594 = vperm.xlu0 %593, %v544
        %v595 = vpop.permute.xlu0 %594
        %598 = vset.pattern.permute.xlu0 0
        %599 = vperm.xlu0 %598, %v545
        %v600 = vpop.permute.xlu0 %599
        %603 = vset.pattern.permute.xlu0 0
        %604 = vperm.xlu0 %603, %v546
        %v605 = vpop.permute.xlu0 %604
        %608 = vset.pattern.permute.xlu0 0
        %609 = vperm.xlu0 %608, %v547
        %v610 = vpop.permute.xlu0 %609
        %613 = vset.pattern.permute.xlu0 0
        %614 = vperm.xlu0 %613, %v548
        %v615 = vpop.permute.xlu0 %614
        %618 = vset.pattern.permute.xlu0 0
        %619 = vperm.xlu0 %618, %v549
        %v620 = vpop.permute.xlu0 %619
        %623 = vset.pattern.permute.xlu0 0
        %624 = vperm.xlu0 %623, %v550
        %v625 = vpop.permute.xlu0 %624
        %628 = vset.pattern.permute.xlu0 0
        %629 = vperm.xlu0 %628, %v551
        %v630 = vpop.permute.xlu0 %629
        %633 = vset.pattern.permute.xlu0 0
        %634 = vperm.xlu0 %633, %v552
        %v635 = vpop.permute.xlu0 %634
        %638 = vset.pattern.permute.xlu0 0
        %639 = vperm.xlu0 %638, %v553
        %v640 = vpop.permute.xlu0 %639
        %643 = vset.pattern.permute.xlu0 0
        %644 = vperm.xlu0 %643, %v554
        %v645 = vpop.permute.xlu0 %644
        %648 = vset.pattern.permute.xlu0 0
        %649 = vperm.xlu0 %648, %v555
        %v650 = vpop.permute.xlu0 %649
        %653 = vset.pattern.permute.xlu0 0
        %654 = vperm.xlu0 %653, %v556
        %v655 = vpop.permute.xlu0 %654
        %658 = vset.pattern.permute.xlu0 0
        %659 = vperm.xlu0 %658, %v557
        %v660 = vpop.permute.xlu0 %659
        %663 = vset.pattern.permute.xlu0 0
        %664 = vperm.xlu0 %663, %v558
        %v665 = vpop.permute.xlu0 %664
        %668 = vset.pattern.permute.xlu0 0
        %669 = vperm.xlu0 %668, %v559
        %v670 = vpop.permute.xlu0 %669
        %673 = vset.pattern.permute.xlu0 0
        %674 = vperm.xlu0 %673, %v560
        %v675 = vpop.permute.xlu0 %674
        %678 = vset.pattern.permute.xlu0 0
        %679 = vperm.xlu0 %678, %v561
        %v680 = vpop.permute.xlu0 %679
        %683 = vset.pattern.permute.xlu0 0
        %684 = vperm.xlu0 %683, %v562
        %v685 = vpop.permute.xlu0 %684
        %688 = vset.pattern.permute.xlu0 0
        %689 = vperm.xlu0 %688, %v563
        %v690 = vpop.permute.xlu0 %689
        %693 = vset.pattern.permute.xlu0 0
        %694 = vperm.xlu0 %693, %v564
        %v695 = vpop.permute.xlu0 %694
        %698 = vset.pattern.permute.xlu0 0
        %699 = vperm.xlu0 %698, %v565
        %v700 = vpop.permute.xlu0 %699
        %703 = vset.pattern.permute.xlu0 0
        %704 = vperm.xlu0 %703, %v566
        %v705 = vpop.permute.xlu0 %704
        %708 = vset.pattern.permute.xlu0 0
        %709 = vperm.xlu0 %708, %v567
        %v710 = vpop.permute.xlu0 %709
        %713 = vset.pattern.permute.xlu0 0
        %714 = vperm.xlu0 %713, %v568
        %v715 = vpop.permute.xlu0 %714
        %718 = vset.pattern.permute.xlu0 0
        %719 = vperm.xlu0 %718, %v569
        %v720 = vpop.permute.xlu0 %719
        %723 = vset.pattern.permute.xlu0 0
        %724 = vperm.xlu0 %723, %v570
        %v725 = vpop.permute.xlu0 %724
        %728 = vset.pattern.permute.xlu0 0
        %729 = vperm.xlu0 %728, %v571
        %v730 = vpop.permute.xlu0 %729
        %v892 = vunpack.c.l.b16 %v236
        %v893 = vunpack.c.h.b16 %v236
        %v894 = vunpack.c.l.b16 %v237
        %v895 = vunpack.c.h.b16 %v237
        %v896 = vunpack.c.l.b16 %v238
        %v897 = vunpack.c.h.b16 %v238
        %v898 = vunpack.c.l.b16 %v239
        %v899 = vunpack.c.h.b16 %v239
        %v900 = vunpack.c.l.b16 %v240
        %v901 = vunpack.c.l.b16 %v241
        %v902 = vunpack.c.h.b16 %v241
        %v903 = vunpack.c.l.b16 %v242
        %v904 = vunpack.c.h.b16 %v242
        %v905 = vunpack.c.l.b16 %v243
        %v906 = vunpack.c.h.b16 %v243
        %v907 = vunpack.c.l.b16 %v244
        %v908 = vunpack.c.h.b16 %v244
        %v909 = vunpack.c.l.b16 %v245
        %v910 = vunpack.c.l.b16 %v246
        %v911 = vunpack.c.h.b16 %v246
        %v912 = vunpack.c.l.b16 %v247
        %v913 = vunpack.c.h.b16 %v247
        %v914 = vunpack.c.l.b16 %v248
        %v915 = vunpack.c.h.b16 %v248
        %v916 = vunpack.c.l.b16 %v249
        %v917 = vunpack.c.h.b16 %v249
        %v918 = vunpack.c.l.b16 %v250
        %v919 = vunpack.c.l.b16 %v251
        %v920 = vunpack.c.h.b16 %v251
        %v921 = vunpack.c.l.b16 %v252
        %v922 = vunpack.c.h.b16 %v252
        %v923 = vunpack.c.l.b16 %v253
        %v924 = vunpack.c.h.b16 %v253
        %v925 = vunpack.c.l.b16 %v254
        %v926 = vunpack.c.h.b16 %v254
        %v927 = vunpack.c.l.b16 %v255
        %v928 = vunpack.c.l.b16 %v256
        %v929 = vunpack.c.h.b16 %v256
        %v930 = vunpack.c.l.b16 %v257
        %v931 = vunpack.c.h.b16 %v257
        %v932 = vunpack.c.l.b16 %v258
        %v933 = vunpack.c.h.b16 %v258
        %v934 = vunpack.c.l.b16 %v259
        %v935 = vunpack.c.h.b16 %v259
        %v936 = vunpack.c.l.b16 %v260
        %v937 = vunpack.c.l.b16 %v261
        %v938 = vunpack.c.h.b16 %v261
        %v939 = vunpack.c.l.b16 %v262
        %v940 = vunpack.c.h.b16 %v262
        %v941 = vunpack.c.l.b16 %v263
        %v942 = vunpack.c.h.b16 %v263
        %v943 = vunpack.c.l.b16 %v264
        %v944 = vunpack.c.h.b16 %v264
        %v945 = vunpack.c.l.b16 %v265
        %v946 = vunpack.c.l.b16 %v266
        %v947 = vunpack.c.h.b16 %v266
        %v948 = vunpack.c.l.b16 %v267
        %v949 = vunpack.c.h.b16 %v267
        %v950 = vunpack.c.l.b16 %v268
        %v951 = vunpack.c.h.b16 %v268
        %v952 = vunpack.c.l.b16 %v269
        %v953 = vunpack.c.h.b16 %v269
        %v954 = vunpack.c.l.b16 %v270
        %v955 = vunpack.c.l.b16 %v271
        %v956 = vunpack.c.h.b16 %v271
        %v957 = vunpack.c.l.b16 %v272
        %v958 = vunpack.c.h.b16 %v272
        %v959 = vunpack.c.l.b16 %v273
        %v960 = vunpack.c.h.b16 %v273
        %v961 = vunpack.c.l.b16 %v274
        %v962 = vunpack.c.h.b16 %v274
        %v963 = vunpack.c.l.b16 %v275
        %v964 = vunpack.c.l.b16 %v276
        %v965 = vunpack.c.h.b16 %v276
        %v966 = vunpack.c.l.b16 %v277
        %v967 = vunpack.c.h.b16 %v277
        %v968 = vunpack.c.l.b16 %v278
        %v969 = vunpack.c.h.b16 %v278
        %v970 = vunpack.c.l.b16 %v279
        %v971 = vunpack.c.h.b16 %v279
        %v972 = vunpack.c.l.b16 %v280
        %v973 = vunpack.c.l.b16 %v281
        %v974 = vunpack.c.h.b16 %v281
        %v975 = vunpack.c.l.b16 %v282
        %v976 = vunpack.c.h.b16 %v282
        %v977 = vunpack.c.l.b16 %v283
        %v978 = vunpack.c.h.b16 %v283
        %v979 = vunpack.c.l.b16 %v284
        %v980 = vunpack.c.h.b16 %v284
        %v981 = vunpack.c.l.b16 %v285
        %v982 = vunpack.c.l.b16 %v286
        %v983 = vunpack.c.h.b16 %v286
        %v984 = vunpack.c.l.b16 %v287
        %v985 = vunpack.c.h.b16 %v287
        %v986 = vunpack.c.l.b16 %v288
        %v987 = vunpack.c.h.b16 %v288
        %v988 = vunpack.c.l.b16 %v289
        %v989 = vunpack.c.h.b16 %v289
        %v990 = vunpack.c.l.b16 %v290
        %v991 = vunpack.c.l.b16 %v291
        %v992 = vunpack.c.h.b16 %v291
        %v993 = vunpack.c.l.b16 %v292
        %v994 = vunpack.c.h.b16 %v292
        %v995 = vunpack.c.l.b16 %v293
        %v996 = vunpack.c.h.b16 %v293
        %v997 = vunpack.c.l.b16 %v294
        %v998 = vunpack.c.h.b16 %v294
        %v999 = vunpack.c.l.b16 %v295
        %v1000 = vunpack.c.l.b16 %v296
        %v1001 = vunpack.c.h.b16 %v296
        %v1002 = vunpack.c.l.b16 %v297
        %v1003 = vunpack.c.h.b16 %v297
        %v1004 = vunpack.c.l.b16 %v298
        %v1005 = vunpack.c.h.b16 %v298
        %v1006 = vunpack.c.l.b16 %v299
        %v1007 = vunpack.c.h.b16 %v299
        %v1008 = vunpack.c.l.b16 %v300
        %v1009 = vunpack.c.l.b16 %v301
        %v1010 = vunpack.c.h.b16 %v301
        %v1011 = vunpack.c.l.b16 %v302
        %v1012 = vunpack.c.h.b16 %v302
        %v1013 = vunpack.c.l.b16 %v303
        %v1014 = vunpack.c.h.b16 %v303
        %v1015 = vunpack.c.l.b16 %v304
        %v1016 = vunpack.c.h.b16 %v304
        %v1017 = vunpack.c.l.b16 %v305
        %v1018 = vunpack.c.l.b16 %v306
        %v1019 = vunpack.c.h.b16 %v306
        %v1020 = vunpack.c.l.b16 %v307
        %v1021 = vunpack.c.h.b16 %v307
        %v1022 = vunpack.c.l.b16 %v308
        %v1023 = vunpack.c.h.b16 %v308
        %v1024 = vunpack.c.l.b16 %v309
        %v1025 = vunpack.c.h.b16 %v309
        %v1026 = vunpack.c.l.b16 %v310
        %v1027 = vunpack.c.l.b16 %v311
        %v1028 = vunpack.c.h.b16 %v311
        %v1029 = vunpack.c.l.b16 %v312
        %v1030 = vunpack.c.h.b16 %v312
        %v1031 = vunpack.c.l.b16 %v313
        %v1032 = vunpack.c.h.b16 %v313
        %v1033 = vunpack.c.l.b16 %v314
        %v1034 = vunpack.c.h.b16 %v314
        %v1035 = vunpack.c.l.b16 %v315
        %v1036 = vunpack.c.l.b16 %v316
        %v1037 = vunpack.c.h.b16 %v316
        %v1038 = vunpack.c.l.b16 %v317
        %v1039 = vunpack.c.h.b16 %v317
        %v1040 = vunpack.c.l.b16 %v318
        %v1041 = vunpack.c.h.b16 %v318
        %v1042 = vunpack.c.l.b16 %v319
        %v1043 = vunpack.c.h.b16 %v319
        %v1044 = vunpack.c.l.b16 %v320
        %v1045 = vunpack.c.l.b16 %v321
        %v1046 = vunpack.c.h.b16 %v321
        %v1047 = vunpack.c.l.b16 %v322
        %v1048 = vunpack.c.h.b16 %v322
        %v1049 = vunpack.c.l.b16 %v323
        %v1050 = vunpack.c.h.b16 %v323
        %v1051 = vunpack.c.l.b16 %v324
        %v1052 = vunpack.c.h.b16 %v324
        %v1053 = vunpack.c.l.b16 %v325
        %v1054 = vunpack.c.l.b16 %v326
        %v1055 = vunpack.c.h.b16 %v326
        %v1056 = vunpack.c.l.b16 %v327
        %v1057 = vunpack.c.h.b16 %v327
        %v1058 = vunpack.c.l.b16 %v328
        %v1059 = vunpack.c.h.b16 %v328
        %v1060 = vunpack.c.l.b16 %v329
        %v1061 = vunpack.c.h.b16 %v329
        %v1062 = vunpack.c.l.b16 %v330
        %v1063 = vunpack.c.l.b16 %v331
        %v1064 = vunpack.c.h.b16 %v331
        %v1065 = vunpack.c.l.b16 %v332
        %v1066 = vunpack.c.h.b16 %v332
        %v1067 = vunpack.c.l.b16 %v333
        %v1068 = vunpack.c.h.b16 %v333
        %v1069 = vunpack.c.l.b16 %v334
        %v1070 = vunpack.c.h.b16 %v334
        %v1071 = vunpack.c.l.b16 %v335
        %v1072 = vunpack.c.l.b16 %v336
        %v1073 = vunpack.c.h.b16 %v336
        %v1074 = vunpack.c.l.b16 %v337
        %v1075 = vunpack.c.h.b16 %v337
        %v1076 = vunpack.c.l.b16 %v338
        %v1077 = vunpack.c.h.b16 %v338
        %v1078 = vunpack.c.l.b16 %v339
        %v1079 = vunpack.c.h.b16 %v339
        %v1080 = vunpack.c.l.b16 %v340
        %v1081 = vunpack.c.l.b16 %v341
        %v1082 = vunpack.c.h.b16 %v341
        %v1083 = vunpack.c.l.b16 %v342
        %v1084 = vunpack.c.h.b16 %v342
        %v1085 = vunpack.c.l.b16 %v343
        %v1086 = vunpack.c.h.b16 %v343
        %v1087 = vunpack.c.l.b16 %v344
        %v1088 = vunpack.c.h.b16 %v344
        %v1089 = vunpack.c.l.b16 %v345
        %v1090 = vunpack.c.l.b16 %v346
        %v1091 = vunpack.c.h.b16 %v346
        %v1092 = vunpack.c.l.b16 %v347
        %v1093 = vunpack.c.h.b16 %v347
        %v1094 = vunpack.c.l.b16 %v348
        %v1095 = vunpack.c.h.b16 %v348
        %v1096 = vunpack.c.l.b16 %v349
        %v1097 = vunpack.c.h.b16 %v349
        %v1098 = vunpack.c.l.b16 %v350
        %v1099 = vunpack.c.l.b16 %v351
        %v1100 = vunpack.c.h.b16 %v351
        %v1101 = vunpack.c.l.b16 %v352
        %v1102 = vunpack.c.h.b16 %v352
        %v1103 = vunpack.c.l.b16 %v353
        %v1104 = vunpack.c.h.b16 %v353
        %v1105 = vunpack.c.l.b16 %v354
        %v1106 = vunpack.c.h.b16 %v354
        %v1107 = vunpack.c.l.b16 %v355
        %v1108 = vunpack.c.l.b16 %v356
        %v1109 = vunpack.c.h.b16 %v356
        %v1110 = vunpack.c.l.b16 %v357
        %v1111 = vunpack.c.h.b16 %v357
        %v1112 = vunpack.c.l.b16 %v358
        %v1113 = vunpack.c.h.b16 %v358
        %v1114 = vunpack.c.l.b16 %v359
        %v1115 = vunpack.c.h.b16 %v359
        %v1116 = vunpack.c.l.b16 %v360
        %v1117 = vunpack.c.l.b16 %v361
        %v1118 = vunpack.c.h.b16 %v361
        %v1119 = vunpack.c.l.b16 %v362
        %v1120 = vunpack.c.h.b16 %v362
        %v1121 = vunpack.c.l.b16 %v363
        %v1122 = vunpack.c.h.b16 %v363
        %v1123 = vunpack.c.l.b16 %v364
        %v1124 = vunpack.c.h.b16 %v364
        %v1125 = vunpack.c.l.b16 %v365
        %v1126 = vunpack.c.l.b16 %v366
        %v1127 = vunpack.c.h.b16 %v366
        %v1128 = vunpack.c.l.b16 %v367
        %v1129 = vunpack.c.h.b16 %v367
        %v1130 = vunpack.c.l.b16 %v368
        %v1131 = vunpack.c.h.b16 %v368
        %v1132 = vunpack.c.l.b16 %v369
        %v1133 = vunpack.c.h.b16 %v369
        %v1134 = vunpack.c.l.b16 %v370
        %v1135 = vunpack.c.l.b16 %v371
        %v1136 = vunpack.c.h.b16 %v371
        %v1137 = vunpack.c.l.b16 %v372
        %v1138 = vunpack.c.h.b16 %v372
        %v1139 = vunpack.c.l.b16 %v373
        %v1140 = vunpack.c.h.b16 %v373
        %v1141 = vunpack.c.l.b16 %v374
        %v1142 = vunpack.c.h.b16 %v374
        %v1143 = vunpack.c.l.b16 %v375
        %v1144 = vunpack.c.l.b16 %v376
        %v1145 = vunpack.c.h.b16 %v376
        %v1146 = vunpack.c.l.b16 %v377
        %v1147 = vunpack.c.h.b16 %v377
        %v1148 = vunpack.c.l.b16 %v378
        %v1149 = vunpack.c.h.b16 %v378
        %v1150 = vunpack.c.l.b16 %v379
        %v1151 = vunpack.c.h.b16 %v379
        %v1152 = vunpack.c.l.b16 %v380
        %v1153 = vunpack.c.l.b16 %v381
        %v1154 = vunpack.c.h.b16 %v381
        %v1155 = vunpack.c.l.b16 %v382
        %v1156 = vunpack.c.h.b16 %v382
        %v1157 = vunpack.c.l.b16 %v383
        %v1158 = vunpack.c.h.b16 %v383
        %v1159 = vunpack.c.l.b16 %v384
        %v1160 = vunpack.c.h.b16 %v384
        %v1161 = vunpack.c.l.b16 %v385
        %v1162 = vunpack.c.l.b16 %v386
        %v1163 = vunpack.c.h.b16 %v386
        %v1164 = vunpack.c.l.b16 %v387
        %v1165 = vunpack.c.h.b16 %v387
        %v1166 = vunpack.c.l.b16 %v388
        %v1167 = vunpack.c.h.b16 %v388
        %v1168 = vunpack.c.l.b16 %v389
        %v1169 = vunpack.c.h.b16 %v389
        %v1170 = vunpack.c.l.b16 %v390
        %v1171 = vunpack.c.l.b16 %v391
        %v1172 = vunpack.c.h.b16 %v391
        %v1173 = vunpack.c.l.b16 %v392
        %v1174 = vunpack.c.h.b16 %v392
        %v1175 = vunpack.c.l.b16 %v393
        %v1176 = vunpack.c.h.b16 %v393
        %v1177 = vunpack.c.l.b16 %v394
        %v1178 = vunpack.c.h.b16 %v394
        %v1179 = vunpack.c.l.b16 %v395
        %v1180 = vpack.c.b16 %v901, %v892
        %v1181 = vpack.c.b16 %v902, %v893
        %v1182 = vpack.c.b16 %v903, %v894
        %v1183 = vpack.c.b16 %v904, %v895
        %v1184 = vpack.c.b16 %v905, %v896
        %v1185 = vpack.c.b16 %v906, %v897
        %v1186 = vpack.c.b16 %v907, %v898
        %v1187 = vpack.c.b16 %v908, %v899
        %v1188 = vpack.c.b16 %v909, %v900
        %v1189 = vpack.c.b16 %v919, %v910
        %v1190 = vpack.c.b16 %v920, %v911
        %v1191 = vpack.c.b16 %v921, %v912
        %v1192 = vpack.c.b16 %v922, %v913
        %v1193 = vpack.c.b16 %v923, %v914
        %v1194 = vpack.c.b16 %v924, %v915
        %v1195 = vpack.c.b16 %v925, %v916
        %v1196 = vpack.c.b16 %v926, %v917
        %v1197 = vpack.c.b16 %v927, %v918
        %v1198 = vpack.c.b16 %v937, %v928
        %v1199 = vpack.c.b16 %v938, %v929
        %v1200 = vpack.c.b16 %v939, %v930
        %v1201 = vpack.c.b16 %v940, %v931
        %v1202 = vpack.c.b16 %v941, %v932
        %v1203 = vpack.c.b16 %v942, %v933
        %v1204 = vpack.c.b16 %v943, %v934
        %v1205 = vpack.c.b16 %v944, %v935
        %v1206 = vpack.c.b16 %v945, %v936
        %v1207 = vpack.c.b16 %v955, %v946
        %v1208 = vpack.c.b16 %v956, %v947
        %v1209 = vpack.c.b16 %v957, %v948
        %v1210 = vpack.c.b16 %v958, %v949
        %v1211 = vpack.c.b16 %v959, %v950
        %v1212 = vpack.c.b16 %v960, %v951
        %v1213 = vpack.c.b16 %v961, %v952
        %v1214 = vpack.c.b16 %v962, %v953
        %v1215 = vpack.c.b16 %v963, %v954
        %v1216 = vpack.c.b16 %v973, %v964
        %v1217 = vpack.c.b16 %v974, %v965
        %v1218 = vpack.c.b16 %v975, %v966
        %v1219 = vpack.c.b16 %v976, %v967
        %v1220 = vpack.c.b16 %v977, %v968
        %v1221 = vpack.c.b16 %v978, %v969
        %v1222 = vpack.c.b16 %v979, %v970
        %v1223 = vpack.c.b16 %v980, %v971
        %v1224 = vpack.c.b16 %v981, %v972
        %v1225 = vpack.c.b16 %v991, %v982
        %v1226 = vpack.c.b16 %v992, %v983
        %v1227 = vpack.c.b16 %v993, %v984
        %v1228 = vpack.c.b16 %v994, %v985
        %v1229 = vpack.c.b16 %v995, %v986
        %v1230 = vpack.c.b16 %v996, %v987
        %v1231 = vpack.c.b16 %v997, %v988
        %v1232 = vpack.c.b16 %v998, %v989
        %v1233 = vpack.c.b16 %v999, %v990
        %v1234 = vpack.c.b16 %v1009, %v1000
        %v1235 = vpack.c.b16 %v1010, %v1001
        %v1236 = vpack.c.b16 %v1011, %v1002
        %v1237 = vpack.c.b16 %v1012, %v1003
        %v1238 = vpack.c.b16 %v1013, %v1004
        %v1239 = vpack.c.b16 %v1014, %v1005
        %v1240 = vpack.c.b16 %v1015, %v1006
        %v1241 = vpack.c.b16 %v1016, %v1007
        %v1242 = vpack.c.b16 %v1017, %v1008
        %v1243 = vpack.c.b16 %v1027, %v1018
        %v1244 = vpack.c.b16 %v1028, %v1019
        %v1245 = vpack.c.b16 %v1029, %v1020
        %v1246 = vpack.c.b16 %v1030, %v1021
        %v1247 = vpack.c.b16 %v1031, %v1022
        %v1248 = vpack.c.b16 %v1032, %v1023
        %v1249 = vpack.c.b16 %v1033, %v1024
        %v1250 = vpack.c.b16 %v1034, %v1025
        %v1251 = vpack.c.b16 %v1035, %v1026
        %v1252 = vpack.c.b16 %v1045, %v1036
        %v1253 = vpack.c.b16 %v1046, %v1037
        %v1254 = vpack.c.b16 %v1047, %v1038
        %v1255 = vpack.c.b16 %v1048, %v1039
        %v1256 = vpack.c.b16 %v1049, %v1040
        %v1257 = vpack.c.b16 %v1050, %v1041
        %v1258 = vpack.c.b16 %v1051, %v1042
        %v1259 = vpack.c.b16 %v1052, %v1043
        %v1260 = vpack.c.b16 %v1053, %v1044
        %v1261 = vpack.c.b16 %v1063, %v1054
        %v1262 = vpack.c.b16 %v1064, %v1055
        %v1263 = vpack.c.b16 %v1065, %v1056
        %v1264 = vpack.c.b16 %v1066, %v1057
        %v1265 = vpack.c.b16 %v1067, %v1058
        %v1266 = vpack.c.b16 %v1068, %v1059
        %v1267 = vpack.c.b16 %v1069, %v1060
        %v1268 = vpack.c.b16 %v1070, %v1061
        %v1269 = vpack.c.b16 %v1071, %v1062
        %v1270 = vpack.c.b16 %v1081, %v1072
        %v1271 = vpack.c.b16 %v1082, %v1073
        %v1272 = vpack.c.b16 %v1083, %v1074
        %v1273 = vpack.c.b16 %v1084, %v1075
        %v1274 = vpack.c.b16 %v1085, %v1076
        %v1275 = vpack.c.b16 %v1086, %v1077
        %v1276 = vpack.c.b16 %v1087, %v1078
        %v1277 = vpack.c.b16 %v1088, %v1079
        %v1278 = vpack.c.b16 %v1089, %v1080
        %v1279 = vpack.c.b16 %v1099, %v1090
        %v1280 = vpack.c.b16 %v1100, %v1091
        %v1281 = vpack.c.b16 %v1101, %v1092
        %v1282 = vpack.c.b16 %v1102, %v1093
        %v1283 = vpack.c.b16 %v1103, %v1094
        %v1284 = vpack.c.b16 %v1104, %v1095
        %v1285 = vpack.c.b16 %v1105, %v1096
        %v1286 = vpack.c.b16 %v1106, %v1097
        %v1287 = vpack.c.b16 %v1107, %v1098
        %v1288 = vpack.c.b16 %v1117, %v1108
        %v1289 = vpack.c.b16 %v1118, %v1109
        %v1290 = vpack.c.b16 %v1119, %v1110
        %v1291 = vpack.c.b16 %v1120, %v1111
        %v1292 = vpack.c.b16 %v1121, %v1112
        %v1293 = vpack.c.b16 %v1122, %v1113
        %v1294 = vpack.c.b16 %v1123, %v1114
        %v1295 = vpack.c.b16 %v1124, %v1115
        %v1296 = vpack.c.b16 %v1125, %v1116
        %v1297 = vpack.c.b16 %v1135, %v1126
        %v1298 = vpack.c.b16 %v1136, %v1127
        %v1299 = vpack.c.b16 %v1137, %v1128
        %v1300 = vpack.c.b16 %v1138, %v1129
        %v1301 = vpack.c.b16 %v1139, %v1130
        %v1302 = vpack.c.b16 %v1140, %v1131
        %v1303 = vpack.c.b16 %v1141, %v1132
        %v1304 = vpack.c.b16 %v1142, %v1133
        %v1305 = vpack.c.b16 %v1143, %v1134
        %v1306 = vpack.c.b16 %v1153, %v1144
        %v1307 = vpack.c.b16 %v1154, %v1145
        %v1308 = vpack.c.b16 %v1155, %v1146
        %v1309 = vpack.c.b16 %v1156, %v1147
        %v1310 = vpack.c.b16 %v1157, %v1148
        %v1311 = vpack.c.b16 %v1158, %v1149
        %v1312 = vpack.c.b16 %v1159, %v1150
        %v1313 = vpack.c.b16 %v1160, %v1151
        %v1314 = vpack.c.b16 %v1161, %v1152
        %v1315 = vpack.c.b16 %v1171, %v1162
        %v1316 = vpack.c.b16 %v1172, %v1163
        %v1317 = vpack.c.b16 %v1173, %v1164
        %v1318 = vpack.c.b16 %v1174, %v1165
        %v1319 = vpack.c.b16 %v1175, %v1166
        %v1320 = vpack.c.b16 %v1176, %v1167
        %v1321 = vpack.c.b16 %v1177, %v1168
        %v1322 = vpack.c.b16 %v1178, %v1169
        %v1323 = vpack.c.b16 %v1179, %v1170
        %v1612 = vunpack.c.l.b16 %v396
        %v1613 = vunpack.c.l.b16 %v397
        %v1614 = vunpack.c.l.b16 %v398
        %v1615 = vunpack.c.l.b16 %v399
        %v1616 = vunpack.c.l.b16 %v400
        %v1617 = vunpack.c.l.b16 %v401
        %v1618 = vunpack.c.l.b16 %v402
        %v1619 = vunpack.c.l.b16 %v403
        %v1620 = vunpack.c.l.b16 %v404
        %v1621 = vunpack.c.l.b16 %v405
        %v1622 = vunpack.c.l.b16 %v406
        %v1623 = vunpack.c.l.b16 %v407
        %v1624 = vunpack.c.l.b16 %v408
        %v1625 = vunpack.c.l.b16 %v409
        %v1626 = vunpack.c.l.b16 %v410
        %v1627 = vunpack.c.l.b16 %v411
        %v1628 = vunpack.c.l.b16 %v412
        %v1629 = vunpack.c.l.b16 %v413
        %v1630 = vunpack.c.l.b16 %v414
        %v1631 = vunpack.c.l.b16 %v415
        %v1632 = vunpack.c.l.b16 %v416
        %v1633 = vunpack.c.l.b16 %v417
        %v1634 = vunpack.c.l.b16 %v418
        %v1635 = vunpack.c.l.b16 %v419
        %v1636 = vunpack.c.l.b16 %v420
        %v1637 = vunpack.c.l.b16 %v421
        %v1638 = vunpack.c.l.b16 %v422
        %v1639 = vunpack.c.l.b16 %v423
        %v1640 = vunpack.c.l.b16 %v424
        %v1641 = vunpack.c.l.b16 %v425
        %v1642 = vunpack.c.l.b16 %v426
        %v1643 = vunpack.c.l.b16 %v427
        %v1644 = vunpack.c.l.b16 %v428
        %v1645 = vunpack.c.l.b16 %v429
        %v1646 = vunpack.c.l.b16 %v430
        %v1647 = vunpack.c.l.b16 %v431
        %v1648 = vunpack.c.l.b16 %v432
        %v1649 = vunpack.c.l.b16 %v433
        %v1650 = vunpack.c.l.b16 %v434
        %v1651 = vunpack.c.l.b16 %v435
        %v1652 = vunpack.c.l.b16 %v436
        %v1653 = vunpack.c.l.b16 %v437
        %v1654 = vunpack.c.l.b16 %v438
        %v1655 = vunpack.c.l.b16 %v439
        %v1656 = vunpack.c.l.b16 %v440
        %v1657 = vunpack.c.l.b16 %v441
        %v1658 = vunpack.c.l.b16 %v442
        %v1659 = vunpack.c.l.b16 %v443
        %v1660 = vunpack.c.l.b16 %v444
        %v1661 = vunpack.c.l.b16 %v445
        %v1662 = vunpack.c.l.b16 %v446
        %v1663 = vunpack.c.l.b16 %v447
        %v1664 = vunpack.c.l.b16 %v448
        %v1665 = vunpack.c.l.b16 %v449
        %v1666 = vunpack.c.l.b16 %v450
        %v1667 = vunpack.c.l.b16 %v451
        %v1668 = vunpack.c.l.b16 %v452
        %v1669 = vunpack.c.l.b16 %v453
        %v1670 = vunpack.c.l.b16 %v454
        %v1671 = vunpack.c.l.b16 %v455
        %v1672 = vunpack.c.l.b16 %v456
        %v1673 = vunpack.c.l.b16 %v457
        %v1674 = vunpack.c.l.b16 %v458
        %v1675 = vunpack.c.l.b16 %v459
        %v1676 = vunpack.c.l.b16 %v460
        %v1677 = vunpack.c.l.b16 %v461
        %v1678 = vunpack.c.l.b16 %v462
        %v1679 = vunpack.c.l.b16 %v463
        %v1680 = vunpack.c.l.b16 %v464
        %v1681 = vunpack.c.l.b16 %v465
        %v1682 = vunpack.c.l.b16 %v466
        %v1683 = vunpack.c.l.b16 %v467
        %v1684 = vunpack.c.l.b16 %v468
        %v1685 = vunpack.c.l.b16 %v469
        %v1686 = vunpack.c.l.b16 %v470
        %v1687 = vunpack.c.l.b16 %v471
        %v1688 = vunpack.c.l.b16 %v472
        %v1689 = vunpack.c.l.b16 %v473
        %v1690 = vunpack.c.l.b16 %v474
        %v1691 = vunpack.c.l.b16 %v475
        %v1692 = vunpack.c.l.b16 %v476
        %v1693 = vunpack.c.l.b16 %v477
        %v1694 = vunpack.c.l.b16 %v478
        %v1695 = vunpack.c.l.b16 %v479
        %v1696 = vunpack.c.l.b16 %v480
        %v1697 = vunpack.c.l.b16 %v481
        %v1698 = vunpack.c.l.b16 %v482
        %v1699 = vunpack.c.l.b16 %v483
        %v1700 = vunpack.c.l.b16 %v484
        %v1701 = vunpack.c.l.b16 %v485
        %v1702 = vunpack.c.l.b16 %v486
        %v1703 = vunpack.c.l.b16 %v487
        %v1704 = vunpack.c.l.b16 %v488
        %v1705 = vunpack.c.l.b16 %v489
        %v1706 = vunpack.c.l.b16 %v490
        %v1707 = vunpack.c.l.b16 %v491
        %v1708 = vunpack.c.l.b16 %v492
        %v1709 = vunpack.c.l.b16 %v493
        %v1710 = vunpack.c.l.b16 %v494
        %v1711 = vunpack.c.l.b16 %v495
        %v1712 = vunpack.c.l.b16 %v496
        %v1713 = vunpack.c.l.b16 %v497
        %v1714 = vunpack.c.l.b16 %v498
        %v1715 = vunpack.c.l.b16 %v499
        %v1716 = vunpack.c.l.b16 %v500
        %v1717 = vunpack.c.l.b16 %v501
        %v1718 = vunpack.c.l.b16 %v502
        %v1719 = vunpack.c.l.b16 %v503
        %v1720 = vunpack.c.l.b16 %v504
        %v1721 = vunpack.c.l.b16 %v505
        %v1722 = vunpack.c.l.b16 %v506
        %v1723 = vunpack.c.l.b16 %v507
        %v1724 = vunpack.c.l.b16 %v508
        %v1725 = vunpack.c.l.b16 %v509
        %v1726 = vunpack.c.l.b16 %v510
        %v1727 = vunpack.c.l.b16 %v511
        %v1728 = vunpack.c.l.b16 %v512
        %v1729 = vunpack.c.l.b16 %v513
        %v1730 = vunpack.c.l.b16 %v514
        %v1731 = vunpack.c.l.b16 %v515
        %v1732 = vunpack.c.l.b16 %v516
        %v1733 = vunpack.c.l.b16 %v517
        %v1734 = vunpack.c.l.b16 %v518
        %v1735 = vunpack.c.l.b16 %v519
        %v1736 = vunpack.c.l.b16 %v520
        %v1737 = vunpack.c.l.b16 %v521
        %v1738 = vunpack.c.l.b16 %v522
        %v1739 = vunpack.c.l.b16 %v523
        %v1740 = vunpack.c.l.b16 %v524
        %v1741 = vunpack.c.l.b16 %v525
        %v1742 = vunpack.c.l.b16 %v526
        %v1743 = vunpack.c.l.b16 %v527
        %v1744 = vunpack.c.l.b16 %v528
        %v1745 = vunpack.c.l.b16 %v529
        %v1746 = vunpack.c.l.b16 %v530
        %v1747 = vunpack.c.l.b16 %v531
        %v1748 = vunpack.c.l.b16 %v532
        %v1749 = vunpack.c.l.b16 %v533
        %v1750 = vunpack.c.l.b16 %v534
        %v1751 = vunpack.c.l.b16 %v535
        %v1752 = vunpack.c.l.b16 %v536
        %v1753 = vunpack.c.l.b16 %v537
        %v1754 = vunpack.c.l.b16 %v538
        %v1755 = vunpack.c.l.b16 %v539
        %v1756 = vpack.c.b16 %v1613, %v1612
        %v1757 = vpack.c.b16 %v1615, %v1614
        %v1758 = vpack.c.b16 %v1617, %v1616
        %v1759 = vpack.c.b16 %v1619, %v1618
        %v1760 = vpack.c.b16 %v1621, %v1620
        %v1761 = vpack.c.b16 %v1623, %v1622
        %v1762 = vpack.c.b16 %v1625, %v1624
        %v1763 = vpack.c.b16 %v1627, %v1626
        %v1764 = vpack.c.b16 %v1629, %v1628
        %v1765 = vpack.c.b16 %v1631, %v1630
        %v1766 = vpack.c.b16 %v1633, %v1632
        %v1767 = vpack.c.b16 %v1635, %v1634
        %v1768 = vpack.c.b16 %v1637, %v1636
        %v1769 = vpack.c.b16 %v1639, %v1638
        %v1770 = vpack.c.b16 %v1641, %v1640
        %v1771 = vpack.c.b16 %v1643, %v1642
        %v1772 = vpack.c.b16 %v1645, %v1644
        %v1773 = vpack.c.b16 %v1647, %v1646
        %v1774 = vpack.c.b16 %v1649, %v1648
        %v1775 = vpack.c.b16 %v1651, %v1650
        %v1776 = vpack.c.b16 %v1653, %v1652
        %v1777 = vpack.c.b16 %v1655, %v1654
        %v1778 = vpack.c.b16 %v1657, %v1656
        %v1779 = vpack.c.b16 %v1659, %v1658
        %v1780 = vpack.c.b16 %v1661, %v1660
        %v1781 = vpack.c.b16 %v1663, %v1662
        %v1782 = vpack.c.b16 %v1665, %v1664
        %v1783 = vpack.c.b16 %v1667, %v1666
        %v1784 = vpack.c.b16 %v1669, %v1668
        %v1785 = vpack.c.b16 %v1671, %v1670
        %v1786 = vpack.c.b16 %v1673, %v1672
        %v1787 = vpack.c.b16 %v1675, %v1674
        %v1788 = vpack.c.b16 %v1677, %v1676
        %v1789 = vpack.c.b16 %v1679, %v1678
        %v1790 = vpack.c.b16 %v1681, %v1680
        %v1791 = vpack.c.b16 %v1683, %v1682
        %v1792 = vpack.c.b16 %v1685, %v1684
        %v1793 = vpack.c.b16 %v1687, %v1686
        %v1794 = vpack.c.b16 %v1689, %v1688
        %v1795 = vpack.c.b16 %v1691, %v1690
        %v1796 = vpack.c.b16 %v1693, %v1692
        %v1797 = vpack.c.b16 %v1695, %v1694
        %v1798 = vpack.c.b16 %v1697, %v1696
        %v1799 = vpack.c.b16 %v1699, %v1698
        %v1800 = vpack.c.b16 %v1701, %v1700
        %v1801 = vpack.c.b16 %v1703, %v1702
        %v1802 = vpack.c.b16 %v1705, %v1704
        %v1803 = vpack.c.b16 %v1707, %v1706
        %v1804 = vpack.c.b16 %v1709, %v1708
        %v1805 = vpack.c.b16 %v1711, %v1710
        %v1806 = vpack.c.b16 %v1713, %v1712
        %v1807 = vpack.c.b16 %v1715, %v1714
        %v1808 = vpack.c.b16 %v1717, %v1716
        %v1809 = vpack.c.b16 %v1719, %v1718
        %v1810 = vpack.c.b16 %v1721, %v1720
        %v1811 = vpack.c.b16 %v1723, %v1722
        %v1812 = vpack.c.b16 %v1725, %v1724
        %v1813 = vpack.c.b16 %v1727, %v1726
        %v1814 = vpack.c.b16 %v1729, %v1728
        %v1815 = vpack.c.b16 %v1731, %v1730
        %v1816 = vpack.c.b16 %v1733, %v1732
        %v1817 = vpack.c.b16 %v1735, %v1734
        %v1818 = vpack.c.b16 %v1737, %v1736
        %v1819 = vpack.c.b16 %v1739, %v1738
        %v1820 = vpack.c.b16 %v1741, %v1740
        %v1821 = vpack.c.b16 %v1743, %v1742
        %v1822 = vpack.c.b16 %v1745, %v1744
        %v1823 = vpack.c.b16 %v1747, %v1746
        %v1824 = vpack.c.b16 %v1749, %v1748
        %v1825 = vpack.c.b16 %v1751, %v1750
        %v1826 = vpack.c.b16 %v1753, %v1752
        %v1827 = vpack.c.b16 %v1755, %v1754
        %1900 = vmatprep.subr.bf16.mxu0 0
        %1901 = vmatpush1.bf16.msra.mxu0 %v1756
        %1902 = vmatprep.subr.bf16.mxu0 0
        %1903 = vmatpush1.bf16.msra.mxu0 %v1757
        %1904 = vmatprep.subr.bf16.mxu0 0
        %1905 = vmatpush1.bf16.msra.mxu0 %v1758
        %1906 = vmatprep.subr.bf16.mxu0 0
        %1907 = vmatpush1.bf16.msra.mxu0 %v1759
        %1908 = vmatprep.subr.bf16.mxu0 0
        %1909 = vmatpush1.bf16.msra.mxu0 %v1760
        %1910 = vmatprep.subr.bf16.mxu0 0
        %1911 = vmatpush1.bf16.msra.mxu0 %v1761
        %1912 = vmatprep.subr.bf16.mxu0 0
        %1913 = vmatpush1.bf16.msra.mxu0 %v1762
        %1914 = vmatprep.subr.bf16.mxu0 0
        %1915 = vmatpush1.bf16.msra.mxu0 %v1763
        %1916 = vmatprep.subr.bf16.mxu0 0
        %1917 = vmatpush1.bf16.msra.mxu0 %v1764
        %1918 = vmatprep.subr.bf16.mxu0 0
        %1919 = vmatpush1.bf16.msra.mxu0 %v1765
        %1920 = vmatprep.subr.bf16.mxu0 0
        %1921 = vmatpush1.bf16.msra.mxu0 %v1766
        %1922 = vmatprep.subr.bf16.mxu0 0
        %1923 = vmatpush1.bf16.msra.mxu0 %v1767
        %1924 = vmatprep.subr.bf16.mxu0 0
        %1925 = vmatpush1.bf16.msra.mxu0 %v1768
        %1926 = vmatprep.subr.bf16.mxu0 0
        %1927 = vmatpush1.bf16.msra.mxu0 %v1769
        %1928 = vmatprep.subr.bf16.mxu0 0
        %1929 = vmatpush1.bf16.msra.mxu0 %v1770
        %1930 = vmatprep.subr.bf16.mxu0 0
        %1931 = vmatpush1.bf16.msra.mxu0 %v1771
        %1932 = vmatprep.mubr.bf16.mxu0 %v1181
        %1933 = vmatmul.mubr.bf16.gmra.mrb[0].mxu0 %v1180
        %v1934 = vpop.f32.mrb[0].mxu0
        %v1935 = vadd.f32 %v575, %v1934
        %v1936 = vpop.f32.mrb[0].mxu0
        %v1937 = vpop.f32.mrb[0].mxu0
        %v1938 = vadd.f32 %v580, %v1937
        %v1939 = vpop.f32.mrb[0].mxu0
        %1940 = vmatprep.mubr.bf16.mxu0 %v1190
        %1941 = vmatmul.mubr.bf16.gmra.mrb[0].mxu0 %v1189
        %v1942 = vpop.f32.mrb[0].mxu0
        %v1943 = vadd.f32 %v585, %v1942
        %v1944 = vpop.f32.mrb[0].mxu0
        %v1945 = vpop.f32.mrb[0].mxu0
        %v1946 = vadd.f32 %v590, %v1945
        %v1947 = vpop.f32.mrb[0].mxu0
        %1948 = vmatprep.mubr.bf16.mxu0 %v1199
        %1949 = vmatmul.mubr.bf16.gmra.mrb[0].mxu0 %v1198
        %v1950 = vpop.f32.mrb[0].mxu0
        %v1951 = vadd.f32 %v595, %v1950
        %v1952 = vpop.f32.mrb[0].mxu0
        %v1953 = vpop.f32.mrb[0].mxu0
        %v1954 = vadd.f32 %v600, %v1953
        %v1955 = vpop.f32.mrb[0].mxu0
        %1956 = vmatprep.mubr.bf16.mxu0 %v1208
        %1957 = vmatmul.mubr.bf16.gmra.mrb[0].mxu0 %v1207
        %v1958 = vpop.f32.mrb[0].mxu0
        %v1959 = vadd.f32 %v605, %v1958
        %v1960 = vpop.f32.mrb[0].mxu0
        %v1961 = vpop.f32.mrb[0].mxu0
        %v1962 = vadd.f32 %v610, %v1961
        %v1963 = vpop.f32.mrb[0].mxu0
        %1964 = vmatprep.mubr.bf16.mxu0 %v1217
        %1965 = vmatmul.mubr.bf16.gmra.mrb[0].mxu0 %v1216
        %v1966 = vpop.f32.mrb[0].mxu0
        %v1967 = vadd.f32 %v615, %v1966
        %v1968 = vpop.f32.mrb[0].mxu0
        %v1969 = vpop.f32.mrb[0].mxu0
        %v1970 = vadd.f32 %v620, %v1969
        %v1971 = vpop.f32.mrb[0].mxu0
        %1972 = vmatprep.mubr.bf16.mxu0 %v1226
        %1973 = vmatmul.mubr.bf16.gmra.mrb[0].mxu0 %v1225
        %v1974 = vpop.f32.mrb[0].mxu0
        %v1975 = vadd.f32 %v625, %v1974
        %v1976 = vpop.f32.mrb[0].mxu0
        %v1977 = vpop.f32.mrb[0].mxu0
        %v1978 = vadd.f32 %v630, %v1977
        %v1979 = vpop.f32.mrb[0].mxu0
        %1980 = vmatprep.mubr.bf16.mxu0 %v1235
        %1981 = vmatmul.mubr.bf16.gmra.mrb[0].mxu0 %v1234
        %v1982 = vpop.f32.mrb[0].mxu0
        %v1983 = vadd.f32 %v635, %v1982
        %v1984 = vpop.f32.mrb[0].mxu0
        %v1985 = vpop.f32.mrb[0].mxu0
        %v1986 = vadd.f32 %v640, %v1985
        %v1987 = vpop.f32.mrb[0].mxu0
        %1988 = vmatprep.mubr.bf16.mxu0 %v1244
        %1989 = vmatmul.mubr.bf16.gmra.mrb[0].mxu0 %v1243
        %v1990 = vpop.f32.mrb[0].mxu0
        %v1991 = vadd.f32 %v645, %v1990
        %v1992 = vpop.f32.mrb[0].mxu0
        %v1993 = vpop.f32.mrb[0].mxu0
        %v1994 = vadd.f32 %v650, %v1993
        %v1995 = vpop.f32.mrb[0].mxu0
        %1996 = vmatprep.mubr.bf16.mxu0 %v1253
        %1997 = vmatmul.mubr.bf16.gmra.mrb[0].mxu0 %v1252
        %v1998 = vpop.f32.mrb[0].mxu0
        %v1999 = vadd.f32 %v655, %v1998
        %v2000 = vpop.f32.mrb[0].mxu0
        %v2001 = vpop.f32.mrb[0].mxu0
        %v2002 = vadd.f32 %v660, %v2001
        %v2003 = vpop.f32.mrb[0].mxu0
        %2004 = vmatprep.mubr.bf16.mxu0 %v1262
        %2005 = vmatmul.mubr.bf16.gmra.mrb[0].mxu0 %v1261
        %v2006 = vpop.f32.mrb[0].mxu0
        %v2007 = vadd.f32 %v665, %v2006
        %v2008 = vpop.f32.mrb[0].mxu0
        %v2009 = vpop.f32.mrb[0].mxu0
        %v2010 = vadd.f32 %v670, %v2009
        %v2011 = vpop.f32.mrb[0].mxu0
        %2012 = vmatprep.mubr.bf16.mxu0 %v1271
        %2013 = vmatmul.mubr.bf16.gmra.mrb[0].mxu0 %v1270
        %v2014 = vpop.f32.mrb[0].mxu0
        %v2015 = vadd.f32 %v675, %v2014
        %v2016 = vpop.f32.mrb[0].mxu0
        %v2017 = vpop.f32.mrb[0].mxu0
        %v2018 = vadd.f32 %v680, %v2017
        %v2019 = vpop.f32.mrb[0].mxu0
        %2020 = vmatprep.mubr.bf16.mxu0 %v1280
        %2021 = vmatmul.mubr.bf16.gmra.mrb[0].mxu0 %v1279
        %v2022 = vpop.f32.mrb[0].mxu0
        %v2023 = vadd.f32 %v685, %v2022
        %v2024 = vpop.f32.mrb[0].mxu0
        %v2025 = vpop.f32.mrb[0].mxu0
        %v2026 = vadd.f32 %v690, %v2025
        %v2027 = vpop.f32.mrb[0].mxu0
        %2028 = vmatprep.mubr.bf16.mxu0 %v1289
        %2029 = vmatmul.mubr.bf16.gmra.mrb[0].mxu0 %v1288
        %v2030 = vpop.f32.mrb[0].mxu0
        %v2031 = vadd.f32 %v695, %v2030
        %v2032 = vpop.f32.mrb[0].mxu0
        %v2033 = vpop.f32.mrb[0].mxu0
        %v2034 = vadd.f32 %v700, %v2033
        %v2035 = vpop.f32.mrb[0].mxu0
        %2036 = vmatprep.mubr.bf16.mxu0 %v1298
        %2037 = vmatmul.mubr.bf16.gmra.mrb[0].mxu0 %v1297
        %v2038 = vpop.f32.mrb[0].mxu0
        %v2039 = vadd.f32 %v705, %v2038
        %v2040 = vpop.f32.mrb[0].mxu0
        %v2041 = vpop.f32.mrb[0].mxu0
        %v2042 = vadd.f32 %v710, %v2041
        %v2043 = vpop.f32.mrb[0].mxu0
        %2044 = vmatprep.mubr.bf16.mxu0 %v1307
        %2045 = vmatmul.mubr.bf16.gmra.mrb[0].mxu0 %v1306
        %v2046 = vpop.f32.mrb[0].mxu0
        %v2047 = vadd.f32 %v715, %v2046
        %v2048 = vpop.f32.mrb[0].mxu0
        %v2049 = vpop.f32.mrb[0].mxu0
        %v2050 = vadd.f32 %v720, %v2049
        %v2051 = vpop.f32.mrb[0].mxu0
        %2052 = vmatprep.mubr.bf16.mxu0 %v1316
        %2053 = vmatmul.mubr.bf16.gmra.mrb[0].mxu0 %v1315
        %v2054 = vpop.f32.mrb[0].mxu0
        %v2055 = vadd.f32 %v725, %v2054
        %v2056 = vpop.f32.mrb[0].mxu0
        %v2057 = vpop.f32.mrb[0].mxu0
        %v2058 = vadd.f32 %v730, %v2057
        %v2059 = vpop.f32.mrb[0].mxu0
        %2060 = vdwg.mxu0
        %2061 = vmatprep.subr.bf16.mxu0 0
        %2062 = vmatpush1.bf16.msra.mxu0 %v1772
        %2063 = vmatprep.subr.bf16.mxu0 0
        %2064 = vmatpush1.bf16.msra.mxu0 %v1773
        %2065 = vmatprep.subr.bf16.mxu0 0
        %2066 = vmatpush1.bf16.msra.mxu0 %v1774
        %2067 = vmatprep.subr.bf16.mxu0 0
        %2068 = vmatpush1.bf16.msra.mxu0 %v1775
        %2069 = vmatprep.subr.bf16.mxu0 0
        %2070 = vmatpush1.bf16.msra.mxu0 %v1776
        %2071 = vmatprep.subr.bf16.mxu0 0
        %2072 = vmatpush1.bf16.msra.mxu0 %v1777
        %2073 = vmatprep.subr.bf16.mxu0 0
        %2074 = vmatpush1.bf16.msra.mxu0 %v1778
        %2075 = vmatprep.subr.bf16.mxu0 0
        %2076 = vmatpush1.bf16.msra.mxu0 %v1779
        %2077 = vmatprep.subr.bf16.mxu0 0
        %2078 = vmatpush1.bf16.msra.mxu0 %v1780
        %2079 = vmatprep.subr.bf16.mxu0 0
        %2080 = vmatpush1.bf16.msra.mxu0 %v1781
        %2081 = vmatprep.subr.bf16.mxu0 0
        %2082 = vmatpush1.bf16.msra.mxu0 %v1782
        %2083 = vmatprep.subr.bf16.mxu0 0
        %2084 = vmatpush1.bf16.msra.mxu0 %v1783
        %2085 = vmatprep.subr.bf16.mxu0 0
        %2086 = vmatpush1.bf16.msra.mxu0 %v1784
        %2087 = vmatprep.subr.bf16.mxu0 0
        %2088 = vmatpush1.bf16.msra.mxu0 %v1785
        %2089 = vmatprep.subr.bf16.mxu0 0
        %2090 = vmatpush1.bf16.msra.mxu0 %v1786
        %2091 = vmatprep.subr.bf16.mxu0 0
        %2092 = vmatpush1.bf16.msra.mxu0 %v1787
        %2093 = vmatprep.mubr.bf16.mxu0 %v1183
        %2094 = vmatmul.mubr.bf16.gmra.mrb[0].mxu0 %v1182
        %v2095 = vpop.f32.mrb[0].mxu0
        %v2096 = vadd.f32 %v1935, %v2095
        %v2097 = vpop.f32.mrb[0].mxu0
        %v2098 = vpop.f32.mrb[0].mxu0
        %v2099 = vadd.f32 %v1938, %v2098
        %v2100 = vpop.f32.mrb[0].mxu0
        %2101 = vmatprep.mubr.bf16.mxu0 %v1192
        %2102 = vmatmul.mubr.bf16.gmra.mrb[0].mxu0 %v1191
        %v2103 = vpop.f32.mrb[0].mxu0
        %v2104 = vadd.f32 %v1943, %v2103
        %v2105 = vpop.f32.mrb[0].mxu0
        %v2106 = vpop.f32.mrb[0].mxu0
        %v2107 = vadd.f32 %v1946, %v2106
        %v2108 = vpop.f32.mrb[0].mxu0
        %2109 = vmatprep.mubr.bf16.mxu0 %v1201
        %2110 = vmatmul.mubr.bf16.gmra.mrb[0].mxu0 %v1200
        %v2111 = vpop.f32.mrb[0].mxu0
        %v2112 = vadd.f32 %v1951, %v2111
        %v2113 = vpop.f32.mrb[0].mxu0
        %v2114 = vpop.f32.mrb[0].mxu0
        %v2115 = vadd.f32 %v1954, %v2114
        %v2116 = vpop.f32.mrb[0].mxu0
        %2117 = vmatprep.mubr.bf16.mxu0 %v1210
        %2118 = vmatmul.mubr.bf16.gmra.mrb[0].mxu0 %v1209
        %v2119 = vpop.f32.mrb[0].mxu0
        %v2120 = vadd.f32 %v1959, %v2119
        %v2121 = vpop.f32.mrb[0].mxu0
        %v2122 = vpop.f32.mrb[0].mxu0
        %v2123 = vadd.f32 %v1962, %v2122
        %v2124 = vpop.f32.mrb[0].mxu0
        %2125 = vmatprep.mubr.bf16.mxu0 %v1219
        %2126 = vmatmul.mubr.bf16.gmra.mrb[0].mxu0 %v1218
        %v2127 = vpop.f32.mrb[0].mxu0
        %v2128 = vadd.f32 %v1967, %v2127
        %v2129 = vpop.f32.mrb[0].mxu0
        %v2130 = vpop.f32.mrb[0].mxu0
        %v2131 = vadd.f32 %v1970, %v2130
        %v2132 = vpop.f32.mrb[0].mxu0
        %2133 = vmatprep.mubr.bf16.mxu0 %v1228
        %2134 = vmatmul.mubr.bf16.gmra.mrb[0].mxu0 %v1227
        %v2135 = vpop.f32.mrb[0].mxu0
        %v2136 = vadd.f32 %v1975, %v2135
        %v2137 = vpop.f32.mrb[0].mxu0
        %v2138 = vpop.f32.mrb[0].mxu0
        %v2139 = vadd.f32 %v1978, %v2138
        %v2140 = vpop.f32.mrb[0].mxu0
        %2141 = vmatprep.mubr.bf16.mxu0 %v1237
        %2142 = vmatmul.mubr.bf16.gmra.mrb[0].mxu0 %v1236
        %v2143 = vpop.f32.mrb[0].mxu0
        %v2144 = vadd.f32 %v1983, %v2143
        %v2145 = vpop.f32.mrb[0].mxu0
        %v2146 = vpop.f32.mrb[0].mxu0
        %v2147 = vadd.f32 %v1986, %v2146
        %v2148 = vpop.f32.mrb[0].mxu0
        %2149 = vmatprep.mubr.bf16.mxu0 %v1246
        %2150 = vmatmul.mubr.bf16.gmra.mrb[0].mxu0 %v1245
        %v2151 = vpop.f32.mrb[0].mxu0
        %v2152 = vadd.f32 %v1991, %v2151
        %v2153 = vpop.f32.mrb[0].mxu0
        %v2154 = vpop.f32.mrb[0].mxu0
        %v2155 = vadd.f32 %v1994, %v2154
        %v2156 = vpop.f32.mrb[0].mxu0
        %2157 = vmatprep.mubr.bf16.mxu0 %v1255
        %2158 = vmatmul.mubr.bf16.gmra.mrb[0].mxu0 %v1254
        %v2159 = vpop.f32.mrb[0].mxu0
        %v2160 = vadd.f32 %v1999, %v2159
        %v2161 = vpop.f32.mrb[0].mxu0
        %v2162 = vpop.f32.mrb[0].mxu0
        %v2163 = vadd.f32 %v2002, %v2162
        %v2164 = vpop.f32.mrb[0].mxu0
        %2165 = vmatprep.mubr.bf16.mxu0 %v1264
        %2166 = vmatmul.mubr.bf16.gmra.mrb[0].mxu0 %v1263
        %v2167 = vpop.f32.mrb[0].mxu0
        %v2168 = vadd.f32 %v2007, %v2167
        %v2169 = vpop.f32.mrb[0].mxu0
        %v2170 = vpop.f32.mrb[0].mxu0
        %v2171 = vadd.f32 %v2010, %v2170
        %v2172 = vpop.f32.mrb[0].mxu0
        %2173 = vmatprep.mubr.bf16.mxu0 %v1273
        %2174 = vmatmul.mubr.bf16.gmra.mrb[0].mxu0 %v1272
        %v2175 = vpop.f32.mrb[0].mxu0
        %v2176 = vadd.f32 %v2015, %v2175
        %v2177 = vpop.f32.mrb[0].mxu0
        %v2178 = vpop.f32.mrb[0].mxu0
        %v2179 = vadd.f32 %v2018, %v2178
        %v2180 = vpop.f32.mrb[0].mxu0
        %2181 = vmatprep.mubr.bf16.mxu0 %v1282
        %2182 = vmatmul.mubr.bf16.gmra.mrb[0].mxu0 %v1281
        %v2183 = vpop.f32.mrb[0].mxu0
        %v2184 = vadd.f32 %v2023, %v2183
        %v2185 = vpop.f32.mrb[0].mxu0
        %v2186 = vpop.f32.mrb[0].mxu0
        %v2187 = vadd.f32 %v2026, %v2186
        %v2188 = vpop.f32.mrb[0].mxu0
        %2189 = vmatprep.mubr.bf16.mxu0 %v1291
        %2190 = vmatmul.mubr.bf16.gmra.mrb[0].mxu0 %v1290
        %v2191 = vpop.f32.mrb[0].mxu0
        %v2192 = vadd.f32 %v2031, %v2191
        %v2193 = vpop.f32.mrb[0].mxu0
        %v2194 = vpop.f32.mrb[0].mxu0
        %v2195 = vadd.f32 %v2034, %v2194
        %v2196 = vpop.f32.mrb[0].mxu0
        %2197 = vmatprep.mubr.bf16.mxu0 %v1300
        %2198 = vmatmul.mubr.bf16.gmra.mrb[0].mxu0 %v1299
        %v2199 = vpop.f32.mrb[0].mxu0
        %v2200 = vadd.f32 %v2039, %v2199
        %v2201 = vpop.f32.mrb[0].mxu0
        %v2202 = vpop.f32.mrb[0].mxu0
        %v2203 = vadd.f32 %v2042, %v2202
        %v2204 = vpop.f32.mrb[0].mxu0
        %2205 = vmatprep.mubr.bf16.mxu0 %v1309
        %2206 = vmatmul.mubr.bf16.gmra.mrb[0].mxu0 %v1308
        %v2207 = vpop.f32.mrb[0].mxu0
        %v2208 = vadd.f32 %v2047, %v2207
        %v2209 = vpop.f32.mrb[0].mxu0
        %v2210 = vpop.f32.mrb[0].mxu0
        %v2211 = vadd.f32 %v2050, %v2210
        %v2212 = vpop.f32.mrb[0].mxu0
        %2213 = vmatprep.mubr.bf16.mxu0 %v1318
        %2214 = vmatmul.mubr.bf16.gmra.mrb[0].mxu0 %v1317
        %v2215 = vpop.f32.mrb[0].mxu0
        %v2216 = vadd.f32 %v2055, %v2215
        %v2217 = vpop.f32.mrb[0].mxu0
        %v2218 = vpop.f32.mrb[0].mxu0
        %v2219 = vadd.f32 %v2058, %v2218
        %v2220 = vpop.f32.mrb[0].mxu0
        %2221 = vdwg.mxu0
        %2222 = vmatprep.subr.bf16.mxu0 0
        %2223 = vmatpush1.bf16.msra.mxu0 %v1788
        %2224 = vmatprep.subr.bf16.mxu0 0
        %2225 = vmatpush1.bf16.msra.mxu0 %v1789
        %2226 = vmatprep.subr.bf16.mxu0 0
        %2227 = vmatpush1.bf16.msra.mxu0 %v1790
        %2228 = vmatprep.subr.bf16.mxu0 0
        %2229 = vmatpush1.bf16.msra.mxu0 %v1791
        %2230 = vmatprep.subr.bf16.mxu0 0
        %2231 = vmatpush1.bf16.msra.mxu0 %v1792
        %2232 = vmatprep.subr.bf16.mxu0 0
        %2233 = vmatpush1.bf16.msra.mxu0 %v1793
        %2234 = vmatprep.subr.bf16.mxu0 0
        %2235 = vmatpush1.bf16.msra.mxu0 %v1794
        %2236 = vmatprep.subr.bf16.mxu0 0
        %2237 = vmatpush1.bf16.msra.mxu0 %v1795
        %2238 = vmatprep.subr.bf16.mxu0 0
        %2239 = vmatpush1.bf16.msra.mxu0 %v1796
        %2240 = vmatprep.subr.bf16.mxu0 0
        %2241 = vmatpush1.bf16.msra.mxu0 %v1797
        %2242 = vmatprep.subr.bf16.mxu0 0
        %2243 = vmatpush1.bf16.msra.mxu0 %v1798
        %2244 = vmatprep.subr.bf16.mxu0 0
        %2245 = vmatpush1.bf16.msra.mxu0 %v1799
        %2246 = vmatprep.subr.bf16.mxu0 0
        %2247 = vmatpush1.bf16.msra.mxu0 %v1800
        %2248 = vmatprep.subr.bf16.mxu0 0
        %2249 = vmatpush1.bf16.msra.mxu0 %v1801
        %2250 = vmatprep.subr.bf16.mxu0 0
        %2251 = vmatpush1.bf16.msra.mxu0 %v1802
        %2252 = vmatprep.subr.bf16.mxu0 0
        %2253 = vmatpush1.bf16.msra.mxu0 %v1803
        %2254 = vmatprep.mubr.bf16.mxu0 %v1185
        %2255 = vmatmul.mubr.bf16.gmra.mrb[0].mxu0 %v1184
        %v2256 = vpop.f32.mrb[0].mxu0
        %v2257 = vadd.f32 %v2096, %v2256
        %v2258 = vpop.f32.mrb[0].mxu0
        %v2259 = vpop.f32.mrb[0].mxu0
        %v2260 = vadd.f32 %v2099, %v2259
        %v2261 = vpop.f32.mrb[0].mxu0
        %2262 = vmatprep.mubr.bf16.mxu0 %v1194
        %2263 = vmatmul.mubr.bf16.gmra.mrb[0].mxu0 %v1193
        %v2264 = vpop.f32.mrb[0].mxu0
        %v2265 = vadd.f32 %v2104, %v2264
        %v2266 = vpop.f32.mrb[0].mxu0
        %v2267 = vpop.f32.mrb[0].mxu0
        %v2268 = vadd.f32 %v2107, %v2267
        %v2269 = vpop.f32.mrb[0].mxu0
        %2270 = vmatprep.mubr.bf16.mxu0 %v1203
        %2271 = vmatmul.mubr.bf16.gmra.mrb[0].mxu0 %v1202
        %v2272 = vpop.f32.mrb[0].mxu0
        %v2273 = vadd.f32 %v2112, %v2272
        %v2274 = vpop.f32.mrb[0].mxu0
        %v2275 = vpop.f32.mrb[0].mxu0
        %v2276 = vadd.f32 %v2115, %v2275
        %v2277 = vpop.f32.mrb[0].mxu0
        %2278 = vmatprep.mubr.bf16.mxu0 %v1212
        %2279 = vmatmul.mubr.bf16.gmra.mrb[0].mxu0 %v1211
        %v2280 = vpop.f32.mrb[0].mxu0
        %v2281 = vadd.f32 %v2120, %v2280
        %v2282 = vpop.f32.mrb[0].mxu0
        %v2283 = vpop.f32.mrb[0].mxu0
        %v2284 = vadd.f32 %v2123, %v2283
        %v2285 = vpop.f32.mrb[0].mxu0
        %2286 = vmatprep.mubr.bf16.mxu0 %v1221
        %2287 = vmatmul.mubr.bf16.gmra.mrb[0].mxu0 %v1220
        %v2288 = vpop.f32.mrb[0].mxu0
        %v2289 = vadd.f32 %v2128, %v2288
        %v2290 = vpop.f32.mrb[0].mxu0
        %v2291 = vpop.f32.mrb[0].mxu0
        %v2292 = vadd.f32 %v2131, %v2291
        %v2293 = vpop.f32.mrb[0].mxu0
        %2294 = vmatprep.mubr.bf16.mxu0 %v1230
        %2295 = vmatmul.mubr.bf16.gmra.mrb[0].mxu0 %v1229
        %v2296 = vpop.f32.mrb[0].mxu0
        %v2297 = vadd.f32 %v2136, %v2296
        %v2298 = vpop.f32.mrb[0].mxu0
        %v2299 = vpop.f32.mrb[0].mxu0
        %v2300 = vadd.f32 %v2139, %v2299
        %v2301 = vpop.f32.mrb[0].mxu0
        %2302 = vmatprep.mubr.bf16.mxu0 %v1239
        %2303 = vmatmul.mubr.bf16.gmra.mrb[0].mxu0 %v1238
        %v2304 = vpop.f32.mrb[0].mxu0
        %v2305 = vadd.f32 %v2144, %v2304
        %v2306 = vpop.f32.mrb[0].mxu0
        %v2307 = vpop.f32.mrb[0].mxu0
        %v2308 = vadd.f32 %v2147, %v2307
        %v2309 = vpop.f32.mrb[0].mxu0
        %2310 = vmatprep.mubr.bf16.mxu0 %v1248
        %2311 = vmatmul.mubr.bf16.gmra.mrb[0].mxu0 %v1247
        %v2312 = vpop.f32.mrb[0].mxu0
        %v2313 = vadd.f32 %v2152, %v2312
        %v2314 = vpop.f32.mrb[0].mxu0
        %v2315 = vpop.f32.mrb[0].mxu0
        %v2316 = vadd.f32 %v2155, %v2315
        %v2317 = vpop.f32.mrb[0].mxu0
        %2318 = vmatprep.mubr.bf16.mxu0 %v1257
        %2319 = vmatmul.mubr.bf16.gmra.mrb[0].mxu0 %v1256
        %v2320 = vpop.f32.mrb[0].mxu0
        %v2321 = vadd.f32 %v2160, %v2320
        %v2322 = vpop.f32.mrb[0].mxu0
        %v2323 = vpop.f32.mrb[0].mxu0
        %v2324 = vadd.f32 %v2163, %v2323
        %v2325 = vpop.f32.mrb[0].mxu0
        %2326 = vmatprep.mubr.bf16.mxu0 %v1266
        %2327 = vmatmul.mubr.bf16.gmra.mrb[0].mxu0 %v1265
        %v2328 = vpop.f32.mrb[0].mxu0
        %v2329 = vadd.f32 %v2168, %v2328
        %v2330 = vpop.f32.mrb[0].mxu0
        %v2331 = vpop.f32.mrb[0].mxu0
        %v2332 = vadd.f32 %v2171, %v2331
        %v2333 = vpop.f32.mrb[0].mxu0
        %2334 = vmatprep.mubr.bf16.mxu0 %v1275
        %2335 = vmatmul.mubr.bf16.gmra.mrb[0].mxu0 %v1274
        %v2336 = vpop.f32.mrb[0].mxu0
        %v2337 = vadd.f32 %v2176, %v2336
        %v2338 = vpop.f32.mrb[0].mxu0
        %v2339 = vpop.f32.mrb[0].mxu0
        %v2340 = vadd.f32 %v2179, %v2339
        %v2341 = vpop.f32.mrb[0].mxu0
        %2342 = vmatprep.mubr.bf16.mxu0 %v1284
        %2343 = vmatmul.mubr.bf16.gmra.mrb[0].mxu0 %v1283
        %v2344 = vpop.f32.mrb[0].mxu0
        %v2345 = vadd.f32 %v2184, %v2344
        %v2346 = vpop.f32.mrb[0].mxu0
        %v2347 = vpop.f32.mrb[0].mxu0
        %v2348 = vadd.f32 %v2187, %v2347
        %v2349 = vpop.f32.mrb[0].mxu0
        %2350 = vmatprep.mubr.bf16.mxu0 %v1293
        %2351 = vmatmul.mubr.bf16.gmra.mrb[0].mxu0 %v1292
        %v2352 = vpop.f32.mrb[0].mxu0
        %v2353 = vadd.f32 %v2192, %v2352
        %v2354 = vpop.f32.mrb[0].mxu0
        %v2355 = vpop.f32.mrb[0].mxu0
        %v2356 = vadd.f32 %v2195, %v2355
        %v2357 = vpop.f32.mrb[0].mxu0
        %2358 = vmatprep.mubr.bf16.mxu0 %v1302
        %2359 = vmatmul.mubr.bf16.gmra.mrb[0].mxu0 %v1301
        %v2360 = vpop.f32.mrb[0].mxu0
        %v2361 = vadd.f32 %v2200, %v2360
        %v2362 = vpop.f32.mrb[0].mxu0
        %v2363 = vpop.f32.mrb[0].mxu0
        %v2364 = vadd.f32 %v2203, %v2363
        %v2365 = vpop.f32.mrb[0].mxu0
        %2366 = vmatprep.mubr.bf16.mxu0 %v1311
        %2367 = vmatmul.mubr.bf16.gmra.mrb[0].mxu0 %v1310
        %v2368 = vpop.f32.mrb[0].mxu0
        %v2369 = vadd.f32 %v2208, %v2368
        %v2370 = vpop.f32.mrb[0].mxu0
        %v2371 = vpop.f32.mrb[0].mxu0
        %v2372 = vadd.f32 %v2211, %v2371
        %v2373 = vpop.f32.mrb[0].mxu0
        %2374 = vmatprep.mubr.bf16.mxu0 %v1320
        %2375 = vmatmul.mubr.bf16.gmra.mrb[0].mxu0 %v1319
        %v2376 = vpop.f32.mrb[0].mxu0
        %v2377 = vadd.f32 %v2216, %v2376
        %v2378 = vpop.f32.mrb[0].mxu0
        %v2379 = vpop.f32.mrb[0].mxu0
        %v2380 = vadd.f32 %v2219, %v2379
        %v2381 = vpop.f32.mrb[0].mxu0
        %2382 = vdwg.mxu0
        %2383 = vmatprep.subr.bf16.mxu0 0
        %2384 = vmatpush1.bf16.msra.mxu0 %v1804
        %2385 = vmatprep.subr.bf16.mxu0 0
        %2386 = vmatpush1.bf16.msra.mxu0 %v1805
        %2387 = vmatprep.subr.bf16.mxu0 0
        %2388 = vmatpush1.bf16.msra.mxu0 %v1806
        %2389 = vmatprep.subr.bf16.mxu0 0
        %2390 = vmatpush1.bf16.msra.mxu0 %v1807
        %2391 = vmatprep.subr.bf16.mxu0 0
        %2392 = vmatpush1.bf16.msra.mxu0 %v1808
        %2393 = vmatprep.subr.bf16.mxu0 0
        %2394 = vmatpush1.bf16.msra.mxu0 %v1809
        %2395 = vmatprep.subr.bf16.mxu0 0
        %2396 = vmatpush1.bf16.msra.mxu0 %v1810
        %2397 = vmatprep.subr.bf16.mxu0 0
        %2398 = vmatpush1.bf16.msra.mxu0 %v1811
        %2399 = vmatprep.subr.bf16.mxu0 0
        %2400 = vmatpush1.bf16.msra.mxu0 %v1812
        %2401 = vmatprep.subr.bf16.mxu0 0
        %2402 = vmatpush1.bf16.msra.mxu0 %v1813
        %2403 = vmatprep.subr.bf16.mxu0 0
        %2404 = vmatpush1.bf16.msra.mxu0 %v1814
        %2405 = vmatprep.subr.bf16.mxu0 0
        %2406 = vmatpush1.bf16.msra.mxu0 %v1815
        %2407 = vmatprep.subr.bf16.mxu0 0
        %2408 = vmatpush1.bf16.msra.mxu0 %v1816
        %2409 = vmatprep.subr.bf16.mxu0 0
        %2410 = vmatpush1.bf16.msra.mxu0 %v1817
        %2411 = vmatprep.subr.bf16.mxu0 0
        %2412 = vmatpush1.bf16.msra.mxu0 %v1818
        %2413 = vmatprep.subr.bf16.mxu0 0
        %2414 = vmatpush1.bf16.msra.mxu0 %v1819
        %2415 = vmatprep.mubr.bf16.mxu0 %v1187
        %2416 = vmatmul.mubr.bf16.gmra.mrb[0].mxu0 %v1186
        %v2417 = vpop.f32.mrb[0].mxu0
        %v2418 = vadd.f32 %v2257, %v2417
        %v2419 = vpop.f32.mrb[0].mxu0
        %v2420 = vpop.f32.mrb[0].mxu0
        %v2421 = vadd.f32 %v2260, %v2420
        %v2422 = vpop.f32.mrb[0].mxu0
        %2423 = vmatprep.mubr.bf16.mxu0 %v1196
        %2424 = vmatmul.mubr.bf16.gmra.mrb[0].mxu0 %v1195
        %v2425 = vpop.f32.mrb[0].mxu0
        %v2426 = vadd.f32 %v2265, %v2425
        %v2427 = vpop.f32.mrb[0].mxu0
        %v2428 = vpop.f32.mrb[0].mxu0
        %v2429 = vadd.f32 %v2268, %v2428
        %v2430 = vpop.f32.mrb[0].mxu0
        %2431 = vmatprep.mubr.bf16.mxu0 %v1205
        %2432 = vmatmul.mubr.bf16.gmra.mrb[0].mxu0 %v1204
        %v2433 = vpop.f32.mrb[0].mxu0
        %v2434 = vadd.f32 %v2273, %v2433
        %v2435 = vpop.f32.mrb[0].mxu0
        %v2436 = vpop.f32.mrb[0].mxu0
        %v2437 = vadd.f32 %v2276, %v2436
        %v2438 = vpop.f32.mrb[0].mxu0
        %2439 = vmatprep.mubr.bf16.mxu0 %v1214
        %2440 = vmatmul.mubr.bf16.gmra.mrb[0].mxu0 %v1213
        %v2441 = vpop.f32.mrb[0].mxu0
        %v2442 = vadd.f32 %v2281, %v2441
        %v2443 = vpop.f32.mrb[0].mxu0
        %v2444 = vpop.f32.mrb[0].mxu0
        %v2445 = vadd.f32 %v2284, %v2444
        %v2446 = vpop.f32.mrb[0].mxu0
        %2447 = vmatprep.mubr.bf16.mxu0 %v1223
        %2448 = vmatmul.mubr.bf16.gmra.mrb[0].mxu0 %v1222
        %v2449 = vpop.f32.mrb[0].mxu0
        %v2450 = vadd.f32 %v2289, %v2449
        %v2451 = vpop.f32.mrb[0].mxu0
        %v2452 = vpop.f32.mrb[0].mxu0
        %v2453 = vadd.f32 %v2292, %v2452
        %v2454 = vpop.f32.mrb[0].mxu0
        %2455 = vmatprep.mubr.bf16.mxu0 %v1232
        %2456 = vmatmul.mubr.bf16.gmra.mrb[0].mxu0 %v1231
        %v2457 = vpop.f32.mrb[0].mxu0
        %v2458 = vadd.f32 %v2297, %v2457
        %v2459 = vpop.f32.mrb[0].mxu0
        %v2460 = vpop.f32.mrb[0].mxu0
        %v2461 = vadd.f32 %v2300, %v2460
        %v2462 = vpop.f32.mrb[0].mxu0
        %2463 = vmatprep.mubr.bf16.mxu0 %v1241
        %2464 = vmatmul.mubr.bf16.gmra.mrb[0].mxu0 %v1240
        %v2465 = vpop.f32.mrb[0].mxu0
        %v2466 = vadd.f32 %v2305, %v2465
        %v2467 = vpop.f32.mrb[0].mxu0
        %v2468 = vpop.f32.mrb[0].mxu0
        %v2469 = vadd.f32 %v2308, %v2468
        %v2470 = vpop.f32.mrb[0].mxu0
        %2471 = vmatprep.mubr.bf16.mxu0 %v1250
        %2472 = vmatmul.mubr.bf16.gmra.mrb[0].mxu0 %v1249
        %v2473 = vpop.f32.mrb[0].mxu0
        %v2474 = vadd.f32 %v2313, %v2473
        %v2475 = vpop.f32.mrb[0].mxu0
        %v2476 = vpop.f32.mrb[0].mxu0
        %v2477 = vadd.f32 %v2316, %v2476
        %v2478 = vpop.f32.mrb[0].mxu0
        %2479 = vmatprep.mubr.bf16.mxu0 %v1259
        %2480 = vmatmul.mubr.bf16.gmra.mrb[0].mxu0 %v1258
        %v2481 = vpop.f32.mrb[0].mxu0
        %v2482 = vadd.f32 %v2321, %v2481
        %v2483 = vpop.f32.mrb[0].mxu0
        %v2484 = vpop.f32.mrb[0].mxu0
        %v2485 = vadd.f32 %v2324, %v2484
        %v2486 = vpop.f32.mrb[0].mxu0
        %2487 = vmatprep.mubr.bf16.mxu0 %v1268
        %2488 = vmatmul.mubr.bf16.gmra.mrb[0].mxu0 %v1267
        %v2489 = vpop.f32.mrb[0].mxu0
        %v2490 = vadd.f32 %v2329, %v2489
        %v2491 = vpop.f32.mrb[0].mxu0
        %v2492 = vpop.f32.mrb[0].mxu0
        %v2493 = vadd.f32 %v2332, %v2492
        %v2494 = vpop.f32.mrb[0].mxu0
        %2495 = vmatprep.mubr.bf16.mxu0 %v1277
        %2496 = vmatmul.mubr.bf16.gmra.mrb[0].mxu0 %v1276
        %v2497 = vpop.f32.mrb[0].mxu0
        %v2498 = vadd.f32 %v2337, %v2497
        %v2499 = vpop.f32.mrb[0].mxu0
        %v2500 = vpop.f32.mrb[0].mxu0
        %v2501 = vadd.f32 %v2340, %v2500
        %v2502 = vpop.f32.mrb[0].mxu0
        %2503 = vmatprep.mubr.bf16.mxu0 %v1286
        %2504 = vmatmul.mubr.bf16.gmra.mrb[0].mxu0 %v1285
        %v2505 = vpop.f32.mrb[0].mxu0
        %v2506 = vadd.f32 %v2345, %v2505
        %v2507 = vpop.f32.mrb[0].mxu0
        %v2508 = vpop.f32.mrb[0].mxu0
        %v2509 = vadd.f32 %v2348, %v2508
        %v2510 = vpop.f32.mrb[0].mxu0
        %2511 = vmatprep.mubr.bf16.mxu0 %v1295
        %2512 = vmatmul.mubr.bf16.gmra.mrb[0].mxu0 %v1294
        %v2513 = vpop.f32.mrb[0].mxu0
        %v2514 = vadd.f32 %v2353, %v2513
        %v2515 = vpop.f32.mrb[0].mxu0
        %v2516 = vpop.f32.mrb[0].mxu0
        %v2517 = vadd.f32 %v2356, %v2516
        %v2518 = vpop.f32.mrb[0].mxu0
        %2519 = vmatprep.mubr.bf16.mxu0 %v1304
        %2520 = vmatmul.mubr.bf16.gmra.mrb[0].mxu0 %v1303
        %v2521 = vpop.f32.mrb[0].mxu0
        %v2522 = vadd.f32 %v2361, %v2521
        %v2523 = vpop.f32.mrb[0].mxu0
        %v2524 = vpop.f32.mrb[0].mxu0
        %v2525 = vadd.f32 %v2364, %v2524
        %v2526 = vpop.f32.mrb[0].mxu0
        %2527 = vmatprep.mubr.bf16.mxu0 %v1313
        %2528 = vmatmul.mubr.bf16.gmra.mrb[0].mxu0 %v1312
        %v2529 = vpop.f32.mrb[0].mxu0
        %v2530 = vadd.f32 %v2369, %v2529
        %v2531 = vpop.f32.mrb[0].mxu0
        %v2532 = vpop.f32.mrb[0].mxu0
        %v2533 = vadd.f32 %v2372, %v2532
        %v2534 = vpop.f32.mrb[0].mxu0
        %2535 = vmatprep.mubr.bf16.mxu0 %v1322
        %2536 = vmatmul.mubr.bf16.gmra.mrb[0].mxu0 %v1321
        %v2537 = vpop.f32.mrb[0].mxu0
        %v2538 = vadd.f32 %v2377, %v2537
        %v2539 = vpop.f32.mrb[0].mxu0
        %v2540 = vpop.f32.mrb[0].mxu0
        %v2541 = vadd.f32 %v2380, %v2540
        %v2542 = vpop.f32.mrb[0].mxu0
        %2543 = vdwg.mxu0
        %2544 = vmatprep.subr.bf16.mxu0 0
        %2545 = vmatpush1.bf16.msra.mxu0 %v1820
        %2546 = vmatprep.subr.bf16.mxu0 0
        %2547 = vmatpush1.bf16.msra.mxu0 %v1821
        %2548 = vmatprep.subr.bf16.mxu0 0
        %2549 = vmatpush1.bf16.msra.mxu0 %v1822
        %2550 = vmatprep.subr.bf16.mxu0 0
        %2551 = vmatpush1.bf16.msra.mxu0 %v1823
        %2552 = vmatprep.subr.bf16.mxu0 0
        %2553 = vmatpush1.bf16.msra.mxu0 %v1824
        %2554 = vmatprep.subr.bf16.mxu0 0
        %2555 = vmatpush1.bf16.msra.mxu0 %v1825
        %2556 = vmatprep.subr.bf16.mxu0 0
        %2557 = vmatpush1.bf16.msra.mxu0 %v1826
        %2558 = vmatprep.subr.bf16.mxu0 0
        %2559 = vmatpush1.bf16.msra.mxu0 %v1827
        %2560 = vmatprep.subr.bf16.mxu0 0
        %2561 = vmatpush1.bf16.msra.mxu0 0
        %2562 = vmatprep.subr.bf16.mxu0 0
        %2563 = vmatpush1.bf16.msra.mxu0 0
        %2564 = vmatprep.subr.bf16.mxu0 0
        %2565 = vmatpush1.bf16.msra.mxu0 0
        %2566 = vmatprep.subr.bf16.mxu0 0
        %2567 = vmatpush1.bf16.msra.mxu0 0
        %2568 = vmatprep.subr.bf16.mxu0 0
        %2569 = vmatpush1.bf16.msra.mxu0 0
        %2570 = vmatprep.subr.bf16.mxu0 0
        %2571 = vmatpush1.bf16.msra.mxu0 0
        %2572 = vmatprep.subr.bf16.mxu0 0
        %2573 = vmatpush1.bf16.msra.mxu0 0
        %2574 = vmatprep.subr.bf16.mxu0 0
        %2575 = vmatpush1.bf16.msra.mxu0 0
        %2576 = vmatprep.mubr.bf16.mxu0 0
        %2577 = vmatmul.mubr.bf16.gmra.mrb[0].mxu0 %v1188
        %v2578 = vpop.f32.mrb[0].mxu0
        %v2579 = vadd.f32 %v2418, %v2578
        %v2580 = vpop.f32.mrb[0].mxu0
        %v2581 = vpop.f32.mrb[0].mxu0
        %v2582 = vadd.f32 %v2421, %v2581
        %v2583 = vpop.f32.mrb[0].mxu0
        %2584 = vmatprep.mubr.bf16.mxu0 0
        %2585 = vmatmul.mubr.bf16.gmra.mrb[0].mxu0 %v1197
        %v2586 = vpop.f32.mrb[0].mxu0
        %v2587 = vadd.f32 %v2426, %v2586
        %v2588 = vpop.f32.mrb[0].mxu0
        %v2589 = vpop.f32.mrb[0].mxu0
        %v2590 = vadd.f32 %v2429, %v2589
        %v2591 = vpop.f32.mrb[0].mxu0
        %2592 = vmatprep.mubr.bf16.mxu0 0
        %2593 = vmatmul.mubr.bf16.gmra.mrb[0].mxu0 %v1206
        %v2594 = vpop.f32.mrb[0].mxu0
        %v2595 = vadd.f32 %v2434, %v2594
        %v2596 = vpop.f32.mrb[0].mxu0
        %v2597 = vpop.f32.mrb[0].mxu0
        %v2598 = vadd.f32 %v2437, %v2597
        %v2599 = vpop.f32.mrb[0].mxu0
        %2600 = vmatprep.mubr.bf16.mxu0 0
        %2601 = vmatmul.mubr.bf16.gmra.mrb[0].mxu0 %v1215
        %v2602 = vpop.f32.mrb[0].mxu0
        %v2603 = vadd.f32 %v2442, %v2602
        %v2604 = vpop.f32.mrb[0].mxu0
        %v2605 = vpop.f32.mrb[0].mxu0
        %v2606 = vadd.f32 %v2445, %v2605
        %v2607 = vpop.f32.mrb[0].mxu0
        %2608 = vmatprep.mubr.bf16.mxu0 0
        %2609 = vmatmul.mubr.bf16.gmra.mrb[0].mxu0 %v1224
        %v2610 = vpop.f32.mrb[0].mxu0
        %v2611 = vadd.f32 %v2450, %v2610
        %v2612 = vpop.f32.mrb[0].mxu0
        %v2613 = vpop.f32.mrb[0].mxu0
        %v2614 = vadd.f32 %v2453, %v2613
        %v2615 = vpop.f32.mrb[0].mxu0
        %2616 = vmatprep.mubr.bf16.mxu0 0
        %2617 = vmatmul.mubr.bf16.gmra.mrb[0].mxu0 %v1233
        %v2618 = vpop.f32.mrb[0].mxu0
        %v2619 = vadd.f32 %v2458, %v2618
        %v2620 = vpop.f32.mrb[0].mxu0
        %v2621 = vpop.f32.mrb[0].mxu0
        %v2622 = vadd.f32 %v2461, %v2621
        %v2623 = vpop.f32.mrb[0].mxu0
        %2624 = vmatprep.mubr.bf16.mxu0 0
        %2625 = vmatmul.mubr.bf16.gmra.mrb[0].mxu0 %v1242
        %v2626 = vpop.f32.mrb[0].mxu0
        %v2627 = vadd.f32 %v2466, %v2626
        %v2628 = vpop.f32.mrb[0].mxu0
        %v2629 = vpop.f32.mrb[0].mxu0
        %v2630 = vadd.f32 %v2469, %v2629
        %v2631 = vpop.f32.mrb[0].mxu0
        %2632 = vmatprep.mubr.bf16.mxu0 0
        %2633 = vmatmul.mubr.bf16.gmra.mrb[0].mxu0 %v1251
        %v2634 = vpop.f32.mrb[0].mxu0
        %v2635 = vadd.f32 %v2474, %v2634
        %v2636 = vpop.f32.mrb[0].mxu0
        %v2637 = vpop.f32.mrb[0].mxu0
        %v2638 = vadd.f32 %v2477, %v2637
        %v2639 = vpop.f32.mrb[0].mxu0
        %2640 = vmatprep.mubr.bf16.mxu0 0
        %2641 = vmatmul.mubr.bf16.gmra.mrb[0].mxu0 %v1260
        %v2642 = vpop.f32.mrb[0].mxu0
        %v2643 = vadd.f32 %v2482, %v2642
        %v2644 = vpop.f32.mrb[0].mxu0
        %v2645 = vpop.f32.mrb[0].mxu0
        %v2646 = vadd.f32 %v2485, %v2645
        %v2647 = vpop.f32.mrb[0].mxu0
        %2648 = vmatprep.mubr.bf16.mxu0 0
        %2649 = vmatmul.mubr.bf16.gmra.mrb[0].mxu0 %v1269
        %v2650 = vpop.f32.mrb[0].mxu0
        %v2651 = vadd.f32 %v2490, %v2650
        %v2652 = vpop.f32.mrb[0].mxu0
        %v2653 = vpop.f32.mrb[0].mxu0
        %v2654 = vadd.f32 %v2493, %v2653
        %v2655 = vpop.f32.mrb[0].mxu0
        %2656 = vmatprep.mubr.bf16.mxu0 0
        %2657 = vmatmul.mubr.bf16.gmra.mrb[0].mxu0 %v1278
        %v2658 = vpop.f32.mrb[0].mxu0
        %v2659 = vadd.f32 %v2498, %v2658
        %v2660 = vpop.f32.mrb[0].mxu0
        %v2661 = vpop.f32.mrb[0].mxu0
        %v2662 = vadd.f32 %v2501, %v2661
        %v2663 = vpop.f32.mrb[0].mxu0
        %2664 = vmatprep.mubr.bf16.mxu0 0
        %2665 = vmatmul.mubr.bf16.gmra.mrb[0].mxu0 %v1287
        %v2666 = vpop.f32.mrb[0].mxu0
        %v2667 = vadd.f32 %v2506, %v2666
        %v2668 = vpop.f32.mrb[0].mxu0
        %v2669 = vpop.f32.mrb[0].mxu0
        %v2670 = vadd.f32 %v2509, %v2669
        %v2671 = vpop.f32.mrb[0].mxu0
        %2672 = vmatprep.mubr.bf16.mxu0 0
        %2673 = vmatmul.mubr.bf16.gmra.mrb[0].mxu0 %v1296
        %v2674 = vpop.f32.mrb[0].mxu0
        %v2675 = vadd.f32 %v2514, %v2674
        %v2676 = vpop.f32.mrb[0].mxu0
        %v2677 = vpop.f32.mrb[0].mxu0
        %v2678 = vadd.f32 %v2517, %v2677
        %v2679 = vpop.f32.mrb[0].mxu0
        %2680 = vmatprep.mubr.bf16.mxu0 0
        %2681 = vmatmul.mubr.bf16.gmra.mrb[0].mxu0 %v1305
        %v2682 = vpop.f32.mrb[0].mxu0
        %v2683 = vadd.f32 %v2522, %v2682
        %v2684 = vpop.f32.mrb[0].mxu0
        %v2685 = vpop.f32.mrb[0].mxu0
        %v2686 = vadd.f32 %v2525, %v2685
        %v2687 = vpop.f32.mrb[0].mxu0
        %2688 = vmatprep.mubr.bf16.mxu0 0
        %2689 = vmatmul.mubr.bf16.gmra.mrb[0].mxu0 %v1314
        %v2690 = vpop.f32.mrb[0].mxu0
        %v2691 = vadd.f32 %v2530, %v2690
        %v2692 = vpop.f32.mrb[0].mxu0
        %v2693 = vpop.f32.mrb[0].mxu0
        %v2694 = vadd.f32 %v2533, %v2693
        %v2695 = vpop.f32.mrb[0].mxu0
        %2696 = vmatprep.mubr.bf16.mxu0 0
        %2697 = vmatmul.mubr.bf16.gmra.mrb[0].mxu0 %v1323
        %v2698 = vpop.f32.mrb[0].mxu0
        %v2699 = vadd.f32 %v2538, %v2698
        %v2700 = vpop.f32.mrb[0].mxu0
        %v2701 = vpop.f32.mrb[0].mxu0
        %v2702 = vadd.f32 %v2541, %v2701
        %v2703 = vpop.f32.mrb[0].mxu0
        %2704 = vdwg.mxu0
        %v2705 = vmax.f32 %v2579, 0.0
        %v2706 = vmax.f32 %v2582, 0.0
        %v2707 = vmax.f32 %v2587, 0.0
        %v2708 = vmax.f32 %v2590, 0.0
        %v2709 = vmax.f32 %v2595, 0.0
        %v2710 = vmax.f32 %v2598, 0.0
        %v2711 = vmax.f32 %v2603, 0.0
        %v2712 = vmax.f32 %v2606, 0.0
        %v2713 = vmax.f32 %v2611, 0.0
        %v2714 = vmax.f32 %v2614, 0.0
        %v2715 = vmax.f32 %v2619, 0.0
        %v2716 = vmax.f32 %v2622, 0.0
        %v2717 = vmax.f32 %v2627, 0.0
        %v2718 = vmax.f32 %v2630, 0.0
        %v2719 = vmax.f32 %v2635, 0.0
        %v2720 = vmax.f32 %v2638, 0.0
        %v2721 = vmax.f32 %v2643, 0.0
        %v2722 = vmax.f32 %v2646, 0.0
        %v2723 = vmax.f32 %v2651, 0.0
        %v2724 = vmax.f32 %v2654, 0.0
        %v2725 = vmax.f32 %v2659, 0.0
        %v2726 = vmax.f32 %v2662, 0.0
        %v2727 = vmax.f32 %v2667, 0.0
        %v2728 = vmax.f32 %v2670, 0.0
        %v2729 = vmax.f32 %v2675, 0.0
        %v2730 = vmax.f32 %v2678, 0.0
        %v2731 = vmax.f32 %v2683, 0.0
        %v2732 = vmax.f32 %v2686, 0.0
        %v2733 = vmax.f32 %v2691, 0.0
        %v2734 = vmax.f32 %v2694, 0.0
        %v2735 = vmax.f32 %v2699, 0.0
        %v2736 = vmax.f32 %v2702, 0.0
        %v2737 = vpack.c.bf16 %v2706, %v2705
        %v2738 = vpack.c.bf16 %v2708, %v2707
        %v2739 = vpack.c.bf16 %v2710, %v2709
        %v2740 = vpack.c.bf16 %v2712, %v2711
        %v2741 = vpack.c.bf16 %v2714, %v2713
        %v2742 = vpack.c.bf16 %v2716, %v2715
        %v2743 = vpack.c.bf16 %v2718, %v2717
        %v2744 = vpack.c.bf16 %v2720, %v2719
        %v2745 = vpack.c.bf16 %v2722, %v2721
        %v2746 = vpack.c.bf16 %v2724, %v2723
        %v2747 = vpack.c.bf16 %v2726, %v2725
        %v2748 = vpack.c.bf16 %v2728, %v2727
        %v2749 = vpack.c.bf16 %v2730, %v2729
        %v2750 = vpack.c.bf16 %v2732, %v2731
        %v2751 = vpack.c.bf16 %v2734, %v2733
        %v2752 = vpack.c.bf16 %v2736, %v2735
        %v2769 = vunpack.c.l.b16 %v2737
        %v2770 = vunpack.c.h.b16 %v2737
        %v2771 = vunpack.c.l.b16 %v2738
        %v2772 = vunpack.c.h.b16 %v2738
        %v2773 = vunpack.c.l.b16 %v2739
        %v2774 = vunpack.c.h.b16 %v2739
        %v2775 = vunpack.c.l.b16 %v2740
        %v2776 = vunpack.c.h.b16 %v2740
        %v2777 = vunpack.c.l.b16 %v2741
        %v2778 = vunpack.c.h.b16 %v2741
        %v2779 = vunpack.c.l.b16 %v2742
        %v2780 = vunpack.c.h.b16 %v2742
        %v2781 = vunpack.c.l.b16 %v2743
        %v2782 = vunpack.c.h.b16 %v2743
        %v2783 = vunpack.c.l.b16 %v2744
        %v2784 = vunpack.c.h.b16 %v2744
        %v2785 = vunpack.c.l.b16 %v2745
        %v2786 = vunpack.c.h.b16 %v2745
        %v2787 = vunpack.c.l.b16 %v2746
        %v2788 = vunpack.c.h.b16 %v2746
        %v2789 = vunpack.c.l.b16 %v2747
        %v2790 = vunpack.c.h.b16 %v2747
        %v2791 = vunpack.c.l.b16 %v2748
        %v2792 = vunpack.c.h.b16 %v2748
        %v2793 = vunpack.c.l.b16 %v2749
        %v2794 = vunpack.c.h.b16 %v2749
        %v2795 = vunpack.c.l.b16 %v2750
        %v2796 = vunpack.c.h.b16 %v2750
        %v2797 = vunpack.c.l.b16 %v2751
        %v2798 = vunpack.c.h.b16 %v2751
        %v2799 = vunpack.c.l.b16 %v2752
        %v2800 = vunpack.c.h.b16 %v2752
        %v2801 = vpack.c.b16 %v2769, %v2769
        %v2802 = vpack.c.b16 %v2770, %v2770
        %v2803 = vpack.c.b16 %v2771, %v2771
        %v2804 = vpack.c.b16 %v2772, %v2772
        %v2805 = vpack.c.b16 %v2773, %v2773
        %v2806 = vpack.c.b16 %v2774, %v2774
        %v2807 = vpack.c.b16 %v2775, %v2775
        %v2808 = vpack.c.b16 %v2776, %v2776
        %v2809 = vpack.c.b16 %v2777, %v2777
        %v2810 = vpack.c.b16 %v2778, %v2778
        %v2811 = vpack.c.b16 %v2779, %v2779
        %v2812 = vpack.c.b16 %v2780, %v2780
        %v2813 = vpack.c.b16 %v2781, %v2781
        %v2814 = vpack.c.b16 %v2782, %v2782
        %v2815 = vpack.c.b16 %v2783, %v2783
        %v2816 = vpack.c.b16 %v2784, %v2784
        %v2817 = vpack.c.b16 %v2785, %v2785
        %v2818 = vpack.c.b16 %v2786, %v2786
        %v2819 = vpack.c.b16 %v2787, %v2787
        %v2820 = vpack.c.b16 %v2788, %v2788
        %v2821 = vpack.c.b16 %v2789, %v2789
        %v2822 = vpack.c.b16 %v2790, %v2790
        %v2823 = vpack.c.b16 %v2791, %v2791
        %v2824 = vpack.c.b16 %v2792, %v2792
        %v2825 = vpack.c.b16 %v2793, %v2793
        %v2826 = vpack.c.b16 %v2794, %v2794
        %v2827 = vpack.c.b16 %v2795, %v2795
        %v2828 = vpack.c.b16 %v2796, %v2796
        %v2829 = vpack.c.b16 %v2797, %v2797
        %v2830 = vpack.c.b16 %v2798, %v2798
        %v2831 = vpack.c.b16 %v2799, %v2799
        %v2832 = vpack.c.b16 %v2800, %v2800
        %vm2865 = vcmask 27648
        %2866 = vst.msk [vmem:[%s234] sm:$0xf] %vm2865, %v2801
        %2867 = vst.msk [vmem:[%s234 + $0x4] sm:$0xf] %vm2865, %v2802
        %2868 = vst.msk [vmem:[%s234 + $0x8] sm:$0xf] %vm2865, %v2803
        %2869 = vst.msk [vmem:[%s234 + $0xc] sm:$0xf] %vm2865, %v2804
        %2870 = vst.msk [vmem:[%s234 + $0x10] sm:$0xf] %vm2865, %v2805
        %2871 = vst.msk [vmem:[%s234 + $0x14] sm:$0xf] %vm2865, %v2806
        %2872 = vst.msk [vmem:[%s234 + $0x18] sm:$0xf] %vm2865, %v2807
        %2873 = vst.msk [vmem:[%s234 + $0x1c] sm:$0xf] %vm2865, %v2808
        %2874 = vst.msk [vmem:[%s234 + $0x20] sm:$0xf] %vm2865, %v2809
        %2875 = vst.msk [vmem:[%s234 + $0x24] sm:$0xf] %vm2865, %v2810
        %2876 = vst.msk [vmem:[%s234 + $0x28] sm:$0xf] %vm2865, %v2811
        %2877 = vst.msk [vmem:[%s234 + $0x2c] sm:$0xf] %vm2865, %v2812
        %2878 = vst.msk [vmem:[%s234 + $0x30] sm:$0xf] %vm2865, %v2813
        %2879 = vst.msk [vmem:[%s234 + $0x34] sm:$0xf] %vm2865, %v2814
        %2880 = vst.msk [vmem:[%s234 + $0x38] sm:$0xf] %vm2865, %v2815
        %2881 = vst.msk [vmem:[%s234 + $0x3c] sm:$0xf] %vm2865, %v2816
        %2882 = vst.msk [vmem:[%s234 + $0x40] sm:$0xf] %vm2865, %v2817
        %2883 = vst.msk [vmem:[%s234 + $0x44] sm:$0xf] %vm2865, %v2818
        %2884 = vst.msk [vmem:[%s234 + $0x48] sm:$0xf] %vm2865, %v2819
        %2885 = vst.msk [vmem:[%s234 + $0x4c] sm:$0xf] %vm2865, %v2820
        %2886 = vst.msk [vmem:[%s234 + $0x50] sm:$0xf] %vm2865, %v2821
        %2887 = vst.msk [vmem:[%s234 + $0x54] sm:$0xf] %vm2865, %v2822
        %2888 = vst.msk [vmem:[%s234 + $0x58] sm:$0xf] %vm2865, %v2823
        %2889 = vst.msk [vmem:[%s234 + $0x5c] sm:$0xf] %vm2865, %v2824
        %2890 = vst.msk [vmem:[%s234 + $0x60] sm:$0xf] %vm2865, %v2825
        %2891 = vst.msk [vmem:[%s234 + $0x64] sm:$0xf] %vm2865, %v2826
        %2892 = vst.msk [vmem:[%s234 + $0x68] sm:$0xf] %vm2865, %v2827
        %2893 = vst.msk [vmem:[%s234 + $0x6c] sm:$0xf] %vm2865, %v2828
        %2894 = vst.msk [vmem:[%s234 + $0x70] sm:$0xf] %vm2865, %v2829
        %2895 = vst.msk [vmem:[%s234 + $0x74] sm:$0xf] %vm2865, %v2830
        %2896 = vst.msk [vmem:[%s234 + $0x78] sm:$0xf] %vm2865, %v2831
        %2897 = vst.msk [vmem:[%s234 + $0x7c] sm:$0xf] %vm2865, %v2832
        %s2898 = sand.u32 %s113, 1
        %s2899 = scalar_lea.sflag [#allocation4], %s2898
        %s2900 = sand.u32 %s113, 1
        %s2901 = smul.addr %s2900, 128
        %s2902 = scalar_lea.vmem [#allocation8], %s2901
        // Predicated region
        $region45: #{_forward_impl.9} parent=31 // pred_check
          %p2903 = pneg %p123
        $region46: #{_forward_impl.9} parent=31 // pred_check_branch
          %2905 = sbr.rel (%p2903) target = $region48
        $region47: #{_forward_impl.9} parent=31 // pred_region
          %s2907 = ssub.s32 2048, 2048
          %2908 = vsyncadd %s2899, %s2907
          %s2909 = smul.addr %s25, 32
          %s2910 = sadd.s32 %s26, %s2909
          %s2911 = smul.addr %s2910, 64
          %s2912 = scalar_lea.hbm %s3, %s2911
          %s2913 = sshll.u32 %s2902, 4
          %s2914 = int_to_ptr.vmem [resolvable:$true] %s2913
          %2919 = dma.vmem_to_hbm [thread:$0]  %s2914, 2048, %s2912, %s2899, 64, 64, 4
        $region48: #{_forward_impl.9} parent=31 // pred_fallthru
          _
      $region32: #{_forward_impl.9} parent=5 // pred_fallthru
        _
      %p2920 = scmp.le.s32.totalorder 2, %s16
      // Predicated region
      $region49: #{_forward_impl.9} parent=5 // pred_check
        %p2921 = pneg %p2920
      $region50: #{_forward_impl.9} parent=5 // pred_check_branch
        %2923 = sbr.rel (%p2921) target = $region52
      $region51: #{_forward_impl.9} parent=5 // pred_region
        %s2924 = ssub.s32 %s16, 2
        // Predicated region
        $region53: #{_forward_impl.9} parent=51 // pred_check
          %p2925 = pneg %p129
        $region54: #{_forward_impl.9} parent=51 // pred_check_branch
          %2927 = sbr.rel (%p2925) target = $region56
        $region55: #{_forward_impl.9} parent=51 // pred_region
          %s2928 = sand.u32 %s114, 1
          %s2929 = scalar_lea.sflag [#allocation4], %s2928
          %s2930 = sand.u32 %s114, 1
          %s2931 = smul.addr %s2930, 128
          %s2932 = scalar_lea.vmem [#allocation8], %s2931
          %2933 = dma.done %s2929, 2048
        $region56: #{_forward_impl.9} parent=51 // pred_fallthru
          _
      $region52: #{_forward_impl.9} parent=5 // pred_fallthru
        _
    $region6: #{_forward_impl.9} parent=1 // loop_footer
      %s20 = sadd.s32 1, %s16
    $region7: #{_forward_impl.9} parent=1 // loop_footer_branch
      %15 = sbr.rel target = $region3
    $region8: #{_forward_impl.9} parent=1 // loop_exit
      _
    %2934 = vsyncpa [#allocation3], 1
    %s2935 = scalar_lea.sflag [#allocation3], 1
    %2936 = vsyncpa %s2935, 1
    %2937 = vsyncpa [#allocation6], 1
    %2938 = vsyncpa [#allocation4], 1
    %s2939 = scalar_lea.sflag [#allocation4], 1
    %2940 = vsyncpa %s2939, 1

</llo_original>
